<compile_context>
chip_gen: v5e
topology: v5e:2x2
jax: 0.10.0
libtpu: 0.0.40
codegen_flags: <defaults>
</compile_context>

<pallas_src>
import functools
import math
from dataclasses import dataclass

import jax
import jax.numpy as jnp
from jax import lax
from jax.experimental import pallas as pl
from jax.experimental.pallas import tpu as pltpu


@dataclass
class GPTConfig:
    vocab_size: int = 64
    block_size: int = 16
    n_embd: int = 32
    n_head: int = 4
    n_layer: int = 2
    n_lm_head: int = 10


# Order of the per-block parameter arrays (each stacked over blocks on dim 0)
# fed to the fused kernel.
STACKED = [
    "ln1_w", "ln1_b",
    "wq1", "bq1", "wk1", "bk1", "wv1", "bv1", "wp1", "bp1",
    "ln2_w", "ln2_b",
    "wq2", "bq2", "wk2", "bk2", "wv2", "bv2", "wp2", "bp2",
    "lin_w", "lin_b",
]


def _layernorm(x, w, b, eps=1e-5):
    mu = jnp.mean(x, axis=-1, keepdims=True)
    var = jnp.mean((x - mu) ** 2, axis=-1, keepdims=True)
    return (x - mu) * lax.rsqrt(var + eps) * w + b


# ---------------------------------------------------------------------------
# The single fused Pallas kernel
# ---------------------------------------------------------------------------
def gpt_fused_kernel(x_ref, rep_ref, vmask_ref, bias_ref, sel_ref,
                     ln1_w, ln1_b, wq1, bq1, wk1, bk1, wv1, bv1, wp1, bp1,
                     ln2_w, ln2_b, wq2, bq2, wk2, bk2, wv2, bv2, wp2, bp2,
                     lin_w, lin_b,
                     lnf_w, lnf_b, lm_w, lm_b,
                     o_ref, *, n_blocks, n_reps, scale):
    x = x_ref[...]            # (B*T, C)    activations, resident in VMEM/vregs
    rep = rep_ref[...]        # (H*BT, BT)  0/1 row-replication matrix
    vmask = vmask_ref[...]    # (H*BT, C)   head block-diagonal 0/1 mask
    att_bias = bias_ref[...]  # (BT, H*BT)  0 within a sequence, -1e30 across

    def attention(h, wq, bq, wk, bk, wv, bv, wp, bp):
        q = jnp.dot(h, wq, preferred_element_type=jnp.float32) + bq   # (BT, C)
        k = jnp.dot(h, wk, preferred_element_type=jnp.float32) + bk
        v = jnp.dot(h, wv, preferred_element_type=jnp.float32) + bv
        # Head-block-diagonal K / V:  kbd[h*BT + j, c] = k[j, c] * [c in head h]
        # (constant matmul + mask -> no lane slicing, no reshape/transpose).
        kbd = jnp.dot(rep, k, preferred_element_type=jnp.float32) * vmask
        vbd = jnp.dot(rep, v, preferred_element_type=jnp.float32) * vmask
        # All heads' scores in one (BT, H*BT) matmul; cross-sequence entries
        # are pushed to -1e30 so they vanish in the softmax.
        s = lax.dot_general(q, kbd, (((1,), (1,)), ((), ())),
                            preferred_element_type=jnp.float32) * scale
        s = s + att_bias
        # Global (row) max shift cancels in num/den, so per-head max is not
        # needed for correctness.
        p = jnp.exp(s - jnp.max(s, axis=-1, keepdims=True))
        num = jnp.dot(p, vbd, preferred_element_type=jnp.float32)     # (BT, C)
        den = jnp.dot(p, vmask, preferred_element_type=jnp.float32)   # per-head sums
        # Per-head softmax normalization: reciprocal goes to the EUP slot.
        y = num * pl.reciprocal(den, approx=True)
        return jnp.dot(y, wp, preferred_element_type=jnp.float32) + bp

    for bi in range(n_blocks):
        # Hoist this block's weights out of the repetition loop: read once,
        # reuse for all n_reps repetitions (the PyTorch Block re-applies the
        # SAME 5 sub-modules n_layer times).
        (L1w, L1b, Wq1, Bq1, Wk1, Bk1, Wv1, Bv1, Wp1, Bp1,
         L2w, L2b, Wq2, Bq2, Wk2, Bk2, Wv2, Bv2, Wp2, Bp2,
         Lw, Lb) = [r[bi] for r in (
             ln1_w, ln1_b, wq1, bq1, wk1, bk1, wv1, bv1, wp1, bp1,
             ln2_w, ln2_b, wq2, bq2, wk2, bk2, wv2, bv2, wp2, bp2,
             lin_w, lin_b)]
        for _ in range(n_reps):
            x = _layernorm(x, L1w, L1b)
            x = attention(x, Wq1, Bq1, Wk1, Bk1, Wv1, Bv1, Wp1, Bp1)
            x = _layernorm(x, L2w, L2b)
            x = attention(x, Wq2, Bq2, Wk2, Bk2, Wv2, Bv2, Wp2, Bp2)
            x = jnp.dot(x, Lw, preferred_element_type=jnp.float32) + Lb

    # Select the last-token row of every sequence (constant 0/1 matmul), then
    # run the final LayerNorm + lm_head on only those B rows.  The kernel
    # output is directly (B, n_lm_head) -- nothing left for the wrapper.
    x_last = jnp.dot(sel_ref[...], x, preferred_element_type=jnp.float32)  # (B, C)
    xf = _layernorm(x_last, lnf_w[...], lnf_b[...])
    o_ref[...] = jnp.dot(xf, lm_w[...],
                         preferred_element_type=jnp.float32) + lm_b[...]


# ---------------------------------------------------------------------------
# Wrapper-side parameter / constant preparation (layout plumbing only)
# ---------------------------------------------------------------------------
def prepare_fused_params(params, cfg):
    """Split fused QKV weights into per-projection (C, C) matrices and stack
    every per-block parameter along a leading n_blocks dimension."""
    C = cfg.n_embd
    acc = {k: [] for k in STACKED}
    for bp in params["blocks"]:
        for idx, tag in ((1, "a1"), (2, "a2")):
            w, b = bp[f"{tag}_qkv_w"], bp[f"{tag}_qkv_b"]
            acc[f"wq{idx}"].append(w[:, :C])
            acc[f"bq{idx}"].append(b[:, :C])
            acc[f"wk{idx}"].append(w[:, C:2 * C])
            acc[f"bk{idx}"].append(b[:, C:2 * C])
            acc[f"wv{idx}"].append(w[:, 2 * C:])
            acc[f"bv{idx}"].append(b[:, 2 * C:])
            acc[f"wp{idx}"].append(bp[f"{tag}_proj_w"])
            acc[f"bp{idx}"].append(bp[f"{tag}_proj_b"])
        for name in ("ln1_w", "ln1_b", "ln2_w", "ln2_b", "lin_w", "lin_b"):
            acc[name].append(bp[name])
    fused = {k: jnp.stack(v, axis=0) for k, v in acc.items()}
    for name in ("lnf_w", "lnf_b", "lm_w", "lm_b"):
        fused[name] = params[name]
    return fused


def build_masks(B, T, n_head, head_dim):
    """Constant masks for the head-batched, batch-flattened attention."""
    BT = B * T
    C = n_head * head_dim
    a = jnp.arange(n_head * BT)
    head_of_row = a // BT
    key_of_row = a % BT
    col_head = jnp.arange(C) // head_dim
    # vmask[h*BT + j, c] = 1 iff channel c belongs to head h.
    vmask = (head_of_row[:, None] == col_head[None, :]).astype(jnp.float32)
    # rep[h*BT + j, j'] = 1 iff j' == j  (replicates K/V rows per head).
    rep = (key_of_row[:, None] == jnp.arange(BT)[None, :]).astype(jnp.float32)
    # Additive attention bias: 0 within a sequence, -1e30 across sequences.
    q_batch = jnp.arange(BT) // T
    k_batch = key_of_row // T
    att_bias = jnp.where(q_batch[:, None] == k_batch[None, :],
                         0.0, -1e30).astype(jnp.float32)
    # sel[b, i] = 1 iff i is the last token of sequence b.
    sel = (jnp.arange(B)[:, None] * T + (T - 1)
           == jnp.arange(BT)[None, :]).astype(jnp.float32)
    return rep, vmask, att_bias, sel


def gpt_forward(tokens, params, cfg, fused=None, masks=None):
    B, T = tokens.shape
    C = cfg.n_embd
    head_dim = C // cfg.n_head
    if fused is None:
        fused = prepare_fused_params(params, cfg)
    if masks is None:
        masks = build_masks(B, T, cfg.n_head, head_dim)
    rep, vmask, att_bias, sel = masks

    # TODO(synk): token/position embedding gather stays in plain JAX (dynamic
    # vocab-table gather); everything else runs inside the single Pallas call.
    x = (params["wte"][tokens] + params["wpe"][:T][None, :, :]).reshape(B * T, C)

    kernel = functools.partial(gpt_fused_kernel,
                               n_blocks=cfg.n_layer,
                               n_reps=cfg.n_layer,
                               scale=1.0 / math.sqrt(head_dim))
    operands = [x, rep, vmask, att_bias, sel] + [fused[k] for k in STACKED] + [
        fused["lnf_w"], fused["lnf_b"], fused["lm_w"], fused["lm_b"]]

    # Single fused invocation (no grid): the whole model (<1 MiB of weights,
    # masks and activations) is resident in VMEM, so no pipelining is needed.
    # TODO(synk): for large configs (C>=768, T>=1024) add a 'parallel' batch
    # grid axis (v7x has 2 TensorCores) and tile the weight matmuls.
    logits = pl.pallas_call(
        kernel,
        out_shape=jax.ShapeDtypeStruct((B, cfg.n_lm_head), jnp.float32),
        compiler_params=pltpu.CompilerParams(vmem_limit_bytes=64 * 1024 * 1024),
    )(*operands)
    return logits


# ---------------------------------------------------------------------------
# Deterministic parameter init (synthetic; mirrors the PyTorch module's shapes)
# ---------------------------------------------------------------------------
def init_params(key, cfg):
    C = cfg.n_embd

    def linear(key, fan_in, fan_out):
        k1, k2 = jax.random.split(key)
        bound = 1.0 / math.sqrt(fan_in)
        w = jax.random.uniform(k1, (fan_in, fan_out), jnp.float32, -bound, bound)
        b = jax.random.uniform(k2, (1, fan_out), jnp.float32, -bound, bound)
        return w, b

    keys = jax.random.split(key, 3 + cfg.n_layer)
    params = {
        "wte": 0.02 * jax.random.normal(keys[0], (cfg.vocab_size, C), jnp.float32),
        "wpe": 0.02 * jax.random.normal(keys[1], (cfg.block_size, C), jnp.float32),
        "lnf_w": jnp.ones((1, C), jnp.float32),
        "lnf_b": jnp.zeros((1, C), jnp.float32),
        "blocks": [],
    }
    lm_w, lm_b = linear(keys[2], C, cfg.n_lm_head)
    params["lm_w"], params["lm_b"] = lm_w, lm_b

    for i in range(cfg.n_layer):
        bkeys = jax.random.split(keys[3 + i], 6)
        a1_qkv_w, a1_qkv_b = linear(bkeys[0], C, 3 * C)
        a1_proj_w, a1_proj_b = linear(bkeys[1], C, C)
        a2_qkv_w, a2_qkv_b = linear(bkeys[2], C, 3 * C)
        a2_proj_w, a2_proj_b = linear(bkeys[3], C, C)
        lin_w, lin_b = linear(bkeys[4], C, C)
        params["blocks"].append(dict(
            ln1_w=jnp.ones((1, C), jnp.float32), ln1_b=jnp.zeros((1, C), jnp.float32),
            a1_qkv_w=a1_qkv_w, a1_qkv_b=a1_qkv_b,
            a1_proj_w=a1_proj_w, a1_proj_b=a1_proj_b,
            ln2_w=jnp.ones((1, C), jnp.float32), ln2_b=jnp.zeros((1, C), jnp.float32),
            a2_qkv_w=a2_qkv_w, a2_qkv_b=a2_qkv_b,
            a2_proj_w=a2_proj_w, a2_proj_b=a2_proj_b,
            lin_w=lin_w, lin_b=lin_b,
        ))
    return params


# ---------------------------------------------------------------------------
# Pure-JAX reference (mirrors the PyTorch forward exactly)
# ---------------------------------------------------------------------------
def ref_forward(tokens, params, cfg):
    B, T = tokens.shape
    C, H = cfg.n_embd, cfg.n_head
    Dh = C // H
    x = params["wte"][tokens] + params["wpe"][:T][None, :, :]

    def ln(x, w, b):
        mu = x.mean(-1, keepdims=True)
        var = ((x - mu) ** 2).mean(-1, keepdims=True)
        return (x - mu) / jnp.sqrt(var + 1e-5) * w + b

    def attn(x, qw, qb, pw, pb):
        qkv = x @ qw + qb
        q, k, v = qkv[..., :C], qkv[..., C:2 * C], qkv[..., 2 * C:]
        q = q.reshape(B, T, H, Dh).transpose(0, 2, 1, 3)
        k = k.reshape(B, T, H, Dh).transpose(0, 2, 1, 3)
        v = v.reshape(B, T, H, Dh).transpose(0, 2, 1, 3)
        s = jnp.einsum("bhqd,bhkd->bhqk", q, k) / math.sqrt(Dh)
        p = jax.nn.softmax(s, axis=-1)
        y = jnp.einsum("bhqk,bhkd->bhqd", p, v)
        y = y.transpose(0, 2, 1, 3).reshape(B, T, C)
        return y @ pw + pb

    for bp in params["blocks"]:
        for _ in range(cfg.n_layer):
            x = ln(x, bp["ln1_w"], bp["ln1_b"])
            x = attn(x, bp["a1_qkv_w"], bp["a1_qkv_b"], bp["a1_proj_w"], bp["a1_proj_b"])
            x = ln(x, bp["ln2_w"], bp["ln2_b"])
            x = attn(x, bp["a2_qkv_w"], bp["a2_qkv_b"], bp["a2_proj_w"], bp["a2_proj_b"])
            x = x @ bp["lin_w"] + bp["lin_b"]
    x = ln(x[:, -1, :], params["lnf_w"], params["lnf_b"])
    return x @ params["lm_w"] + params["lm_b"]


if __name__ == "__main__":
    cfg = GPTConfig()
    key = jax.random.PRNGKey(0)
    k_tok, k_par = jax.random.split(key)

    B, T = 2, 8
    tokens = jax.random.randint(k_tok, (B, T), 0, cfg.vocab_size, dtype=jnp.int32)
    params = init_params(k_par, cfg)

    fused = prepare_fused_params(params, cfg)
    masks = build_masks(B, T, cfg.n_head, cfg.n_embd // cfg.n_head)

    logits = gpt_forward(tokens, params, cfg, fused=fused, masks=masks)
    logits = jax.block_until_ready(logits)

    ref = ref_forward(tokens, params, cfg)
    assert logits.shape == (B, cfg.n_lm_head)
    # Tolerance allows for MXU f32 rounding + approx-reciprocal softmax
    # normalization differences vs the plain-XLA reference path.
    if not jnp.allclose(logits, ref, atol=1e-2, rtol=1e-2):
        raise SystemExit("mismatch vs reference")
    print("KERNEL_OK")
</pallas_src>

<mosaic_0001>
module attributes {stable_mosaic.version = 11 : i64} {
  func.func @gpt_fused_kernel(%arg0: memref<16x32xf32, #tpu.memory_space<vmem>>, %arg1: memref<64x16xf32, #tpu.memory_space<vmem>>, %arg2: memref<64x32xf32, #tpu.memory_space<vmem>>, %arg3: memref<16x64xf32, #tpu.memory_space<vmem>>, %arg4: memref<2x16xf32, #tpu.memory_space<vmem>>, %arg5: memref<2x1x32xf32, #tpu.memory_space<vmem>>, %arg6: memref<2x1x32xf32, #tpu.memory_space<vmem>>, %arg7: memref<2x32x32xf32, #tpu.memory_space<vmem>>, %arg8: memref<2x1x32xf32, #tpu.memory_space<vmem>>, %arg9: memref<2x32x32xf32, #tpu.memory_space<vmem>>, %arg10: memref<2x1x32xf32, #tpu.memory_space<vmem>>, %arg11: memref<2x32x32xf32, #tpu.memory_space<vmem>>, %arg12: memref<2x1x32xf32, #tpu.memory_space<vmem>>, %arg13: memref<2x32x32xf32, #tpu.memory_space<vmem>>, %arg14: memref<2x1x32xf32, #tpu.memory_space<vmem>>, %arg15: memref<2x1x32xf32, #tpu.memory_space<vmem>>, %arg16: memref<2x1x32xf32, #tpu.memory_space<vmem>>, %arg17: memref<2x32x32xf32, #tpu.memory_space<vmem>>, %arg18: memref<2x1x32xf32, #tpu.memory_space<vmem>>, %arg19: memref<2x32x32xf32, #tpu.memory_space<vmem>>, %arg20: memref<2x1x32xf32, #tpu.memory_space<vmem>>, %arg21: memref<2x32x32xf32, #tpu.memory_space<vmem>>, %arg22: memref<2x1x32xf32, #tpu.memory_space<vmem>>, %arg23: memref<2x32x32xf32, #tpu.memory_space<vmem>>, %arg24: memref<2x1x32xf32, #tpu.memory_space<vmem>>, %arg25: memref<2x32x32xf32, #tpu.memory_space<vmem>>, %arg26: memref<2x1x32xf32, #tpu.memory_space<vmem>>, %arg27: memref<1x32xf32, #tpu.memory_space<vmem>>, %arg28: memref<1x32xf32, #tpu.memory_space<vmem>>, %arg29: memref<32x10xf32, #tpu.memory_space<vmem>>, %arg30: memref<1x10xf32, #tpu.memory_space<vmem>>, %arg31: memref<2x10xf32, #tpu.memory_space<vmem>>) attributes {dimension_semantics = [], scalar_prefetch = 0 : i64, scratch_operands = 0 : i64, tpu.core_type = #tpu.core_type<tc>} {
    %c0 = arith.constant 0 : index
    %c0_0 = arith.constant 0 : index
    %0 = vector.load %arg0[%c0, %c0_0] : memref<16x32xf32, #tpu.memory_space<vmem>>, vector<16x32xf32>
    %c0_1 = arith.constant 0 : index
    %c0_2 = arith.constant 0 : index
    %1 = vector.load %arg1[%c0_1, %c0_2] : memref<64x16xf32, #tpu.memory_space<vmem>>, vector<64x16xf32>
    %c0_3 = arith.constant 0 : index
    %c0_4 = arith.constant 0 : index
    %2 = vector.load %arg2[%c0_3, %c0_4] : memref<64x32xf32, #tpu.memory_space<vmem>>, vector<64x32xf32>
    %c0_5 = arith.constant 0 : index
    %c0_6 = arith.constant 0 : index
    %3 = vector.load %arg3[%c0_5, %c0_6] : memref<16x64xf32, #tpu.memory_space<vmem>>, vector<16x64xf32>
    %c0_7 = arith.constant 0 : index
    %c0_8 = arith.constant 0 : index
    %c0_9 = arith.constant 0 : index
    %4 = vector.load %arg5[%c0_7, %c0_8, %c0_9] : memref<2x1x32xf32, #tpu.memory_space<vmem>>, vector<1x1x32xf32>
    %5 = vector.shape_cast %4 : vector<1x1x32xf32> to vector<1x32xf32>
    %c0_10 = arith.constant 0 : index
    %c0_11 = arith.constant 0 : index
    %c0_12 = arith.constant 0 : index
    %6 = vector.load %arg6[%c0_10, %c0_11, %c0_12] : memref<2x1x32xf32, #tpu.memory_space<vmem>>, vector<1x1x32xf32>
    %7 = vector.shape_cast %6 : vector<1x1x32xf32> to vector<1x32xf32>
    %c0_13 = arith.constant 0 : index
    %c0_14 = arith.constant 0 : index
    %c0_15 = arith.constant 0 : index
    %8 = vector.load %arg7[%c0_13, %c0_14, %c0_15] : memref<2x32x32xf32, #tpu.memory_space<vmem>>, vector<1x32x32xf32>
    %9 = vector.shape_cast %8 : vector<1x32x32xf32> to vector<32x32xf32>
    %c0_16 = arith.constant 0 : index
    %c0_17 = arith.constant 0 : index
    %c0_18 = arith.constant 0 : index
    %10 = vector.load %arg8[%c0_16, %c0_17, %c0_18] : memref<2x1x32xf32, #tpu.memory_space<vmem>>, vector<1x1x32xf32>
    %11 = vector.shape_cast %10 : vector<1x1x32xf32> to vector<1x32xf32>
    %c0_19 = arith.constant 0 : index
    %c0_20 = arith.constant 0 : index
    %c0_21 = arith.constant 0 : index
    %12 = vector.load %arg9[%c0_19, %c0_20, %c0_21] : memref<2x32x32xf32, #tpu.memory_space<vmem>>, vector<1x32x32xf32>
    %13 = vector.shape_cast %12 : vector<1x32x32xf32> to vector<32x32xf32>
    %c0_22 = arith.constant 0 : index
    %c0_23 = arith.constant 0 : index
    %c0_24 = arith.constant 0 : index
    %14 = vector.load %arg10[%c0_22, %c0_23, %c0_24] : memref<2x1x32xf32, #tpu.memory_space<vmem>>, vector<1x1x32xf32>
    %15 = vector.shape_cast %14 : vector<1x1x32xf32> to vector<1x32xf32>
    %c0_25 = arith.constant 0 : index
    %c0_26 = arith.constant 0 : index
    %c0_27 = arith.constant 0 : index
    %16 = vector.load %arg11[%c0_25, %c0_26, %c0_27] : memref<2x32x32xf32, #tpu.memory_space<vmem>>, vector<1x32x32xf32>
    %17 = vector.shape_cast %16 : vector<1x32x32xf32> to vector<32x32xf32>
    %c0_28 = arith.constant 0 : index
    %c0_29 = arith.constant 0 : index
    %c0_30 = arith.constant 0 : index
    %18 = vector.load %arg12[%c0_28, %c0_29, %c0_30] : memref<2x1x32xf32, #tpu.memory_space<vmem>>, vector<1x1x32xf32>
    %19 = vector.shape_cast %18 : vector<1x1x32xf32> to vector<1x32xf32>
    %c0_31 = arith.constant 0 : index
    %c0_32 = arith.constant 0 : index
    %c0_33 = arith.constant 0 : index
    %20 = vector.load %arg13[%c0_31, %c0_32, %c0_33] : memref<2x32x32xf32, #tpu.memory_space<vmem>>, vector<1x32x32xf32>
    %21 = vector.shape_cast %20 : vector<1x32x32xf32> to vector<32x32xf32>
    %c0_34 = arith.constant 0 : index
    %c0_35 = arith.constant 0 : index
    %c0_36 = arith.constant 0 : index
    %22 = vector.load %arg14[%c0_34, %c0_35, %c0_36] : memref<2x1x32xf32, #tpu.memory_space<vmem>>, vector<1x1x32xf32>
    %23 = vector.shape_cast %22 : vector<1x1x32xf32> to vector<1x32xf32>
    %c0_37 = arith.constant 0 : index
    %c0_38 = arith.constant 0 : index
    %c0_39 = arith.constant 0 : index
    %24 = vector.load %arg15[%c0_37, %c0_38, %c0_39] : memref<2x1x32xf32, #tpu.memory_space<vmem>>, vector<1x1x32xf32>
    %25 = vector.shape_cast %24 : vector<1x1x32xf32> to vector<1x32xf32>
    %c0_40 = arith.constant 0 : index
    %c0_41 = arith.constant 0 : index
    %c0_42 = arith.constant 0 : index
    %26 = vector.load %arg16[%c0_40, %c0_41, %c0_42] : memref<2x1x32xf32, #tpu.memory_space<vmem>>, vector<1x1x32xf32>
    %27 = vector.shape_cast %26 : vector<1x1x32xf32> to vector<1x32xf32>
    %c0_43 = arith.constant 0 : index
    %c0_44 = arith.constant 0 : index
    %c0_45 = arith.constant 0 : index
    %28 = vector.load %arg17[%c0_43, %c0_44, %c0_45] : memref<2x32x32xf32, #tpu.memory_space<vmem>>, vector<1x32x32xf32>
    %29 = vector.shape_cast %28 : vector<1x32x32xf32> to vector<32x32xf32>
    %c0_46 = arith.constant 0 : index
    %c0_47 = arith.constant 0 : index
    %c0_48 = arith.constant 0 : index
    %30 = vector.load %arg18[%c0_46, %c0_47, %c0_48] : memref<2x1x32xf32, #tpu.memory_space<vmem>>, vector<1x1x32xf32>
    %31 = vector.shape_cast %30 : vector<1x1x32xf32> to vector<1x32xf32>
    %c0_49 = arith.constant 0 : index
    %c0_50 = arith.constant 0 : index
    %c0_51 = arith.constant 0 : index
    %32 = vector.load %arg19[%c0_49, %c0_50, %c0_51] : memref<2x32x32xf32, #tpu.memory_space<vmem>>, vector<1x32x32xf32>
    %33 = vector.shape_cast %32 : vector<1x32x32xf32> to vector<32x32xf32>
    %c0_52 = arith.constant 0 : index
    %c0_53 = arith.constant 0 : index
    %c0_54 = arith.constant 0 : index
    %34 = vector.load %arg20[%c0_52, %c0_53, %c0_54] : memref<2x1x32xf32, #tpu.memory_space<vmem>>, vector<1x1x32xf32>
    %35 = vector.shape_cast %34 : vector<1x1x32xf32> to vector<1x32xf32>
    %c0_55 = arith.constant 0 : index
    %c0_56 = arith.constant 0 : index
    %c0_57 = arith.constant 0 : index
    %36 = vector.load %arg21[%c0_55, %c0_56, %c0_57] : memref<2x32x32xf32, #tpu.memory_space<vmem>>, vector<1x32x32xf32>
    %37 = vector.shape_cast %36 : vector<1x32x32xf32> to vector<32x32xf32>
    %c0_58 = arith.constant 0 : index
    %c0_59 = arith.constant 0 : index
    %c0_60 = arith.constant 0 : index
    %38 = vector.load %arg22[%c0_58, %c0_59, %c0_60] : memref<2x1x32xf32, #tpu.memory_space<vmem>>, vector<1x1x32xf32>
    %39 = vector.shape_cast %38 : vector<1x1x32xf32> to vector<1x32xf32>
    %c0_61 = arith.constant 0 : index
    %c0_62 = arith.constant 0 : index
    %c0_63 = arith.constant 0 : index
    %40 = vector.load %arg23[%c0_61, %c0_62, %c0_63] : memref<2x32x32xf32, #tpu.memory_space<vmem>>, vector<1x32x32xf32>
    %41 = vector.shape_cast %40 : vector<1x32x32xf32> to vector<32x32xf32>
    %c0_64 = arith.constant 0 : index
    %c0_65 = arith.constant 0 : index
    %c0_66 = arith.constant 0 : index
    %42 = vector.load %arg24[%c0_64, %c0_65, %c0_66] : memref<2x1x32xf32, #tpu.memory_space<vmem>>, vector<1x1x32xf32>
    %43 = vector.shape_cast %42 : vector<1x1x32xf32> to vector<1x32xf32>
    %c0_67 = arith.constant 0 : index
    %c0_68 = arith.constant 0 : index
    %c0_69 = arith.constant 0 : index
    %44 = vector.load %arg25[%c0_67, %c0_68, %c0_69] : memref<2x32x32xf32, #tpu.memory_space<vmem>>, vector<1x32x32xf32>
    %45 = vector.shape_cast %44 : vector<1x32x32xf32> to vector<32x32xf32>
    %c0_70 = arith.constant 0 : index
    %c0_71 = arith.constant 0 : index
    %c0_72 = arith.constant 0 : index
    %46 = vector.load %arg26[%c0_70, %c0_71, %c0_72] : memref<2x1x32xf32, #tpu.memory_space<vmem>>, vector<1x1x32xf32>
    %47 = vector.shape_cast %46 : vector<1x1x32xf32> to vector<1x32xf32>
    %cst = arith.constant dense<0.000000e+00> : vector<16xf32>
    %48 = vector.multi_reduction <add>, %0, %cst [1] : vector<16x32xf32> to vector<16xf32>
    %49 = vector.shape_cast %48 : vector<16xf32> to vector<16x1xf32>
    %cst_73 = arith.constant 3.200000e+01 : f32
    %50 = vector.broadcast %cst_73 : f32 to vector<16x1xf32>
    %51 = arith.divf %49, %50 : vector<16x1xf32>
    %52 = vector.broadcast %51 : vector<16x1xf32> to vector<16x32xf32>
    %53 = arith.subf %0, %52 : vector<16x32xf32>
    %54 = arith.mulf %53, %53 : vector<16x32xf32>
    %cst_74 = arith.constant dense<0.000000e+00> : vector<16xf32>
    %55 = vector.multi_reduction <add>, %54, %cst_74 [1] : vector<16x32xf32> to vector<16xf32>
    %56 = vector.shape_cast %55 : vector<16xf32> to vector<16x1xf32>
    %cst_75 = arith.constant 3.200000e+01 : f32
    %57 = vector.broadcast %cst_75 : f32 to vector<16x1xf32>
    %58 = arith.divf %56, %57 : vector<16x1xf32>
    %59 = vector.broadcast %51 : vector<16x1xf32> to vector<16x32xf32>
    %60 = arith.subf %0, %59 : vector<16x32xf32>
    %cst_76 = arith.constant 9.99999974E-6 : f32
    %61 = vector.broadcast %cst_76 : f32 to vector<16x1xf32>
    %62 = arith.addf %58, %61 : vector<16x1xf32>
    %63 = math.rsqrt %62 : vector<16x1xf32>
    %64 = vector.broadcast %63 : vector<16x1xf32> to vector<16x32xf32>
    %65 = arith.mulf %60, %64 : vector<16x32xf32>
    %66 = vector.broadcast %5 : vector<1x32xf32> to vector<16x32xf32>
    %67 = arith.mulf %65, %66 : vector<16x32xf32>
    %68 = vector.broadcast %7 : vector<1x32xf32> to vector<16x32xf32>
    %69 = arith.addf %67, %68 : vector<16x32xf32>
    %cst_77 = arith.constant dense<0.000000e+00> : vector<16x32xf32>
    %70 = tpu.matmul %69, %9, %cst_77 {dimension_numbers = #tpu.dot_dimension_numbers<[1], [0], [0], [1], [0, 0, 1, 1], [], []>} : vector<16x32xf32>, vector<32x32xf32>, vector<16x32xf32> -> vector<16x32xf32>
    %71 = vector.broadcast %11 : vector<1x32xf32> to vector<16x32xf32>
    %72 = arith.addf %70, %71 : vector<16x32xf32>
    %cst_78 = arith.constant dense<0.000000e+00> : vector<16x32xf32>
    %73 = tpu.matmul %69, %13, %cst_78 {dimension_numbers = #tpu.dot_dimension_numbers<[1], [0], [0], [1], [0, 0, 1, 1], [], []>} : vector<16x32xf32>, vector<32x32xf32>, vector<16x32xf32> -> vector<16x32xf32>
    %74 = vector.broadcast %15 : vector<1x32xf32> to vector<16x32xf32>
    %75 = arith.addf %73, %74 : vector<16x32xf32>
    %cst_79 = arith.constant dense<0.000000e+00> : vector<16x32xf32>
    %76 = tpu.matmul %69, %17, %cst_79 {dimension_numbers = #tpu.dot_dimension_numbers<[1], [0], [0], [1], [0, 0, 1, 1], [], []>} : vector<16x32xf32>, vector<32x32xf32>, vector<16x32xf32> -> vector<16x32xf32>
    %77 = vector.broadcast %19 : vector<1x32xf32> to vector<16x32xf32>
    %78 = arith.addf %76, %77 : vector<16x32xf32>
    %cst_80 = arith.constant dense<0.000000e+00> : vector<64x32xf32>
    %79 = tpu.matmul %1, %75, %cst_80 {dimension_numbers = #tpu.dot_dimension_numbers<[1], [0], [0], [1], [0, 0, 1, 1], [], []>} : vector<64x16xf32>, vector<16x32xf32>, vector<64x32xf32> -> vector<64x32xf32>
    %80 = arith.mulf %79, %2 : vector<64x32xf32>
    %cst_81 = arith.constant dense<0.000000e+00> : vector<64x32xf32>
    %81 = tpu.matmul %1, %78, %cst_81 {dimension_numbers = #tpu.dot_dimension_numbers<[1], [0], [0], [1], [0, 0, 1, 1], [], []>} : vector<64x16xf32>, vector<16x32xf32>, vector<64x32xf32> -> vector<64x32xf32>
    %82 = arith.mulf %81, %2 : vector<64x32xf32>
    %cst_82 = arith.constant dense<0.000000e+00> : vector<16x64xf32>
    %83 = tpu.matmul %72, %80, %cst_82 {dimension_numbers = #tpu.dot_dimension_numbers<[1], [1], [0], [0], [0, 0, 1, 0], [], []>} : vector<16x32xf32>, vector<64x32xf32>, vector<16x64xf32> -> vector<16x64xf32>
    %cst_83 = arith.constant 0.353553385 : f32
    %84 = vector.broadcast %cst_83 : f32 to vector<16x64xf32>
    %85 = arith.mulf %83, %84 : vector<16x64xf32>
    %86 = arith.addf %85, %3 : vector<16x64xf32>
    %cst_84 = arith.constant dense<0xFF800000> : vector<16xf32>
    %87 = vector.multi_reduction <maximumf>, %86, %cst_84 [1] : vector<16x64xf32> to vector<16xf32>
    %88 = vector.shape_cast %87 : vector<16xf32> to vector<16x1xf32>
    %89 = vector.broadcast %88 : vector<16x1xf32> to vector<16x64xf32>
    %90 = arith.subf %86, %89 : vector<16x64xf32>
    %91 = math.exp %90 : vector<16x64xf32>
    %cst_85 = arith.constant dense<0.000000e+00> : vector<16x32xf32>
    %92 = tpu.matmul %91, %82, %cst_85 {dimension_numbers = #tpu.dot_dimension_numbers<[1], [0], [0], [1], [0, 0, 1, 1], [], []>} : vector<16x64xf32>, vector<64x32xf32>, vector<16x32xf32> -> vector<16x32xf32>
    %cst_86 = arith.constant dense<0.000000e+00> : vector<16x32xf32>
    %93 = tpu.matmul %91, %2, %cst_86 {dimension_numbers = #tpu.dot_dimension_numbers<[1], [0], [0], [1], [0, 0, 1, 1], [], []>} : vector<16x64xf32>, vector<64x32xf32>, vector<16x32xf32> -> vector<16x32xf32>
    %94 = tpu.reciprocal %93 {approx = true} : vector<16x32xf32> -> vector<16x32xf32>
    %95 = arith.mulf %92, %94 : vector<16x32xf32>
    %cst_87 = arith.constant dense<0.000000e+00> : vector<16x32xf32>
    %96 = tpu.matmul %95, %21, %cst_87 {dimension_numbers = #tpu.dot_dimension_numbers<[1], [0], [0], [1], [0, 0, 1, 1], [], []>} : vector<16x32xf32>, vector<32x32xf32>, vector<16x32xf32> -> vector<16x32xf32>
    %97 = vector.broadcast %23 : vector<1x32xf32> to vector<16x32xf32>
    %98 = arith.addf %96, %97 : vector<16x32xf32>
    %cst_88 = arith.constant dense<0.000000e+00> : vector<16xf32>
    %99 = vector.multi_reduction <add>, %98, %cst_88 [1] : vector<16x32xf32> to vector<16xf32>
    %100 = vector.shape_cast %99 : vector<16xf32> to vector<16x1xf32>
    %cst_89 = arith.constant 3.200000e+01 : f32
    %101 = vector.broadcast %cst_89 : f32 to vector<16x1xf32>
    %102 = arith.divf %100, %101 : vector<16x1xf32>
    %103 = vector.broadcast %102 : vector<16x1xf32> to vector<16x32xf32>
    %104 = arith.subf %98, %103 : vector<16x32xf32>
    %105 = arith.mulf %104, %104 : vector<16x32xf32>
    %cst_90 = arith.constant dense<0.000000e+00> : vector<16xf32>
    %106 = vector.multi_reduction <add>, %105, %cst_90 [1] : vector<16x32xf32> to vector<16xf32>
    %107 = vector.shape_cast %106 : vector<16xf32> to vector<16x1xf32>
    %cst_91 = arith.constant 3.200000e+01 : f32
    %108 = vector.broadcast %cst_91 : f32 to vector<16x1xf32>
    %109 = arith.divf %107, %108 : vector<16x1xf32>
    %110 = vector.broadcast %102 : vector<16x1xf32> to vector<16x32xf32>
    %111 = arith.subf %98, %110 : vector<16x32xf32>
    %cst_92 = arith.constant 9.99999974E-6 : f32
    %112 = vector.broadcast %cst_92 : f32 to vector<16x1xf32>
    %113 = arith.addf %109, %112 : vector<16x1xf32>
    %114 = math.rsqrt %113 : vector<16x1xf32>
    %115 = vector.broadcast %114 : vector<16x1xf32> to vector<16x32xf32>
    %116 = arith.mulf %111, %115 : vector<16x32xf32>
    %117 = vector.broadcast %25 : vector<1x32xf32> to vector<16x32xf32>
    %118 = arith.mulf %116, %117 : vector<16x32xf32>
    %119 = vector.broadcast %27 : vector<1x32xf32> to vector<16x32xf32>
    %120 = arith.addf %118, %119 : vector<16x32xf32>
    %cst_93 = arith.constant dense<0.000000e+00> : vector<16x32xf32>
    %121 = tpu.matmul %120, %29, %cst_93 {dimension_numbers = #tpu.dot_dimension_numbers<[1], [0], [0], [1], [0, 0, 1, 1], [], []>} : vector<16x32xf32>, vector<32x32xf32>, vector<16x32xf32> -> vector<16x32xf32>
    %122 = vector.broadcast %31 : vector<1x32xf32> to vector<16x32xf32>
    %123 = arith.addf %121, %122 : vector<16x32xf32>
    %cst_94 = arith.constant dense<0.000000e+00> : vector<16x32xf32>
    %124 = tpu.matmul %120, %33, %cst_94 {dimension_numbers = #tpu.dot_dimension_numbers<[1], [0], [0], [1], [0, 0, 1, 1], [], []>} : vector<16x32xf32>, vector<32x32xf32>, vector<16x32xf32> -> vector<16x32xf32>
    %125 = vector.broadcast %35 : vector<1x32xf32> to vector<16x32xf32>
    %126 = arith.addf %124, %125 : vector<16x32xf32>
    %cst_95 = arith.constant dense<0.000000e+00> : vector<16x32xf32>
    %127 = tpu.matmul %120, %37, %cst_95 {dimension_numbers = #tpu.dot_dimension_numbers<[1], [0], [0], [1], [0, 0, 1, 1], [], []>} : vector<16x32xf32>, vector<32x32xf32>, vector<16x32xf32> -> vector<16x32xf32>
    %128 = vector.broadcast %39 : vector<1x32xf32> to vector<16x32xf32>
    %129 = arith.addf %127, %128 : vector<16x32xf32>
    %cst_96 = arith.constant dense<0.000000e+00> : vector<64x32xf32>
    %130 = tpu.matmul %1, %126, %cst_96 {dimension_numbers = #tpu.dot_dimension_numbers<[1], [0], [0], [1], [0, 0, 1, 1], [], []>} : vector<64x16xf32>, vector<16x32xf32>, vector<64x32xf32> -> vector<64x32xf32>
    %131 = arith.mulf %130, %2 : vector<64x32xf32>
    %cst_97 = arith.constant dense<0.000000e+00> : vector<64x32xf32>
    %132 = tpu.matmul %1, %129, %cst_97 {dimension_numbers = #tpu.dot_dimension_numbers<[1], [0], [0], [1], [0, 0, 1, 1], [], []>} : vector<64x16xf32>, vector<16x32xf32>, vector<64x32xf32> -> vector<64x32xf32>
    %133 = arith.mulf %132, %2 : vector<64x32xf32>
    %cst_98 = arith.constant dense<0.000000e+00> : vector<16x64xf32>
    %134 = tpu.matmul %123, %131, %cst_98 {dimension_numbers = #tpu.dot_dimension_numbers<[1], [1], [0], [0], [0, 0, 1, 0], [], []>} : vector<16x32xf32>, vector<64x32xf32>, vector<16x64xf32> -> vector<16x64xf32>
    %cst_99 = arith.constant 0.353553385 : f32
    %135 = vector.broadcast %cst_99 : f32 to vector<16x64xf32>
    %136 = arith.mulf %134, %135 : vector<16x64xf32>
    %137 = arith.addf %136, %3 : vector<16x64xf32>
    %cst_100 = arith.constant dense<0xFF800000> : vector<16xf32>
    %138 = vector.multi_reduction <maximumf>, %137, %cst_100 [1] : vector<16x64xf32> to vector<16xf32>
    %139 = vector.shape_cast %138 : vector<16xf32> to vector<16x1xf32>
    %140 = vector.broadcast %139 : vector<16x1xf32> to vector<16x64xf32>
    %141 = arith.subf %137, %140 : vector<16x64xf32>
    %142 = math.exp %141 : vector<16x64xf32>
    %cst_101 = arith.constant dense<0.000000e+00> : vector<16x32xf32>
    %143 = tpu.matmul %142, %133, %cst_101 {dimension_numbers = #tpu.dot_dimension_numbers<[1], [0], [0], [1], [0, 0, 1, 1], [], []>} : vector<16x64xf32>, vector<64x32xf32>, vector<16x32xf32> -> vector<16x32xf32>
    %cst_102 = arith.constant dense<0.000000e+00> : vector<16x32xf32>
    %144 = tpu.matmul %142, %2, %cst_102 {dimension_numbers = #tpu.dot_dimension_numbers<[1], [0], [0], [1], [0, 0, 1, 1], [], []>} : vector<16x64xf32>, vector<64x32xf32>, vector<16x32xf32> -> vector<16x32xf32>
    %145 = tpu.reciprocal %144 {approx = true} : vector<16x32xf32> -> vector<16x32xf32>
    %146 = arith.mulf %143, %145 : vector<16x32xf32>
    %cst_103 = arith.constant dense<0.000000e+00> : vector<16x32xf32>
    %147 = tpu.matmul %146, %41, %cst_103 {dimension_numbers = #tpu.dot_dimension_numbers<[1], [0], [0], [1], [0, 0, 1, 1], [], []>} : vector<16x32xf32>, vector<32x32xf32>, vector<16x32xf32> -> vector<16x32xf32>
    %148 = vector.broadcast %43 : vector<1x32xf32> to vector<16x32xf32>
    %149 = arith.addf %147, %148 : vector<16x32xf32>
    %cst_104 = arith.constant dense<0.000000e+00> : vector<16x32xf32>
    %150 = tpu.matmul %149, %45, %cst_104 {dimension_numbers = #tpu.dot_dimension_numbers<[1], [0], [0], [1], [0, 0, 1, 1], [], []>} : vector<16x32xf32>, vector<32x32xf32>, vector<16x32xf32> -> vector<16x32xf32>
    %151 = vector.broadcast %47 : vector<1x32xf32> to vector<16x32xf32>
    %152 = arith.addf %150, %151 : vector<16x32xf32>
    %cst_105 = arith.constant dense<0.000000e+00> : vector<16xf32>
    %153 = vector.multi_reduction <add>, %152, %cst_105 [1] : vector<16x32xf32> to vector<16xf32>
    %154 = vector.shape_cast %153 : vector<16xf32> to vector<16x1xf32>
    %cst_106 = arith.constant 3.200000e+01 : f32
    %155 = vector.broadcast %cst_106 : f32 to vector<16x1xf32>
    %156 = arith.divf %154, %155 : vector<16x1xf32>
    %157 = vector.broadcast %156 : vector<16x1xf32> to vector<16x32xf32>
    %158 = arith.subf %152, %157 : vector<16x32xf32>
    %159 = arith.mulf %158, %158 : vector<16x32xf32>
    %cst_107 = arith.constant dense<0.000000e+00> : vector<16xf32>
    %160 = vector.multi_reduction <add>, %159, %cst_107 [1] : vector<16x32xf32> to vector<16xf32>
    %161 = vector.shape_cast %160 : vector<16xf32> to vector<16x1xf32>
    %cst_108 = arith.constant 3.200000e+01 : f32
    %162 = vector.broadcast %cst_108 : f32 to vector<16x1xf32>
    %163 = arith.divf %161, %162 : vector<16x1xf32>
    %164 = vector.broadcast %156 : vector<16x1xf32> to vector<16x32xf32>
    %165 = arith.subf %152, %164 : vector<16x32xf32>
    %cst_109 = arith.constant 9.99999974E-6 : f32
    %166 = vector.broadcast %cst_109 : f32 to vector<16x1xf32>
    %167 = arith.addf %163, %166 : vector<16x1xf32>
    %168 = math.rsqrt %167 : vector<16x1xf32>
    %169 = vector.broadcast %168 : vector<16x1xf32> to vector<16x32xf32>
    %170 = arith.mulf %165, %169 : vector<16x32xf32>
    %171 = vector.broadcast %5 : vector<1x32xf32> to vector<16x32xf32>
    %172 = arith.mulf %170, %171 : vector<16x32xf32>
    %173 = vector.broadcast %7 : vector<1x32xf32> to vector<16x32xf32>
    %174 = arith.addf %172, %173 : vector<16x32xf32>
    %cst_110 = arith.constant dense<0.000000e+00> : vector<16x32xf32>
    %175 = tpu.matmul %174, %9, %cst_110 {dimension_numbers = #tpu.dot_dimension_numbers<[1], [0], [0], [1], [0, 0, 1, 1], [], []>} : vector<16x32xf32>, vector<32x32xf32>, vector<16x32xf32> -> vector<16x32xf32>
    %176 = vector.broadcast %11 : vector<1x32xf32> to vector<16x32xf32>
    %177 = arith.addf %175, %176 : vector<16x32xf32>
    %cst_111 = arith.constant dense<0.000000e+00> : vector<16x32xf32>
    %178 = tpu.matmul %174, %13, %cst_111 {dimension_numbers = #tpu.dot_dimension_numbers<[1], [0], [0], [1], [0, 0, 1, 1], [], []>} : vector<16x32xf32>, vector<32x32xf32>, vector<16x32xf32> -> vector<16x32xf32>
    %179 = vector.broadcast %15 : vector<1x32xf32> to vector<16x32xf32>
    %180 = arith.addf %178, %179 : vector<16x32xf32>
    %cst_112 = arith.constant dense<0.000000e+00> : vector<16x32xf32>
    %181 = tpu.matmul %174, %17, %cst_112 {dimension_numbers = #tpu.dot_dimension_numbers<[1], [0], [0], [1], [0, 0, 1, 1], [], []>} : vector<16x32xf32>, vector<32x32xf32>, vector<16x32xf32> -> vector<16x32xf32>
    %182 = vector.broadcast %19 : vector<1x32xf32> to vector<16x32xf32>
    %183 = arith.addf %181, %182 : vector<16x32xf32>
    %cst_113 = arith.constant dense<0.000000e+00> : vector<64x32xf32>
    %184 = tpu.matmul %1, %180, %cst_113 {dimension_numbers = #tpu.dot_dimension_numbers<[1], [0], [0], [1], [0, 0, 1, 1], [], []>} : vector<64x16xf32>, vector<16x32xf32>, vector<64x32xf32> -> vector<64x32xf32>
    %185 = arith.mulf %184, %2 : vector<64x32xf32>
    %cst_114 = arith.constant dense<0.000000e+00> : vector<64x32xf32>
    %186 = tpu.matmul %1, %183, %cst_114 {dimension_numbers = #tpu.dot_dimension_numbers<[1], [0], [0], [1], [0, 0, 1, 1], [], []>} : vector<64x16xf32>, vector<16x32xf32>, vector<64x32xf32> -> vector<64x32xf32>
    %187 = arith.mulf %186, %2 : vector<64x32xf32>
    %cst_115 = arith.constant dense<0.000000e+00> : vector<16x64xf32>
    %188 = tpu.matmul %177, %185, %cst_115 {dimension_numbers = #tpu.dot_dimension_numbers<[1], [1], [0], [0], [0, 0, 1, 0], [], []>} : vector<16x32xf32>, vector<64x32xf32>, vector<16x64xf32> -> vector<16x64xf32>
    %cst_116 = arith.constant 0.353553385 : f32
    %189 = vector.broadcast %cst_116 : f32 to vector<16x64xf32>
    %190 = arith.mulf %188, %189 : vector<16x64xf32>
    %191 = arith.addf %190, %3 : vector<16x64xf32>
    %cst_117 = arith.constant dense<0xFF800000> : vector<16xf32>
    %192 = vector.multi_reduction <maximumf>, %191, %cst_117 [1] : vector<16x64xf32> to vector<16xf32>
    %193 = vector.shape_cast %192 : vector<16xf32> to vector<16x1xf32>
    %194 = vector.broadcast %193 : vector<16x1xf32> to vector<16x64xf32>
    %195 = arith.subf %191, %194 : vector<16x64xf32>
    %196 = math.exp %195 : vector<16x64xf32>
    %cst_118 = arith.constant dense<0.000000e+00> : vector<16x32xf32>
    %197 = tpu.matmul %196, %187, %cst_118 {dimension_numbers = #tpu.dot_dimension_numbers<[1], [0], [0], [1], [0, 0, 1, 1], [], []>} : vector<16x64xf32>, vector<64x32xf32>, vector<16x32xf32> -> vector<16x32xf32>
    %cst_119 = arith.constant dense<0.000000e+00> : vector<16x32xf32>
    %198 = tpu.matmul %196, %2, %cst_119 {dimension_numbers = #tpu.dot_dimension_numbers<[1], [0], [0], [1], [0, 0, 1, 1], [], []>} : vector<16x64xf32>, vector<64x32xf32>, vector<16x32xf32> -> vector<16x32xf32>
    %199 = tpu.reciprocal %198 {approx = true} : vector<16x32xf32> -> vector<16x32xf32>
    %200 = arith.mulf %197, %199 : vector<16x32xf32>
    %cst_120 = arith.constant dense<0.000000e+00> : vector<16x32xf32>
    %201 = tpu.matmul %200, %21, %cst_120 {dimension_numbers = #tpu.dot_dimension_numbers<[1], [0], [0], [1], [0, 0, 1, 1], [], []>} : vector<16x32xf32>, vector<32x32xf32>, vector<16x32xf32> -> vector<16x32xf32>
    %202 = vector.broadcast %23 : vector<1x32xf32> to vector<16x32xf32>
    %203 = arith.addf %201, %202 : vector<16x32xf32>
    %cst_121 = arith.constant dense<0.000000e+00> : vector<16xf32>
    %204 = vector.multi_reduction <add>, %203, %cst_121 [1] : vector<16x32xf32> to vector<16xf32>
    %205 = vector.shape_cast %204 : vector<16xf32> to vector<16x1xf32>
    %cst_122 = arith.constant 3.200000e+01 : f32
    %206 = vector.broadcast %cst_122 : f32 to vector<16x1xf32>
    %207 = arith.divf %205, %206 : vector<16x1xf32>
    %208 = vector.broadcast %207 : vector<16x1xf32> to vector<16x32xf32>
    %209 = arith.subf %203, %208 : vector<16x32xf32>
    %210 = arith.mulf %209, %209 : vector<16x32xf32>
    %cst_123 = arith.constant dense<0.000000e+00> : vector<16xf32>
    %211 = vector.multi_reduction <add>, %210, %cst_123 [1] : vector<16x32xf32> to vector<16xf32>
    %212 = vector.shape_cast %211 : vector<16xf32> to vector<16x1xf32>
    %cst_124 = arith.constant 3.200000e+01 : f32
    %213 = vector.broadcast %cst_124 : f32 to vector<16x1xf32>
    %214 = arith.divf %212, %213 : vector<16x1xf32>
    %215 = vector.broadcast %207 : vector<16x1xf32> to vector<16x32xf32>
    %216 = arith.subf %203, %215 : vector<16x32xf32>
    %cst_125 = arith.constant 9.99999974E-6 : f32
    %217 = vector.broadcast %cst_125 : f32 to vector<16x1xf32>
    %218 = arith.addf %214, %217 : vector<16x1xf32>
    %219 = math.rsqrt %218 : vector<16x1xf32>
    %220 = vector.broadcast %219 : vector<16x1xf32> to vector<16x32xf32>
    %221 = arith.mulf %216, %220 : vector<16x32xf32>
    %222 = vector.broadcast %25 : vector<1x32xf32> to vector<16x32xf32>
    %223 = arith.mulf %221, %222 : vector<16x32xf32>
    %224 = vector.broadcast %27 : vector<1x32xf32> to vector<16x32xf32>
    %225 = arith.addf %223, %224 : vector<16x32xf32>
    %cst_126 = arith.constant dense<0.000000e+00> : vector<16x32xf32>
    %226 = tpu.matmul %225, %29, %cst_126 {dimension_numbers = #tpu.dot_dimension_numbers<[1], [0], [0], [1], [0, 0, 1, 1], [], []>} : vector<16x32xf32>, vector<32x32xf32>, vector<16x32xf32> -> vector<16x32xf32>
    %227 = vector.broadcast %31 : vector<1x32xf32> to vector<16x32xf32>
    %228 = arith.addf %226, %227 : vector<16x32xf32>
    %cst_127 = arith.constant dense<0.000000e+00> : vector<16x32xf32>
    %229 = tpu.matmul %225, %33, %cst_127 {dimension_numbers = #tpu.dot_dimension_numbers<[1], [0], [0], [1], [0, 0, 1, 1], [], []>} : vector<16x32xf32>, vector<32x32xf32>, vector<16x32xf32> -> vector<16x32xf32>
    %230 = vector.broadcast %35 : vector<1x32xf32> to vector<16x32xf32>
    %231 = arith.addf %229, %230 : vector<16x32xf32>
    %cst_128 = arith.constant dense<0.000000e+00> : vector<16x32xf32>
    %232 = tpu.matmul %225, %37, %cst_128 {dimension_numbers = #tpu.dot_dimension_numbers<[1], [0], [0], [1], [0, 0, 1, 1], [], []>} : vector<16x32xf32>, vector<32x32xf32>, vector<16x32xf32> -> vector<16x32xf32>
    %233 = vector.broadcast %39 : vector<1x32xf32> to vector<16x32xf32>
    %234 = arith.addf %232, %233 : vector<16x32xf32>
    %cst_129 = arith.constant dense<0.000000e+00> : vector<64x32xf32>
    %235 = tpu.matmul %1, %231, %cst_129 {dimension_numbers = #tpu.dot_dimension_numbers<[1], [0], [0], [1], [0, 0, 1, 1], [], []>} : vector<64x16xf32>, vector<16x32xf32>, vector<64x32xf32> -> vector<64x32xf32>
    %236 = arith.mulf %235, %2 : vector<64x32xf32>
    %cst_130 = arith.constant dense<0.000000e+00> : vector<64x32xf32>
    %237 = tpu.matmul %1, %234, %cst_130 {dimension_numbers = #tpu.dot_dimension_numbers<[1], [0], [0], [1], [0, 0, 1, 1], [], []>} : vector<64x16xf32>, vector<16x32xf32>, vector<64x32xf32> -> vector<64x32xf32>
    %238 = arith.mulf %237, %2 : vector<64x32xf32>
    %cst_131 = arith.constant dense<0.000000e+00> : vector<16x64xf32>
    %239 = tpu.matmul %228, %236, %cst_131 {dimension_numbers = #tpu.dot_dimension_numbers<[1], [1], [0], [0], [0, 0, 1, 0], [], []>} : vector<16x32xf32>, vector<64x32xf32>, vector<16x64xf32> -> vector<16x64xf32>
    %cst_132 = arith.constant 0.353553385 : f32
    %240 = vector.broadcast %cst_132 : f32 to vector<16x64xf32>
    %241 = arith.mulf %239, %240 : vector<16x64xf32>
    %242 = arith.addf %241, %3 : vector<16x64xf32>
    %cst_133 = arith.constant dense<0xFF800000> : vector<16xf32>
    %243 = vector.multi_reduction <maximumf>, %242, %cst_133 [1] : vector<16x64xf32> to vector<16xf32>
    %244 = vector.shape_cast %243 : vector<16xf32> to vector<16x1xf32>
    %245 = vector.broadcast %244 : vector<16x1xf32> to vector<16x64xf32>
    %246 = arith.subf %242, %245 : vector<16x64xf32>
    %247 = math.exp %246 : vector<16x64xf32>
    %cst_134 = arith.constant dense<0.000000e+00> : vector<16x32xf32>
    %248 = tpu.matmul %247, %238, %cst_134 {dimension_numbers = #tpu.dot_dimension_numbers<[1], [0], [0], [1], [0, 0, 1, 1], [], []>} : vector<16x64xf32>, vector<64x32xf32>, vector<16x32xf32> -> vector<16x32xf32>
    %cst_135 = arith.constant dense<0.000000e+00> : vector<16x32xf32>
    %249 = tpu.matmul %247, %2, %cst_135 {dimension_numbers = #tpu.dot_dimension_numbers<[1], [0], [0], [1], [0, 0, 1, 1], [], []>} : vector<16x64xf32>, vector<64x32xf32>, vector<16x32xf32> -> vector<16x32xf32>
    %250 = tpu.reciprocal %249 {approx = true} : vector<16x32xf32> -> vector<16x32xf32>
    %251 = arith.mulf %248, %250 : vector<16x32xf32>
    %cst_136 = arith.constant dense<0.000000e+00> : vector<16x32xf32>
    %252 = tpu.matmul %251, %41, %cst_136 {dimension_numbers = #tpu.dot_dimension_numbers<[1], [0], [0], [1], [0, 0, 1, 1], [], []>} : vector<16x32xf32>, vector<32x32xf32>, vector<16x32xf32> -> vector<16x32xf32>
    %253 = vector.broadcast %43 : vector<1x32xf32> to vector<16x32xf32>
    %254 = arith.addf %252, %253 : vector<16x32xf32>
    %cst_137 = arith.constant dense<0.000000e+00> : vector<16x32xf32>
    %255 = tpu.matmul %254, %45, %cst_137 {dimension_numbers = #tpu.dot_dimension_numbers<[1], [0], [0], [1], [0, 0, 1, 1], [], []>} : vector<16x32xf32>, vector<32x32xf32>, vector<16x32xf32> -> vector<16x32xf32>
    %256 = vector.broadcast %47 : vector<1x32xf32> to vector<16x32xf32>
    %257 = arith.addf %255, %256 : vector<16x32xf32>
    %c1 = arith.constant 1 : index
    %c0_138 = arith.constant 0 : index
    %c0_139 = arith.constant 0 : index
    %258 = vector.load %arg5[%c1, %c0_138, %c0_139] : memref<2x1x32xf32, #tpu.memory_space<vmem>>, vector<1x1x32xf32>
    %259 = vector.shape_cast %258 : vector<1x1x32xf32> to vector<1x32xf32>
    %c1_140 = arith.constant 1 : index
    %c0_141 = arith.constant 0 : index
    %c0_142 = arith.constant 0 : index
    %260 = vector.load %arg6[%c1_140, %c0_141, %c0_142] : memref<2x1x32xf32, #tpu.memory_space<vmem>>, vector<1x1x32xf32>
    %261 = vector.shape_cast %260 : vector<1x1x32xf32> to vector<1x32xf32>
    %c1_143 = arith.constant 1 : index
    %c0_144 = arith.constant 0 : index
    %c0_145 = arith.constant 0 : index
    %262 = vector.load %arg7[%c1_143, %c0_144, %c0_145] : memref<2x32x32xf32, #tpu.memory_space<vmem>>, vector<1x32x32xf32>
    %263 = vector.shape_cast %262 : vector<1x32x32xf32> to vector<32x32xf32>
    %c1_146 = arith.constant 1 : index
    %c0_147 = arith.constant 0 : index
    %c0_148 = arith.constant 0 : index
    %264 = vector.load %arg8[%c1_146, %c0_147, %c0_148] : memref<2x1x32xf32, #tpu.memory_space<vmem>>, vector<1x1x32xf32>
    %265 = vector.shape_cast %264 : vector<1x1x32xf32> to vector<1x32xf32>
    %c1_149 = arith.constant 1 : index
    %c0_150 = arith.constant 0 : index
    %c0_151 = arith.constant 0 : index
    %266 = vector.load %arg9[%c1_149, %c0_150, %c0_151] : memref<2x32x32xf32, #tpu.memory_space<vmem>>, vector<1x32x32xf32>
    %267 = vector.shape_cast %266 : vector<1x32x32xf32> to vector<32x32xf32>
    %c1_152 = arith.constant 1 : index
    %c0_153 = arith.constant 0 : index
    %c0_154 = arith.constant 0 : index
    %268 = vector.load %arg10[%c1_152, %c0_153, %c0_154] : memref<2x1x32xf32, #tpu.memory_space<vmem>>, vector<1x1x32xf32>
    %269 = vector.shape_cast %268 : vector<1x1x32xf32> to vector<1x32xf32>
    %c1_155 = arith.constant 1 : index
    %c0_156 = arith.constant 0 : index
    %c0_157 = arith.constant 0 : index
    %270 = vector.load %arg11[%c1_155, %c0_156, %c0_157] : memref<2x32x32xf32, #tpu.memory_space<vmem>>, vector<1x32x32xf32>
    %271 = vector.shape_cast %270 : vector<1x32x32xf32> to vector<32x32xf32>
    %c1_158 = arith.constant 1 : index
    %c0_159 = arith.constant 0 : index
    %c0_160 = arith.constant 0 : index
    %272 = vector.load %arg12[%c1_158, %c0_159, %c0_160] : memref<2x1x32xf32, #tpu.memory_space<vmem>>, vector<1x1x32xf32>
    %273 = vector.shape_cast %272 : vector<1x1x32xf32> to vector<1x32xf32>
    %c1_161 = arith.constant 1 : index
    %c0_162 = arith.constant 0 : index
    %c0_163 = arith.constant 0 : index
    %274 = vector.load %arg13[%c1_161, %c0_162, %c0_163] : memref<2x32x32xf32, #tpu.memory_space<vmem>>, vector<1x32x32xf32>
    %275 = vector.shape_cast %274 : vector<1x32x32xf32> to vector<32x32xf32>
    %c1_164 = arith.constant 1 : index
    %c0_165 = arith.constant 0 : index
    %c0_166 = arith.constant 0 : index
    %276 = vector.load %arg14[%c1_164, %c0_165, %c0_166] : memref<2x1x32xf32, #tpu.memory_space<vmem>>, vector<1x1x32xf32>
    %277 = vector.shape_cast %276 : vector<1x1x32xf32> to vector<1x32xf32>
    %c1_167 = arith.constant 1 : index
    %c0_168 = arith.constant 0 : index
    %c0_169 = arith.constant 0 : index
    %278 = vector.load %arg15[%c1_167, %c0_168, %c0_169] : memref<2x1x32xf32, #tpu.memory_space<vmem>>, vector<1x1x32xf32>
    %279 = vector.shape_cast %278 : vector<1x1x32xf32> to vector<1x32xf32>
    %c1_170 = arith.constant 1 : index
    %c0_171 = arith.constant 0 : index
    %c0_172 = arith.constant 0 : index
    %280 = vector.load %arg16[%c1_170, %c0_171, %c0_172] : memref<2x1x32xf32, #tpu.memory_space<vmem>>, vector<1x1x32xf32>
    %281 = vector.shape_cast %280 : vector<1x1x32xf32> to vector<1x32xf32>
    %c1_173 = arith.constant 1 : index
    %c0_174 = arith.constant 0 : index
    %c0_175 = arith.constant 0 : index
    %282 = vector.load %arg17[%c1_173, %c0_174, %c0_175] : memref<2x32x32xf32, #tpu.memory_space<vmem>>, vector<1x32x32xf32>
    %283 = vector.shape_cast %282 : vector<1x32x32xf32> to vector<32x32xf32>
    %c1_176 = arith.constant 1 : index
    %c0_177 = arith.constant 0 : index
    %c0_178 = arith.constant 0 : index
    %284 = vector.load %arg18[%c1_176, %c0_177, %c0_178] : memref<2x1x32xf32, #tpu.memory_space<vmem>>, vector<1x1x32xf32>
    %285 = vector.shape_cast %284 : vector<1x1x32xf32> to vector<1x32xf32>
    %c1_179 = arith.constant 1 : index
    %c0_180 = arith.constant 0 : index
    %c0_181 = arith.constant 0 : index
    %286 = vector.load %arg19[%c1_179, %c0_180, %c0_181] : memref<2x32x32xf32, #tpu.memory_space<vmem>>, vector<1x32x32xf32>
    %287 = vector.shape_cast %286 : vector<1x32x32xf32> to vector<32x32xf32>
    %c1_182 = arith.constant 1 : index
    %c0_183 = arith.constant 0 : index
    %c0_184 = arith.constant 0 : index
    %288 = vector.load %arg20[%c1_182, %c0_183, %c0_184] : memref<2x1x32xf32, #tpu.memory_space<vmem>>, vector<1x1x32xf32>
    %289 = vector.shape_cast %288 : vector<1x1x32xf32> to vector<1x32xf32>
    %c1_185 = arith.constant 1 : index
    %c0_186 = arith.constant 0 : index
    %c0_187 = arith.constant 0 : index
    %290 = vector.load %arg21[%c1_185, %c0_186, %c0_187] : memref<2x32x32xf32, #tpu.memory_space<vmem>>, vector<1x32x32xf32>
    %291 = vector.shape_cast %290 : vector<1x32x32xf32> to vector<32x32xf32>
    %c1_188 = arith.constant 1 : index
    %c0_189 = arith.constant 0 : index
    %c0_190 = arith.constant 0 : index
    %292 = vector.load %arg22[%c1_188, %c0_189, %c0_190] : memref<2x1x32xf32, #tpu.memory_space<vmem>>, vector<1x1x32xf32>
    %293 = vector.shape_cast %292 : vector<1x1x32xf32> to vector<1x32xf32>
    %c1_191 = arith.constant 1 : index
    %c0_192 = arith.constant 0 : index
    %c0_193 = arith.constant 0 : index
    %294 = vector.load %arg23[%c1_191, %c0_192, %c0_193] : memref<2x32x32xf32, #tpu.memory_space<vmem>>, vector<1x32x32xf32>
    %295 = vector.shape_cast %294 : vector<1x32x32xf32> to vector<32x32xf32>
    %c1_194 = arith.constant 1 : index
    %c0_195 = arith.constant 0 : index
    %c0_196 = arith.constant 0 : index
    %296 = vector.load %arg24[%c1_194, %c0_195, %c0_196] : memref<2x1x32xf32, #tpu.memory_space<vmem>>, vector<1x1x32xf32>
    %297 = vector.shape_cast %296 : vector<1x1x32xf32> to vector<1x32xf32>
    %c1_197 = arith.constant 1 : index
    %c0_198 = arith.constant 0 : index
    %c0_199 = arith.constant 0 : index
    %298 = vector.load %arg25[%c1_197, %c0_198, %c0_199] : memref<2x32x32xf32, #tpu.memory_space<vmem>>, vector<1x32x32xf32>
    %299 = vector.shape_cast %298 : vector<1x32x32xf32> to vector<32x32xf32>
    %c1_200 = arith.constant 1 : index
    %c0_201 = arith.constant 0 : index
    %c0_202 = arith.constant 0 : index
    %300 = vector.load %arg26[%c1_200, %c0_201, %c0_202] : memref<2x1x32xf32, #tpu.memory_space<vmem>>, vector<1x1x32xf32>
    %301 = vector.shape_cast %300 : vector<1x1x32xf32> to vector<1x32xf32>
    %cst_203 = arith.constant dense<0.000000e+00> : vector<16xf32>
    %302 = vector.multi_reduction <add>, %257, %cst_203 [1] : vector<16x32xf32> to vector<16xf32>
    %303 = vector.shape_cast %302 : vector<16xf32> to vector<16x1xf32>
    %cst_204 = arith.constant 3.200000e+01 : f32
    %304 = vector.broadcast %cst_204 : f32 to vector<16x1xf32>
    %305 = arith.divf %303, %304 : vector<16x1xf32>
    %306 = vector.broadcast %305 : vector<16x1xf32> to vector<16x32xf32>
    %307 = arith.subf %257, %306 : vector<16x32xf32>
    %308 = arith.mulf %307, %307 : vector<16x32xf32>
    %cst_205 = arith.constant dense<0.000000e+00> : vector<16xf32>
    %309 = vector.multi_reduction <add>, %308, %cst_205 [1] : vector<16x32xf32> to vector<16xf32>
    %310 = vector.shape_cast %309 : vector<16xf32> to vector<16x1xf32>
    %cst_206 = arith.constant 3.200000e+01 : f32
    %311 = vector.broadcast %cst_206 : f32 to vector<16x1xf32>
    %312 = arith.divf %310, %311 : vector<16x1xf32>
    %313 = vector.broadcast %305 : vector<16x1xf32> to vector<16x32xf32>
    %314 = arith.subf %257, %313 : vector<16x32xf32>
    %cst_207 = arith.constant 9.99999974E-6 : f32
    %315 = vector.broadcast %cst_207 : f32 to vector<16x1xf32>
    %316 = arith.addf %312, %315 : vector<16x1xf32>
    %317 = math.rsqrt %316 : vector<16x1xf32>
    %318 = vector.broadcast %317 : vector<16x1xf32> to vector<16x32xf32>
    %319 = arith.mulf %314, %318 : vector<16x32xf32>
    %320 = vector.broadcast %259 : vector<1x32xf32> to vector<16x32xf32>
    %321 = arith.mulf %319, %320 : vector<16x32xf32>
    %322 = vector.broadcast %261 : vector<1x32xf32> to vector<16x32xf32>
    %323 = arith.addf %321, %322 : vector<16x32xf32>
    %cst_208 = arith.constant dense<0.000000e+00> : vector<16x32xf32>
    %324 = tpu.matmul %323, %263, %cst_208 {dimension_numbers = #tpu.dot_dimension_numbers<[1], [0], [0], [1], [0, 0, 1, 1], [], []>} : vector<16x32xf32>, vector<32x32xf32>, vector<16x32xf32> -> vector<16x32xf32>
    %325 = vector.broadcast %265 : vector<1x32xf32> to vector<16x32xf32>
    %326 = arith.addf %324, %325 : vector<16x32xf32>
    %cst_209 = arith.constant dense<0.000000e+00> : vector<16x32xf32>
    %327 = tpu.matmul %323, %267, %cst_209 {dimension_numbers = #tpu.dot_dimension_numbers<[1], [0], [0], [1], [0, 0, 1, 1], [], []>} : vector<16x32xf32>, vector<32x32xf32>, vector<16x32xf32> -> vector<16x32xf32>
    %328 = vector.broadcast %269 : vector<1x32xf32> to vector<16x32xf32>
    %329 = arith.addf %327, %328 : vector<16x32xf32>
    %cst_210 = arith.constant dense<0.000000e+00> : vector<16x32xf32>
    %330 = tpu.matmul %323, %271, %cst_210 {dimension_numbers = #tpu.dot_dimension_numbers<[1], [0], [0], [1], [0, 0, 1, 1], [], []>} : vector<16x32xf32>, vector<32x32xf32>, vector<16x32xf32> -> vector<16x32xf32>
    %331 = vector.broadcast %273 : vector<1x32xf32> to vector<16x32xf32>
    %332 = arith.addf %330, %331 : vector<16x32xf32>
    %cst_211 = arith.constant dense<0.000000e+00> : vector<64x32xf32>
    %333 = tpu.matmul %1, %329, %cst_211 {dimension_numbers = #tpu.dot_dimension_numbers<[1], [0], [0], [1], [0, 0, 1, 1], [], []>} : vector<64x16xf32>, vector<16x32xf32>, vector<64x32xf32> -> vector<64x32xf32>
    %334 = arith.mulf %333, %2 : vector<64x32xf32>
    %cst_212 = arith.constant dense<0.000000e+00> : vector<64x32xf32>
    %335 = tpu.matmul %1, %332, %cst_212 {dimension_numbers = #tpu.dot_dimension_numbers<[1], [0], [0], [1], [0, 0, 1, 1], [], []>} : vector<64x16xf32>, vector<16x32xf32>, vector<64x32xf32> -> vector<64x32xf32>
    %336 = arith.mulf %335, %2 : vector<64x32xf32>
    %cst_213 = arith.constant dense<0.000000e+00> : vector<16x64xf32>
    %337 = tpu.matmul %326, %334, %cst_213 {dimension_numbers = #tpu.dot_dimension_numbers<[1], [1], [0], [0], [0, 0, 1, 0], [], []>} : vector<16x32xf32>, vector<64x32xf32>, vector<16x64xf32> -> vector<16x64xf32>
    %cst_214 = arith.constant 0.353553385 : f32
    %338 = vector.broadcast %cst_214 : f32 to vector<16x64xf32>
    %339 = arith.mulf %337, %338 : vector<16x64xf32>
    %340 = arith.addf %339, %3 : vector<16x64xf32>
    %cst_215 = arith.constant dense<0xFF800000> : vector<16xf32>
    %341 = vector.multi_reduction <maximumf>, %340, %cst_215 [1] : vector<16x64xf32> to vector<16xf32>
    %342 = vector.shape_cast %341 : vector<16xf32> to vector<16x1xf32>
    %343 = vector.broadcast %342 : vector<16x1xf32> to vector<16x64xf32>
    %344 = arith.subf %340, %343 : vector<16x64xf32>
    %345 = math.exp %344 : vector<16x64xf32>
    %cst_216 = arith.constant dense<0.000000e+00> : vector<16x32xf32>
    %346 = tpu.matmul %345, %336, %cst_216 {dimension_numbers = #tpu.dot_dimension_numbers<[1], [0], [0], [1], [0, 0, 1, 1], [], []>} : vector<16x64xf32>, vector<64x32xf32>, vector<16x32xf32> -> vector<16x32xf32>
    %cst_217 = arith.constant dense<0.000000e+00> : vector<16x32xf32>
    %347 = tpu.matmul %345, %2, %cst_217 {dimension_numbers = #tpu.dot_dimension_numbers<[1], [0], [0], [1], [0, 0, 1, 1], [], []>} : vector<16x64xf32>, vector<64x32xf32>, vector<16x32xf32> -> vector<16x32xf32>
    %348 = tpu.reciprocal %347 {approx = true} : vector<16x32xf32> -> vector<16x32xf32>
    %349 = arith.mulf %346, %348 : vector<16x32xf32>
    %cst_218 = arith.constant dense<0.000000e+00> : vector<16x32xf32>
    %350 = tpu.matmul %349, %275, %cst_218 {dimension_numbers = #tpu.dot_dimension_numbers<[1], [0], [0], [1], [0, 0, 1, 1], [], []>} : vector<16x32xf32>, vector<32x32xf32>, vector<16x32xf32> -> vector<16x32xf32>
    %351 = vector.broadcast %277 : vector<1x32xf32> to vector<16x32xf32>
    %352 = arith.addf %350, %351 : vector<16x32xf32>
    %cst_219 = arith.constant dense<0.000000e+00> : vector<16xf32>
    %353 = vector.multi_reduction <add>, %352, %cst_219 [1] : vector<16x32xf32> to vector<16xf32>
    %354 = vector.shape_cast %353 : vector<16xf32> to vector<16x1xf32>
    %cst_220 = arith.constant 3.200000e+01 : f32
    %355 = vector.broadcast %cst_220 : f32 to vector<16x1xf32>
    %356 = arith.divf %354, %355 : vector<16x1xf32>
    %357 = vector.broadcast %356 : vector<16x1xf32> to vector<16x32xf32>
    %358 = arith.subf %352, %357 : vector<16x32xf32>
    %359 = arith.mulf %358, %358 : vector<16x32xf32>
    %cst_221 = arith.constant dense<0.000000e+00> : vector<16xf32>
    %360 = vector.multi_reduction <add>, %359, %cst_221 [1] : vector<16x32xf32> to vector<16xf32>
    %361 = vector.shape_cast %360 : vector<16xf32> to vector<16x1xf32>
    %cst_222 = arith.constant 3.200000e+01 : f32
    %362 = vector.broadcast %cst_222 : f32 to vector<16x1xf32>
    %363 = arith.divf %361, %362 : vector<16x1xf32>
    %364 = vector.broadcast %356 : vector<16x1xf32> to vector<16x32xf32>
    %365 = arith.subf %352, %364 : vector<16x32xf32>
    %cst_223 = arith.constant 9.99999974E-6 : f32
    %366 = vector.broadcast %cst_223 : f32 to vector<16x1xf32>
    %367 = arith.addf %363, %366 : vector<16x1xf32>
    %368 = math.rsqrt %367 : vector<16x1xf32>
    %369 = vector.broadcast %368 : vector<16x1xf32> to vector<16x32xf32>
    %370 = arith.mulf %365, %369 : vector<16x32xf32>
    %371 = vector.broadcast %279 : vector<1x32xf32> to vector<16x32xf32>
    %372 = arith.mulf %370, %371 : vector<16x32xf32>
    %373 = vector.broadcast %281 : vector<1x32xf32> to vector<16x32xf32>
    %374 = arith.addf %372, %373 : vector<16x32xf32>
    %cst_224 = arith.constant dense<0.000000e+00> : vector<16x32xf32>
    %375 = tpu.matmul %374, %283, %cst_224 {dimension_numbers = #tpu.dot_dimension_numbers<[1], [0], [0], [1], [0, 0, 1, 1], [], []>} : vector<16x32xf32>, vector<32x32xf32>, vector<16x32xf32> -> vector<16x32xf32>
    %376 = vector.broadcast %285 : vector<1x32xf32> to vector<16x32xf32>
    %377 = arith.addf %375, %376 : vector<16x32xf32>
    %cst_225 = arith.constant dense<0.000000e+00> : vector<16x32xf32>
    %378 = tpu.matmul %374, %287, %cst_225 {dimension_numbers = #tpu.dot_dimension_numbers<[1], [0], [0], [1], [0, 0, 1, 1], [], []>} : vector<16x32xf32>, vector<32x32xf32>, vector<16x32xf32> -> vector<16x32xf32>
    %379 = vector.broadcast %289 : vector<1x32xf32> to vector<16x32xf32>
    %380 = arith.addf %378, %379 : vector<16x32xf32>
    %cst_226 = arith.constant dense<0.000000e+00> : vector<16x32xf32>
    %381 = tpu.matmul %374, %291, %cst_226 {dimension_numbers = #tpu.dot_dimension_numbers<[1], [0], [0], [1], [0, 0, 1, 1], [], []>} : vector<16x32xf32>, vector<32x32xf32>, vector<16x32xf32> -> vector<16x32xf32>
    %382 = vector.broadcast %293 : vector<1x32xf32> to vector<16x32xf32>
    %383 = arith.addf %381, %382 : vector<16x32xf32>
    %cst_227 = arith.constant dense<0.000000e+00> : vector<64x32xf32>
    %384 = tpu.matmul %1, %380, %cst_227 {dimension_numbers = #tpu.dot_dimension_numbers<[1], [0], [0], [1], [0, 0, 1, 1], [], []>} : vector<64x16xf32>, vector<16x32xf32>, vector<64x32xf32> -> vector<64x32xf32>
    %385 = arith.mulf %384, %2 : vector<64x32xf32>
    %cst_228 = arith.constant dense<0.000000e+00> : vector<64x32xf32>
    %386 = tpu.matmul %1, %383, %cst_228 {dimension_numbers = #tpu.dot_dimension_numbers<[1], [0], [0], [1], [0, 0, 1, 1], [], []>} : vector<64x16xf32>, vector<16x32xf32>, vector<64x32xf32> -> vector<64x32xf32>
    %387 = arith.mulf %386, %2 : vector<64x32xf32>
    %cst_229 = arith.constant dense<0.000000e+00> : vector<16x64xf32>
    %388 = tpu.matmul %377, %385, %cst_229 {dimension_numbers = #tpu.dot_dimension_numbers<[1], [1], [0], [0], [0, 0, 1, 0], [], []>} : vector<16x32xf32>, vector<64x32xf32>, vector<16x64xf32> -> vector<16x64xf32>
    %cst_230 = arith.constant 0.353553385 : f32
    %389 = vector.broadcast %cst_230 : f32 to vector<16x64xf32>
    %390 = arith.mulf %388, %389 : vector<16x64xf32>
    %391 = arith.addf %390, %3 : vector<16x64xf32>
    %cst_231 = arith.constant dense<0xFF800000> : vector<16xf32>
    %392 = vector.multi_reduction <maximumf>, %391, %cst_231 [1] : vector<16x64xf32> to vector<16xf32>
    %393 = vector.shape_cast %392 : vector<16xf32> to vector<16x1xf32>
    %394 = vector.broadcast %393 : vector<16x1xf32> to vector<16x64xf32>
    %395 = arith.subf %391, %394 : vector<16x64xf32>
    %396 = math.exp %395 : vector<16x64xf32>
    %cst_232 = arith.constant dense<0.000000e+00> : vector<16x32xf32>
    %397 = tpu.matmul %396, %387, %cst_232 {dimension_numbers = #tpu.dot_dimension_numbers<[1], [0], [0], [1], [0, 0, 1, 1], [], []>} : vector<16x64xf32>, vector<64x32xf32>, vector<16x32xf32> -> vector<16x32xf32>
    %cst_233 = arith.constant dense<0.000000e+00> : vector<16x32xf32>
    %398 = tpu.matmul %396, %2, %cst_233 {dimension_numbers = #tpu.dot_dimension_numbers<[1], [0], [0], [1], [0, 0, 1, 1], [], []>} : vector<16x64xf32>, vector<64x32xf32>, vector<16x32xf32> -> vector<16x32xf32>
    %399 = tpu.reciprocal %398 {approx = true} : vector<16x32xf32> -> vector<16x32xf32>
    %400 = arith.mulf %397, %399 : vector<16x32xf32>
    %cst_234 = arith.constant dense<0.000000e+00> : vector<16x32xf32>
    %401 = tpu.matmul %400, %295, %cst_234 {dimension_numbers = #tpu.dot_dimension_numbers<[1], [0], [0], [1], [0, 0, 1, 1], [], []>} : vector<16x32xf32>, vector<32x32xf32>, vector<16x32xf32> -> vector<16x32xf32>
    %402 = vector.broadcast %297 : vector<1x32xf32> to vector<16x32xf32>
    %403 = arith.addf %401, %402 : vector<16x32xf32>
    %cst_235 = arith.constant dense<0.000000e+00> : vector<16x32xf32>
    %404 = tpu.matmul %403, %299, %cst_235 {dimension_numbers = #tpu.dot_dimension_numbers<[1], [0], [0], [1], [0, 0, 1, 1], [], []>} : vector<16x32xf32>, vector<32x32xf32>, vector<16x32xf32> -> vector<16x32xf32>
    %405 = vector.broadcast %301 : vector<1x32xf32> to vector<16x32xf32>
    %406 = arith.addf %404, %405 : vector<16x32xf32>
    %cst_236 = arith.constant dense<0.000000e+00> : vector<16xf32>
    %407 = vector.multi_reduction <add>, %406, %cst_236 [1] : vector<16x32xf32> to vector<16xf32>
    %408 = vector.shape_cast %407 : vector<16xf32> to vector<16x1xf32>
    %cst_237 = arith.constant 3.200000e+01 : f32
    %409 = vector.broadcast %cst_237 : f32 to vector<16x1xf32>
    %410 = arith.divf %408, %409 : vector<16x1xf32>
    %411 = vector.broadcast %410 : vector<16x1xf32> to vector<16x32xf32>
    %412 = arith.subf %406, %411 : vector<16x32xf32>
    %413 = arith.mulf %412, %412 : vector<16x32xf32>
    %cst_238 = arith.constant dense<0.000000e+00> : vector<16xf32>
    %414 = vector.multi_reduction <add>, %413, %cst_238 [1] : vector<16x32xf32> to vector<16xf32>
    %415 = vector.shape_cast %414 : vector<16xf32> to vector<16x1xf32>
    %cst_239 = arith.constant 3.200000e+01 : f32
    %416 = vector.broadcast %cst_239 : f32 to vector<16x1xf32>
    %417 = arith.divf %415, %416 : vector<16x1xf32>
    %418 = vector.broadcast %410 : vector<16x1xf32> to vector<16x32xf32>
    %419 = arith.subf %406, %418 : vector<16x32xf32>
    %cst_240 = arith.constant 9.99999974E-6 : f32
    %420 = vector.broadcast %cst_240 : f32 to vector<16x1xf32>
    %421 = arith.addf %417, %420 : vector<16x1xf32>
    %422 = math.rsqrt %421 : vector<16x1xf32>
    %423 = vector.broadcast %422 : vector<16x1xf32> to vector<16x32xf32>
    %424 = arith.mulf %419, %423 : vector<16x32xf32>
    %425 = vector.broadcast %259 : vector<1x32xf32> to vector<16x32xf32>
    %426 = arith.mulf %424, %425 : vector<16x32xf32>
    %427 = vector.broadcast %261 : vector<1x32xf32> to vector<16x32xf32>
    %428 = arith.addf %426, %427 : vector<16x32xf32>
    %cst_241 = arith.constant dense<0.000000e+00> : vector<16x32xf32>
    %429 = tpu.matmul %428, %263, %cst_241 {dimension_numbers = #tpu.dot_dimension_numbers<[1], [0], [0], [1], [0, 0, 1, 1], [], []>} : vector<16x32xf32>, vector<32x32xf32>, vector<16x32xf32> -> vector<16x32xf32>
    %430 = vector.broadcast %265 : vector<1x32xf32> to vector<16x32xf32>
    %431 = arith.addf %429, %430 : vector<16x32xf32>
    %cst_242 = arith.constant dense<0.000000e+00> : vector<16x32xf32>
    %432 = tpu.matmul %428, %267, %cst_242 {dimension_numbers = #tpu.dot_dimension_numbers<[1], [0], [0], [1], [0, 0, 1, 1], [], []>} : vector<16x32xf32>, vector<32x32xf32>, vector<16x32xf32> -> vector<16x32xf32>
    %433 = vector.broadcast %269 : vector<1x32xf32> to vector<16x32xf32>
    %434 = arith.addf %432, %433 : vector<16x32xf32>
    %cst_243 = arith.constant dense<0.000000e+00> : vector<16x32xf32>
    %435 = tpu.matmul %428, %271, %cst_243 {dimension_numbers = #tpu.dot_dimension_numbers<[1], [0], [0], [1], [0, 0, 1, 1], [], []>} : vector<16x32xf32>, vector<32x32xf32>, vector<16x32xf32> -> vector<16x32xf32>
    %436 = vector.broadcast %273 : vector<1x32xf32> to vector<16x32xf32>
    %437 = arith.addf %435, %436 : vector<16x32xf32>
    %cst_244 = arith.constant dense<0.000000e+00> : vector<64x32xf32>
    %438 = tpu.matmul %1, %434, %cst_244 {dimension_numbers = #tpu.dot_dimension_numbers<[1], [0], [0], [1], [0, 0, 1, 1], [], []>} : vector<64x16xf32>, vector<16x32xf32>, vector<64x32xf32> -> vector<64x32xf32>
    %439 = arith.mulf %438, %2 : vector<64x32xf32>
    %cst_245 = arith.constant dense<0.000000e+00> : vector<64x32xf32>
    %440 = tpu.matmul %1, %437, %cst_245 {dimension_numbers = #tpu.dot_dimension_numbers<[1], [0], [0], [1], [0, 0, 1, 1], [], []>} : vector<64x16xf32>, vector<16x32xf32>, vector<64x32xf32> -> vector<64x32xf32>
    %441 = arith.mulf %440, %2 : vector<64x32xf32>
    %cst_246 = arith.constant dense<0.000000e+00> : vector<16x64xf32>
    %442 = tpu.matmul %431, %439, %cst_246 {dimension_numbers = #tpu.dot_dimension_numbers<[1], [1], [0], [0], [0, 0, 1, 0], [], []>} : vector<16x32xf32>, vector<64x32xf32>, vector<16x64xf32> -> vector<16x64xf32>
    %cst_247 = arith.constant 0.353553385 : f32
    %443 = vector.broadcast %cst_247 : f32 to vector<16x64xf32>
    %444 = arith.mulf %442, %443 : vector<16x64xf32>
    %445 = arith.addf %444, %3 : vector<16x64xf32>
    %cst_248 = arith.constant dense<0xFF800000> : vector<16xf32>
    %446 = vector.multi_reduction <maximumf>, %445, %cst_248 [1] : vector<16x64xf32> to vector<16xf32>
    %447 = vector.shape_cast %446 : vector<16xf32> to vector<16x1xf32>
    %448 = vector.broadcast %447 : vector<16x1xf32> to vector<16x64xf32>
    %449 = arith.subf %445, %448 : vector<16x64xf32>
    %450 = math.exp %449 : vector<16x64xf32>
    %cst_249 = arith.constant dense<0.000000e+00> : vector<16x32xf32>
    %451 = tpu.matmul %450, %441, %cst_249 {dimension_numbers = #tpu.dot_dimension_numbers<[1], [0], [0], [1], [0, 0, 1, 1], [], []>} : vector<16x64xf32>, vector<64x32xf32>, vector<16x32xf32> -> vector<16x32xf32>
    %cst_250 = arith.constant dense<0.000000e+00> : vector<16x32xf32>
    %452 = tpu.matmul %450, %2, %cst_250 {dimension_numbers = #tpu.dot_dimension_numbers<[1], [0], [0], [1], [0, 0, 1, 1], [], []>} : vector<16x64xf32>, vector<64x32xf32>, vector<16x32xf32> -> vector<16x32xf32>
    %453 = tpu.reciprocal %452 {approx = true} : vector<16x32xf32> -> vector<16x32xf32>
    %454 = arith.mulf %451, %453 : vector<16x32xf32>
    %cst_251 = arith.constant dense<0.000000e+00> : vector<16x32xf32>
    %455 = tpu.matmul %454, %275, %cst_251 {dimension_numbers = #tpu.dot_dimension_numbers<[1], [0], [0], [1], [0, 0, 1, 1], [], []>} : vector<16x32xf32>, vector<32x32xf32>, vector<16x32xf32> -> vector<16x32xf32>
    %456 = vector.broadcast %277 : vector<1x32xf32> to vector<16x32xf32>
    %457 = arith.addf %455, %456 : vector<16x32xf32>
    %cst_252 = arith.constant dense<0.000000e+00> : vector<16xf32>
    %458 = vector.multi_reduction <add>, %457, %cst_252 [1] : vector<16x32xf32> to vector<16xf32>
    %459 = vector.shape_cast %458 : vector<16xf32> to vector<16x1xf32>
    %cst_253 = arith.constant 3.200000e+01 : f32
    %460 = vector.broadcast %cst_253 : f32 to vector<16x1xf32>
    %461 = arith.divf %459, %460 : vector<16x1xf32>
    %462 = vector.broadcast %461 : vector<16x1xf32> to vector<16x32xf32>
    %463 = arith.subf %457, %462 : vector<16x32xf32>
    %464 = arith.mulf %463, %463 : vector<16x32xf32>
    %cst_254 = arith.constant dense<0.000000e+00> : vector<16xf32>
    %465 = vector.multi_reduction <add>, %464, %cst_254 [1] : vector<16x32xf32> to vector<16xf32>
    %466 = vector.shape_cast %465 : vector<16xf32> to vector<16x1xf32>
    %cst_255 = arith.constant 3.200000e+01 : f32
    %467 = vector.broadcast %cst_255 : f32 to vector<16x1xf32>
    %468 = arith.divf %466, %467 : vector<16x1xf32>
    %469 = vector.broadcast %461 : vector<16x1xf32> to vector<16x32xf32>
    %470 = arith.subf %457, %469 : vector<16x32xf32>
    %cst_256 = arith.constant 9.99999974E-6 : f32
    %471 = vector.broadcast %cst_256 : f32 to vector<16x1xf32>
    %472 = arith.addf %468, %471 : vector<16x1xf32>
    %473 = math.rsqrt %472 : vector<16x1xf32>
    %474 = vector.broadcast %473 : vector<16x1xf32> to vector<16x32xf32>
    %475 = arith.mulf %470, %474 : vector<16x32xf32>
    %476 = vector.broadcast %279 : vector<1x32xf32> to vector<16x32xf32>
    %477 = arith.mulf %475, %476 : vector<16x32xf32>
    %478 = vector.broadcast %281 : vector<1x32xf32> to vector<16x32xf32>
    %479 = arith.addf %477, %478 : vector<16x32xf32>
    %cst_257 = arith.constant dense<0.000000e+00> : vector<16x32xf32>
    %480 = tpu.matmul %479, %283, %cst_257 {dimension_numbers = #tpu.dot_dimension_numbers<[1], [0], [0], [1], [0, 0, 1, 1], [], []>} : vector<16x32xf32>, vector<32x32xf32>, vector<16x32xf32> -> vector<16x32xf32>
    %481 = vector.broadcast %285 : vector<1x32xf32> to vector<16x32xf32>
    %482 = arith.addf %480, %481 : vector<16x32xf32>
    %cst_258 = arith.constant dense<0.000000e+00> : vector<16x32xf32>
    %483 = tpu.matmul %479, %287, %cst_258 {dimension_numbers = #tpu.dot_dimension_numbers<[1], [0], [0], [1], [0, 0, 1, 1], [], []>} : vector<16x32xf32>, vector<32x32xf32>, vector<16x32xf32> -> vector<16x32xf32>
    %484 = vector.broadcast %289 : vector<1x32xf32> to vector<16x32xf32>
    %485 = arith.addf %483, %484 : vector<16x32xf32>
    %cst_259 = arith.constant dense<0.000000e+00> : vector<16x32xf32>
    %486 = tpu.matmul %479, %291, %cst_259 {dimension_numbers = #tpu.dot_dimension_numbers<[1], [0], [0], [1], [0, 0, 1, 1], [], []>} : vector<16x32xf32>, vector<32x32xf32>, vector<16x32xf32> -> vector<16x32xf32>
    %487 = vector.broadcast %293 : vector<1x32xf32> to vector<16x32xf32>
    %488 = arith.addf %486, %487 : vector<16x32xf32>
    %cst_260 = arith.constant dense<0.000000e+00> : vector<64x32xf32>
    %489 = tpu.matmul %1, %485, %cst_260 {dimension_numbers = #tpu.dot_dimension_numbers<[1], [0], [0], [1], [0, 0, 1, 1], [], []>} : vector<64x16xf32>, vector<16x32xf32>, vector<64x32xf32> -> vector<64x32xf32>
    %490 = arith.mulf %489, %2 : vector<64x32xf32>
    %cst_261 = arith.constant dense<0.000000e+00> : vector<64x32xf32>
    %491 = tpu.matmul %1, %488, %cst_261 {dimension_numbers = #tpu.dot_dimension_numbers<[1], [0], [0], [1], [0, 0, 1, 1], [], []>} : vector<64x16xf32>, vector<16x32xf32>, vector<64x32xf32> -> vector<64x32xf32>
    %492 = arith.mulf %491, %2 : vector<64x32xf32>
    %cst_262 = arith.constant dense<0.000000e+00> : vector<16x64xf32>
    %493 = tpu.matmul %482, %490, %cst_262 {dimension_numbers = #tpu.dot_dimension_numbers<[1], [1], [0], [0], [0, 0, 1, 0], [], []>} : vector<16x32xf32>, vector<64x32xf32>, vector<16x64xf32> -> vector<16x64xf32>
    %cst_263 = arith.constant 0.353553385 : f32
    %494 = vector.broadcast %cst_263 : f32 to vector<16x64xf32>
    %495 = arith.mulf %493, %494 : vector<16x64xf32>
    %496 = arith.addf %495, %3 : vector<16x64xf32>
    %cst_264 = arith.constant dense<0xFF800000> : vector<16xf32>
    %497 = vector.multi_reduction <maximumf>, %496, %cst_264 [1] : vector<16x64xf32> to vector<16xf32>
    %498 = vector.shape_cast %497 : vector<16xf32> to vector<16x1xf32>
    %499 = vector.broadcast %498 : vector<16x1xf32> to vector<16x64xf32>
    %500 = arith.subf %496, %499 : vector<16x64xf32>
    %501 = math.exp %500 : vector<16x64xf32>
    %cst_265 = arith.constant dense<0.000000e+00> : vector<16x32xf32>
    %502 = tpu.matmul %501, %492, %cst_265 {dimension_numbers = #tpu.dot_dimension_numbers<[1], [0], [0], [1], [0, 0, 1, 1], [], []>} : vector<16x64xf32>, vector<64x32xf32>, vector<16x32xf32> -> vector<16x32xf32>
    %cst_266 = arith.constant dense<0.000000e+00> : vector<16x32xf32>
    %503 = tpu.matmul %501, %2, %cst_266 {dimension_numbers = #tpu.dot_dimension_numbers<[1], [0], [0], [1], [0, 0, 1, 1], [], []>} : vector<16x64xf32>, vector<64x32xf32>, vector<16x32xf32> -> vector<16x32xf32>
    %504 = tpu.reciprocal %503 {approx = true} : vector<16x32xf32> -> vector<16x32xf32>
    %505 = arith.mulf %502, %504 : vector<16x32xf32>
    %cst_267 = arith.constant dense<0.000000e+00> : vector<16x32xf32>
    %506 = tpu.matmul %505, %295, %cst_267 {dimension_numbers = #tpu.dot_dimension_numbers<[1], [0], [0], [1], [0, 0, 1, 1], [], []>} : vector<16x32xf32>, vector<32x32xf32>, vector<16x32xf32> -> vector<16x32xf32>
    %507 = vector.broadcast %297 : vector<1x32xf32> to vector<16x32xf32>
    %508 = arith.addf %506, %507 : vector<16x32xf32>
    %cst_268 = arith.constant dense<0.000000e+00> : vector<16x32xf32>
    %509 = tpu.matmul %508, %299, %cst_268 {dimension_numbers = #tpu.dot_dimension_numbers<[1], [0], [0], [1], [0, 0, 1, 1], [], []>} : vector<16x32xf32>, vector<32x32xf32>, vector<16x32xf32> -> vector<16x32xf32>
    %510 = vector.broadcast %301 : vector<1x32xf32> to vector<16x32xf32>
    %511 = arith.addf %509, %510 : vector<16x32xf32>
    %c0_269 = arith.constant 0 : index
    %c0_270 = arith.constant 0 : index
    %512 = vector.load %arg4[%c0_269, %c0_270] : memref<2x16xf32, #tpu.memory_space<vmem>>, vector<2x16xf32>
    %cst_271 = arith.constant dense<0.000000e+00> : vector<2x32xf32>
    %513 = tpu.matmul %512, %511, %cst_271 {dimension_numbers = #tpu.dot_dimension_numbers<[1], [0], [0], [1], [0, 0, 1, 1], [], []>} : vector<2x16xf32>, vector<16x32xf32>, vector<2x32xf32> -> vector<2x32xf32>
    %c0_272 = arith.constant 0 : index
    %c0_273 = arith.constant 0 : index
    %514 = vector.load %arg27[%c0_272, %c0_273] : memref<1x32xf32, #tpu.memory_space<vmem>>, vector<1x32xf32>
    %c0_274 = arith.constant 0 : index
    %c0_275 = arith.constant 0 : index
    %515 = vector.load %arg28[%c0_274, %c0_275] : memref<1x32xf32, #tpu.memory_space<vmem>>, vector<1x32xf32>
    %cst_276 = arith.constant dense<0.000000e+00> : vector<2xf32>
    %516 = vector.multi_reduction <add>, %513, %cst_276 [1] : vector<2x32xf32> to vector<2xf32>
    %517 = vector.shape_cast %516 : vector<2xf32> to vector<2x1xf32>
    %cst_277 = arith.constant 3.200000e+01 : f32
    %518 = vector.broadcast %cst_277 : f32 to vector<2x1xf32>
    %519 = arith.divf %517, %518 : vector<2x1xf32>
    %520 = vector.broadcast %519 : vector<2x1xf32> to vector<2x32xf32>
    %521 = arith.subf %513, %520 : vector<2x32xf32>
    %522 = arith.mulf %521, %521 : vector<2x32xf32>
    %cst_278 = arith.constant dense<0.000000e+00> : vector<2xf32>
    %523 = vector.multi_reduction <add>, %522, %cst_278 [1] : vector<2x32xf32> to vector<2xf32>
    %524 = vector.shape_cast %523 : vector<2xf32> to vector<2x1xf32>
    %cst_279 = arith.constant 3.200000e+01 : f32
    %525 = vector.broadcast %cst_279 : f32 to vector<2x1xf32>
    %526 = arith.divf %524, %525 : vector<2x1xf32>
    %527 = vector.broadcast %519 : vector<2x1xf32> to vector<2x32xf32>
    %528 = arith.subf %513, %527 : vector<2x32xf32>
    %cst_280 = arith.constant 9.99999974E-6 : f32
    %529 = vector.broadcast %cst_280 : f32 to vector<2x1xf32>
    %530 = arith.addf %526, %529 : vector<2x1xf32>
    %531 = math.rsqrt %530 : vector<2x1xf32>
    %532 = vector.broadcast %531 : vector<2x1xf32> to vector<2x32xf32>
    %533 = arith.mulf %528, %532 : vector<2x32xf32>
    %534 = vector.broadcast %514 : vector<1x32xf32> to vector<2x32xf32>
    %535 = arith.mulf %533, %534 : vector<2x32xf32>
    %536 = vector.broadcast %515 : vector<1x32xf32> to vector<2x32xf32>
    %537 = arith.addf %535, %536 : vector<2x32xf32>
    %c0_281 = arith.constant 0 : index
    %c0_282 = arith.constant 0 : index
    %538 = vector.load %arg29[%c0_281, %c0_282] : memref<32x10xf32, #tpu.memory_space<vmem>>, vector<32x10xf32>
    %cst_283 = arith.constant dense<0.000000e+00> : vector<2x10xf32>
    %539 = tpu.matmul %537, %538, %cst_283 {dimension_numbers = #tpu.dot_dimension_numbers<[1], [0], [0], [1], [0, 0, 1, 1], [], []>} : vector<2x32xf32>, vector<32x10xf32>, vector<2x10xf32> -> vector<2x10xf32>
    %c0_284 = arith.constant 0 : index
    %c0_285 = arith.constant 0 : index
    %540 = vector.load %arg30[%c0_284, %c0_285] : memref<1x10xf32, #tpu.memory_space<vmem>>, vector<1x10xf32>
    %541 = vector.broadcast %540 : vector<1x10xf32> to vector<2x10xf32>
    %542 = arith.addf %539, %541 : vector<2x10xf32>
    %c0_286 = arith.constant 0 : index
    %c0_287 = arith.constant 0 : index
    %543 = vector.load %arg31[%c0_286, %c0_287] : memref<2x10xf32, #tpu.memory_space<vmem>>, vector<2x10xf32>
    tpu.vector_store %arg31[%c0_286, %c0_287], %542 {strides = array<i32>} : memref<2x10xf32, #tpu.memory_space<vmem>>, vector<2x10xf32>,
    return
  }
}

</mosaic_0001>

<llo_original>
// kernel: tpu_custom_call.1
$region0: #{tpu_custom_call.1}
  #allocation0 [shape = 'u32[]', space=smem, size = 0x4, offset = 0x4, fixed_abs, tag = 'smem constant byte address 0x4 - core index']
  #allocation1 [shape = 'u32[72,128]{1,0:T(1,128)}', space=vmem, size = 0x9000, scoped, tag = 'internal scratch']
  %s0 = inlined_call_operand.smem [shape: u32[32], index: -1, kind: input, shape index: {}]
  %s1 = sld [smem:[%s0]]
  %s2 = scalar_lea.smem %s0, 1
  %s3 = sld [smem:[%s2]]
  %s4 = scalar_lea.smem %s0, 2
  %s5 = sld [smem:[%s4]]
  %s6 = scalar_lea.smem %s0, 3
  %s7 = sld [smem:[%s6]]
  %s8 = scalar_lea.smem %s0, 4
  %s9 = sld [smem:[%s8]]
  %s10 = scalar_lea.smem %s0, 5
  %s11 = sld [smem:[%s10]]
  %s12 = scalar_lea.smem %s0, 6
  %s13 = sld [smem:[%s12]]
  %s14 = scalar_lea.smem %s0, 7
  %s15 = sld [smem:[%s14]]
  %s16 = scalar_lea.smem %s0, 8
  %s17 = sld [smem:[%s16]]
  %s18 = scalar_lea.smem %s0, 9
  %s19 = sld [smem:[%s18]]
  %s20 = scalar_lea.smem %s0, 10
  %s21 = sld [smem:[%s20]]
  %s22 = scalar_lea.smem %s0, 11
  %s23 = sld [smem:[%s22]]
  %s24 = scalar_lea.smem %s0, 12
  %s25 = sld [smem:[%s24]]
  %s26 = scalar_lea.smem %s0, 13
  %s27 = sld [smem:[%s26]]
  %s28 = scalar_lea.smem %s0, 14
  %s29 = sld [smem:[%s28]]
  %s30 = scalar_lea.smem %s0, 15
  %s31 = sld [smem:[%s30]]
  %s32 = scalar_lea.smem %s0, 16
  %s33 = sld [smem:[%s32]]
  %s34 = scalar_lea.smem %s0, 17
  %s35 = sld [smem:[%s34]]
  %s36 = scalar_lea.smem %s0, 18
  %s37 = sld [smem:[%s36]]
  %s38 = scalar_lea.smem %s0, 19
  %s39 = sld [smem:[%s38]]
  %s40 = scalar_lea.smem %s0, 20
  %s41 = sld [smem:[%s40]]
  %s42 = scalar_lea.smem %s0, 21
  %s43 = sld [smem:[%s42]]
  %s44 = scalar_lea.smem %s0, 22
  %s45 = sld [smem:[%s44]]
  %s46 = scalar_lea.smem %s0, 23
  %s47 = sld [smem:[%s46]]
  %s48 = scalar_lea.smem %s0, 24
  %s49 = sld [smem:[%s48]]
  %s50 = scalar_lea.smem %s0, 25
  %s51 = sld [smem:[%s50]]
  %s52 = scalar_lea.smem %s0, 26
  %s53 = sld [smem:[%s52]]
  %s54 = scalar_lea.smem %s0, 27
  %s55 = sld [smem:[%s54]]
  %s56 = scalar_lea.smem %s0, 28
  %s57 = sld [smem:[%s56]]
  %s58 = scalar_lea.smem %s0, 29
  %s59 = sld [smem:[%s58]]
  %s60 = scalar_lea.smem %s0, 30
  %s61 = sld [smem:[%s60]]
  %s62 = scalar_lea.smem %s0, 31
  %s63 = sld [smem:[%s62]]
  %s64 = sld [smem:[#allocation0]]
  $region170: #{tpu_custom_call.1} parent=0
    _
  %s66 = ssub.s32 1, %s64
  %s67 = scalar_select 0, %s66, %s64
  $region1: #{tpu_custom_call.1} parent=0
    #allocation2 [shape = 'u8[32768]{0}', space=vmem, size = 0x8000, scoped, tag = 'input window, operand 11, single buffered']
    #allocation3 [shape = 's32[1]{0}', space=sflag, size = 0x4, scoped, tag = 'scoped memory for tpu_custom_call.1']
    #allocation4 [shape = 's32[1]{0}', space=sflag, size = 0x4, scoped, tag = 'scoped memory for tpu_custom_call.1']
    #allocation5 [shape = 'u8[32768]{0}', space=vmem, size = 0x8000, scoped, tag = 'input window, operand 13, single buffered']
    #allocation6 [shape = 's32[1]{0}', space=sflag, size = 0x4, scoped, tag = 'scoped memory for tpu_custom_call.1']
    #allocation7 [shape = 'u8[32768]{0}', space=vmem, size = 0x8000, scoped, tag = 'input window, operand 17, single buffered']
    #allocation8 [shape = 'u8[32768]{0}', space=vmem, size = 0x8000, scoped, tag = 'input window, operand 19, single buffered']
    #allocation9 [shape = 's32[1]{0}', space=sflag, size = 0x4, scoped, tag = 'scoped memory for tpu_custom_call.1']
    #allocation10 [shape = 'u8[32768]{0}', space=vmem, size = 0x8000, scoped, tag = 'input window, operand 21, single buffered']
    #allocation11 [shape = 'u8[32768]{0}', space=vmem, size = 0x8000, scoped, tag = 'input window, operand 23, single buffered']
    #allocation12 [shape = 's32[1]{0}', space=sflag, size = 0x4, scoped, tag = 'scoped memory for tpu_custom_call.1']
    #allocation13 [shape = 'u8[32768]{0}', space=vmem, size = 0x8000, scoped, tag = 'input window, operand 25, single buffered']
    #allocation14 [shape = 'u8[1024]{0}', space=vmem, size = 0x400, scoped, tag = 'input window, operand 26, single buffered']
    #allocation15 [shape = 's32[1]{0}', space=sflag, size = 0x4, scoped, tag = 'scoped memory for tpu_custom_call.1']
    #allocation16 [shape = 'u8[512]{0}', space=vmem, size = 0x400, scoped, tag = 'input window, operand 28, single buffered']
    #allocation17 [shape = 'u8[1024]{0}', space=vmem, size = 0x400, scoped, tag = 'output window, operand 0, single buffered']
    %68 = vsyncpa [#allocation3], 0
    %69 = vsyncpa [#allocation6], 0
    %70 = vsyncpa [#allocation9], 0
    %71 = vsyncpa [#allocation12], 0
    %72 = vsyncpa [#allocation15], 0
    %73 = vsyncpa [#allocation4], 0
    // Predicated region
    $region2: #{tpu_custom_call.1} parent=1 // pred_check
      _
    $region3: #{tpu_custom_call.1} parent=1 // pred_check_branch
      %75 = sbr.rel (0) target = $region5
    $region4: #{tpu_custom_call.1} parent=1 // pred_region
      _
    $region5: #{tpu_custom_call.1} parent=1 // pred_fallthru
      _
    // Predicated region
    $region6: #{tpu_custom_call.1} parent=1 // pred_check
      _
    $region7: #{tpu_custom_call.1} parent=1 // pred_check_branch
      %77 = sbr.rel (0) target = $region9
    $region8: #{tpu_custom_call.1} parent=1 // pred_region
      _
    $region9: #{tpu_custom_call.1} parent=1 // pred_fallthru
      _
    // Predicated region
    $region10: #{tpu_custom_call.1} parent=1 // pred_check
      _
    $region11: #{tpu_custom_call.1} parent=1 // pred_check_branch
      %79 = sbr.rel (0) target = $region13
    $region12: #{tpu_custom_call.1} parent=1 // pred_region
      _
    $region13: #{tpu_custom_call.1} parent=1 // pred_fallthru
      _
    // Predicated region
    $region14: #{tpu_custom_call.1} parent=1 // pred_check
      _
    $region15: #{tpu_custom_call.1} parent=1 // pred_check_branch
      %81 = sbr.rel (0) target = $region17
    $region16: #{tpu_custom_call.1} parent=1 // pred_region
      _
    $region17: #{tpu_custom_call.1} parent=1 // pred_fallthru
      _
    // Predicated region
    $region18: #{tpu_custom_call.1} parent=1 // pred_check
      _
    $region19: #{tpu_custom_call.1} parent=1 // pred_check_branch
      %83 = sbr.rel (0) target = $region21
    $region20: #{tpu_custom_call.1} parent=1 // pred_region
      _
    $region21: #{tpu_custom_call.1} parent=1 // pred_fallthru
      _
    // Predicated region
    $region22: #{tpu_custom_call.1} parent=1 // pred_check
      _
    $region23: #{tpu_custom_call.1} parent=1 // pred_check_branch
      %85 = sbr.rel (0) target = $region25
    $region24: #{tpu_custom_call.1} parent=1 // pred_region
      _
    $region25: #{tpu_custom_call.1} parent=1 // pred_fallthru
      _
    // Predicated region
    $region26: #{tpu_custom_call.1} parent=1 // pred_check
      _
    $region27: #{tpu_custom_call.1} parent=1 // pred_check_branch
      %87 = sbr.rel (0) target = $region29
    $region28: #{tpu_custom_call.1} parent=1 // pred_region
      _
    $region29: #{tpu_custom_call.1} parent=1 // pred_fallthru
      _
    // Predicated region
    $region30: #{tpu_custom_call.1} parent=1 // pred_check
      _
    $region31: #{tpu_custom_call.1} parent=1 // pred_check_branch
      %89 = sbr.rel (0) target = $region33
    $region32: #{tpu_custom_call.1} parent=1 // pred_region
      _
    $region33: #{tpu_custom_call.1} parent=1 // pred_fallthru
      _
    // Predicated region
    $region34: #{tpu_custom_call.1} parent=1 // pred_check
      _
    $region35: #{tpu_custom_call.1} parent=1 // pred_check_branch
      %91 = sbr.rel (0) target = $region37
    $region36: #{tpu_custom_call.1} parent=1 // pred_region
      _
    $region37: #{tpu_custom_call.1} parent=1 // pred_fallthru
      _
    // Predicated region
    $region38: #{tpu_custom_call.1} parent=1 // pred_check
      _
    $region39: #{tpu_custom_call.1} parent=1 // pred_check_branch
      %93 = sbr.rel (0) target = $region41
    $region40: #{tpu_custom_call.1} parent=1 // pred_region
      _
    $region41: #{tpu_custom_call.1} parent=1 // pred_fallthru
      _
    // Predicated region
    $region42: #{tpu_custom_call.1} parent=1 // pred_check
      _
    $region43: #{tpu_custom_call.1} parent=1 // pred_check_branch
      %95 = sbr.rel (0) target = $region45
    $region44: #{tpu_custom_call.1} parent=1 // pred_region
      _
    $region45: #{tpu_custom_call.1} parent=1 // pred_fallthru
      _
    // Predicated region
    $region46: #{tpu_custom_call.1} parent=1 // pred_check
      _
    $region47: #{tpu_custom_call.1} parent=1 // pred_check_branch
      %97 = sbr.rel (0) target = $region49
    $region48: #{tpu_custom_call.1} parent=1 // pred_region
      %99 = vsyncadd [#allocation3], 0
      %s100 = sshll.u32 %s23, 4
      %s101 = int_to_ptr.hbm [resolvable:$true] %s100
      %s102 = sshll.u32 [#allocation2], 4
      %s103 = int_to_ptr.vmem [resolvable:$true] %s102
      %108 = dma.hbm_to_vmem [thread:$0]  %s101, 1024, %s103, [#allocation3], 128, 128, 8
    $region49: #{tpu_custom_call.1} parent=1 // pred_fallthru
      _
    // Predicated region
    $region50: #{tpu_custom_call.1} parent=1 // pred_check
      _
    $region51: #{tpu_custom_call.1} parent=1 // pred_check_branch
      %110 = sbr.rel (0) target = $region53
    $region52: #{tpu_custom_call.1} parent=1 // pred_region
      _
    $region53: #{tpu_custom_call.1} parent=1 // pred_fallthru
      _
    // Predicated region
    $region54: #{tpu_custom_call.1} parent=1 // pred_check
      _
    $region55: #{tpu_custom_call.1} parent=1 // pred_check_branch
      %112 = sbr.rel (0) target = $region57
    $region56: #{tpu_custom_call.1} parent=1 // pred_region
      %114 = vsyncadd [#allocation6], 0
      %s115 = sshll.u32 %s27, 4
      %s116 = int_to_ptr.hbm [resolvable:$true] %s115
      %s117 = sshll.u32 [#allocation5], 4
      %s118 = int_to_ptr.vmem [resolvable:$true] %s117
      %123 = dma.hbm_to_vmem [thread:$0]  %s116, 1024, %s118, [#allocation6], 128, 128, 8
    $region57: #{tpu_custom_call.1} parent=1 // pred_fallthru
      _
    // Predicated region
    $region58: #{tpu_custom_call.1} parent=1 // pred_check
      _
    $region59: #{tpu_custom_call.1} parent=1 // pred_check_branch
      %125 = sbr.rel (0) target = $region61
    $region60: #{tpu_custom_call.1} parent=1 // pred_region
      _
    $region61: #{tpu_custom_call.1} parent=1 // pred_fallthru
      _
    // Predicated region
    $region62: #{tpu_custom_call.1} parent=1 // pred_check
      _
    $region63: #{tpu_custom_call.1} parent=1 // pred_check_branch
      %127 = sbr.rel (0) target = $region65
    $region64: #{tpu_custom_call.1} parent=1 // pred_region
      _
    $region65: #{tpu_custom_call.1} parent=1 // pred_fallthru
      _
    // Predicated region
    $region66: #{tpu_custom_call.1} parent=1 // pred_check
      _
    $region67: #{tpu_custom_call.1} parent=1 // pred_check_branch
      %129 = sbr.rel (0) target = $region69
    $region68: #{tpu_custom_call.1} parent=1 // pred_region
      _
    $region69: #{tpu_custom_call.1} parent=1 // pred_fallthru
      _
    // Predicated region
    $region70: #{tpu_custom_call.1} parent=1 // pred_check
      _
    $region71: #{tpu_custom_call.1} parent=1 // pred_check_branch
      %131 = sbr.rel (0) target = $region73
    $region72: #{tpu_custom_call.1} parent=1 // pred_region
      %133 = vsyncadd [#allocation6], 0
      %s134 = sshll.u32 %s35, 4
      %s135 = int_to_ptr.hbm [resolvable:$true] %s134
      %s136 = sshll.u32 [#allocation7], 4
      %s137 = int_to_ptr.vmem [resolvable:$true] %s136
      %142 = dma.hbm_to_vmem [thread:$0]  %s135, 1024, %s137, [#allocation6], 128, 128, 8
    $region73: #{tpu_custom_call.1} parent=1 // pred_fallthru
      _
    // Predicated region
    $region74: #{tpu_custom_call.1} parent=1 // pred_check
      _
    $region75: #{tpu_custom_call.1} parent=1 // pred_check_branch
      %144 = sbr.rel (0) target = $region77
    $region76: #{tpu_custom_call.1} parent=1 // pred_region
      _
    $region77: #{tpu_custom_call.1} parent=1 // pred_fallthru
      _
    // Predicated region
    $region78: #{tpu_custom_call.1} parent=1 // pred_check
      _
    $region79: #{tpu_custom_call.1} parent=1 // pred_check_branch
      %146 = sbr.rel (0) target = $region81
    $region80: #{tpu_custom_call.1} parent=1 // pred_region
      %148 = vsyncadd [#allocation9], 0
      %s149 = sshll.u32 %s39, 4
      %s150 = int_to_ptr.hbm [resolvable:$true] %s149
      %s151 = sshll.u32 [#allocation8], 4
      %s152 = int_to_ptr.vmem [resolvable:$true] %s151
      %157 = dma.hbm_to_vmem [thread:$0]  %s150, 1024, %s152, [#allocation9], 128, 128, 8
    $region81: #{tpu_custom_call.1} parent=1 // pred_fallthru
      _
    // Predicated region
    $region82: #{tpu_custom_call.1} parent=1 // pred_check
      _
    $region83: #{tpu_custom_call.1} parent=1 // pred_check_branch
      %159 = sbr.rel (0) target = $region85
    $region84: #{tpu_custom_call.1} parent=1 // pred_region
      _
    $region85: #{tpu_custom_call.1} parent=1 // pred_fallthru
      _
    // Predicated region
    $region86: #{tpu_custom_call.1} parent=1 // pred_check
      _
    $region87: #{tpu_custom_call.1} parent=1 // pred_check_branch
      %161 = sbr.rel (0) target = $region89
    $region88: #{tpu_custom_call.1} parent=1 // pred_region
      %163 = vsyncadd [#allocation9], 0
      %s164 = sshll.u32 %s43, 4
      %s165 = int_to_ptr.hbm [resolvable:$true] %s164
      %s166 = sshll.u32 [#allocation10], 4
      %s167 = int_to_ptr.vmem [resolvable:$true] %s166
      %172 = dma.hbm_to_vmem [thread:$0]  %s165, 1024, %s167, [#allocation9], 128, 128, 8
    $region89: #{tpu_custom_call.1} parent=1 // pred_fallthru
      _
    // Predicated region
    $region90: #{tpu_custom_call.1} parent=1 // pred_check
      _
    $region91: #{tpu_custom_call.1} parent=1 // pred_check_branch
      %174 = sbr.rel (0) target = $region93
    $region92: #{tpu_custom_call.1} parent=1 // pred_region
      _
    $region93: #{tpu_custom_call.1} parent=1 // pred_fallthru
      _
    // Predicated region
    $region94: #{tpu_custom_call.1} parent=1 // pred_check
      _
    $region95: #{tpu_custom_call.1} parent=1 // pred_check_branch
      %176 = sbr.rel (0) target = $region97
    $region96: #{tpu_custom_call.1} parent=1 // pred_region
      %178 = vsyncadd [#allocation12], 0
      %s179 = sshll.u32 %s47, 4
      %s180 = int_to_ptr.hbm [resolvable:$true] %s179
      %s181 = sshll.u32 [#allocation11], 4
      %s182 = int_to_ptr.vmem [resolvable:$true] %s181
      %187 = dma.hbm_to_vmem [thread:$0]  %s180, 1024, %s182, [#allocation12], 128, 128, 8
    $region97: #{tpu_custom_call.1} parent=1 // pred_fallthru
      _
    // Predicated region
    $region98: #{tpu_custom_call.1} parent=1 // pred_check
      _
    $region99: #{tpu_custom_call.1} parent=1 // pred_check_branch
      %189 = sbr.rel (0) target = $region101
    $region100: #{tpu_custom_call.1} parent=1 // pred_region
      _
    $region101: #{tpu_custom_call.1} parent=1 // pred_fallthru
      _
    // Predicated region
    $region102: #{tpu_custom_call.1} parent=1 // pred_check
      _
    $region103: #{tpu_custom_call.1} parent=1 // pred_check_branch
      %191 = sbr.rel (0) target = $region105
    $region104: #{tpu_custom_call.1} parent=1 // pred_region
      %193 = vsyncadd [#allocation12], 0
      %s194 = sshll.u32 %s51, 4
      %s195 = int_to_ptr.hbm [resolvable:$true] %s194
      %s196 = sshll.u32 [#allocation13], 4
      %s197 = int_to_ptr.vmem [resolvable:$true] %s196
      %202 = dma.hbm_to_vmem [thread:$0]  %s195, 1024, %s197, [#allocation12], 128, 128, 8
    $region105: #{tpu_custom_call.1} parent=1 // pred_fallthru
      _
    // Predicated region
    $region106: #{tpu_custom_call.1} parent=1 // pred_check
      _
    $region107: #{tpu_custom_call.1} parent=1 // pred_check_branch
      %204 = sbr.rel (0) target = $region109
    $region108: #{tpu_custom_call.1} parent=1 // pred_region
      %206 = vsyncadd [#allocation15], 0
      %s207 = sshll.u32 %s53, 4
      %s208 = int_to_ptr.hbm [resolvable:$true] %s207
      %s209 = sshll.u32 [#allocation14], 4
      %s210 = int_to_ptr.vmem [resolvable:$true] %s209
      %215 = dma.hbm_to_vmem [thread:$0]  %s208, 32, %s210, [#allocation15], 16, 16, 1
    $region109: #{tpu_custom_call.1} parent=1 // pred_fallthru
      _
    // Predicated region
    $region110: #{tpu_custom_call.1} parent=1 // pred_check
      _
    $region111: #{tpu_custom_call.1} parent=1 // pred_check_branch
      %217 = sbr.rel (0) target = $region113
    $region112: #{tpu_custom_call.1} parent=1 // pred_region
      _
    $region113: #{tpu_custom_call.1} parent=1 // pred_fallthru
      _
    // Predicated region
    $region114: #{tpu_custom_call.1} parent=1 // pred_check
      _
    $region115: #{tpu_custom_call.1} parent=1 // pred_check_branch
      %219 = sbr.rel (0) target = $region117
    $region116: #{tpu_custom_call.1} parent=1 // pred_region
      %221 = vsyncadd [#allocation15], 0
      %s223 = sshll.u32 %s57, 4
      %s224 = int_to_ptr.hbm [resolvable:$true] %s223
      %s225 = sshll.u32 [#allocation16], 4
      %s226 = int_to_ptr.vmem [resolvable:$true] %s225
      %228 = dma.hbm_to_vmem [thread:$0]  %s224, 16, %s226, [#allocation15]
    $region117: #{tpu_custom_call.1} parent=1 // pred_fallthru
      _
    // Predicated region
    $region118: #{tpu_custom_call.1} parent=1 // pred_check
      _
    $region119: #{tpu_custom_call.1} parent=1 // pred_check_branch
      %230 = sbr.rel (0) target = $region121
    $region120: #{tpu_custom_call.1} parent=1 // pred_region
      _
    $region121: #{tpu_custom_call.1} parent=1 // pred_fallthru
      _
    // Predicated region
    $region122: #{tpu_custom_call.1} parent=1 // pred_check
      _
    $region123: #{tpu_custom_call.1} parent=1 // pred_check_branch
      %232 = sbr.rel (0) target = $region125
    $region124: #{tpu_custom_call.1} parent=1 // pred_region
      _
    $region125: #{tpu_custom_call.1} parent=1 // pred_fallthru
      _
    // Predicated region
    $region126: #{tpu_custom_call.1} parent=1 // pred_check
      _
    $region127: #{tpu_custom_call.1} parent=1 // pred_check_branch
      %234 = sbr.rel (0) target = $region129
    $region128: #{tpu_custom_call.1} parent=1 // pred_region
      %236 = dma.done [#allocation3], 1024
    $region129: #{tpu_custom_call.1} parent=1 // pred_fallthru
      _
    // Predicated region
    $region130: #{tpu_custom_call.1} parent=1 // pred_check
      _
    $region131: #{tpu_custom_call.1} parent=1 // pred_check_branch
      %238 = sbr.rel (0) target = $region133
    $region132: #{tpu_custom_call.1} parent=1 // pred_region
      %240 = dma.done [#allocation6], 1024
    $region133: #{tpu_custom_call.1} parent=1 // pred_fallthru
      _
    // Predicated region
    $region134: #{tpu_custom_call.1} parent=1 // pred_check
      _
    $region135: #{tpu_custom_call.1} parent=1 // pred_check_branch
      %242 = sbr.rel (0) target = $region137
    $region136: #{tpu_custom_call.1} parent=1 // pred_region
      %244 = dma.done [#allocation6], 1024
    $region137: #{tpu_custom_call.1} parent=1 // pred_fallthru
      _
    // Predicated region
    $region138: #{tpu_custom_call.1} parent=1 // pred_check
      _
    $region139: #{tpu_custom_call.1} parent=1 // pred_check_branch
      %246 = sbr.rel (0) target = $region141
    $region140: #{tpu_custom_call.1} parent=1 // pred_region
      %248 = dma.done [#allocation9], 1024
    $region141: #{tpu_custom_call.1} parent=1 // pred_fallthru
      _
    // Predicated region
    $region142: #{tpu_custom_call.1} parent=1 // pred_check
      _
    $region143: #{tpu_custom_call.1} parent=1 // pred_check_branch
      %250 = sbr.rel (0) target = $region145
    $region144: #{tpu_custom_call.1} parent=1 // pred_region
      %252 = dma.done [#allocation9], 1024
    $region145: #{tpu_custom_call.1} parent=1 // pred_fallthru
      _
    // Predicated region
    $region146: #{tpu_custom_call.1} parent=1 // pred_check
      _
    $region147: #{tpu_custom_call.1} parent=1 // pred_check_branch
      %254 = sbr.rel (0) target = $region149
    $region148: #{tpu_custom_call.1} parent=1 // pred_region
      %256 = dma.done [#allocation12], 1024
    $region149: #{tpu_custom_call.1} parent=1 // pred_fallthru
      _
    // Predicated region
    $region150: #{tpu_custom_call.1} parent=1 // pred_check
      _
    $region151: #{tpu_custom_call.1} parent=1 // pred_check_branch
      %258 = sbr.rel (0) target = $region153
    $region152: #{tpu_custom_call.1} parent=1 // pred_region
      %260 = dma.done [#allocation12], 1024
    $region153: #{tpu_custom_call.1} parent=1 // pred_fallthru
      _
    // Predicated region
    $region154: #{tpu_custom_call.1} parent=1 // pred_check
      _
    $region155: #{tpu_custom_call.1} parent=1 // pred_check_branch
      %262 = sbr.rel (0) target = $region157
    $region156: #{tpu_custom_call.1} parent=1 // pred_region
      %264 = dma.done [#allocation15], 32
    $region157: #{tpu_custom_call.1} parent=1 // pred_fallthru
      _
    // Predicated region
    $region158: #{tpu_custom_call.1} parent=1 // pred_check
      _
    $region159: #{tpu_custom_call.1} parent=1 // pred_check_branch
      %266 = sbr.rel (0) target = $region161
    $region160: #{tpu_custom_call.1} parent=1 // pred_region
      %268 = dma.done [#allocation15], 16
    $region161: #{tpu_custom_call.1} parent=1 // pred_fallthru
      _
    %v269 = vld [vmem:[%s1] sm:$0xff]
    %v270 = vld [vmem:[%s1 + $0x8] sm:$0xff]
    %v271 = vld [vmem:[%s3] sm:$0xff]
    %v272 = vld [vmem:[%s3 + $0x8] sm:$0xff]
    %v273 = vld [vmem:[%s3 + $0x10] sm:$0xff]
    %v274 = vld [vmem:[%s3 + $0x18] sm:$0xff]
    %v275 = vld [vmem:[%s3 + $0x20] sm:$0xff]
    %v276 = vld [vmem:[%s3 + $0x28] sm:$0xff]
    %v277 = vld [vmem:[%s3 + $0x30] sm:$0xff]
    %v278 = vld [vmem:[%s3 + $0x38] sm:$0xff]
    %v279 = vld [vmem:[%s5] sm:$0xff]
    %v280 = vld [vmem:[%s5 + $0x8] sm:$0xff]
    %v281 = vld [vmem:[%s5 + $0x10] sm:$0xff]
    %v282 = vld [vmem:[%s5 + $0x18] sm:$0xff]
    %v283 = vld [vmem:[%s5 + $0x20] sm:$0xff]
    %v284 = vld [vmem:[%s5 + $0x28] sm:$0xff]
    %v285 = vld [vmem:[%s5 + $0x30] sm:$0xff]
    %v286 = vld [vmem:[%s5 + $0x38] sm:$0xff]
    %v287 = vld [vmem:[%s7] sm:$0xff]
    %v288 = vld [vmem:[%s7 + $0x8] sm:$0xff]
    %v289 = vld [vmem:[%s11] sm:$0x1]
    %v290 = vld [vmem:[%s13] sm:$0x1]
    %v291 = vld [vmem:[%s15] sm:$0xff]
    %v292 = vld [vmem:[%s15 + $0x8] sm:$0xff]
    %v293 = vld [vmem:[%s15 + $0x10] sm:$0xff]
    %v294 = vld [vmem:[%s15 + $0x18] sm:$0xff]
    %v295 = vld [vmem:[%s17] sm:$0x1]
    %v296 = vld [vmem:[%s19] sm:$0xff]
    %v297 = vld [vmem:[%s19 + $0x8] sm:$0xff]
    %v298 = vld [vmem:[%s19 + $0x10] sm:$0xff]
    %v299 = vld [vmem:[%s19 + $0x18] sm:$0xff]
    %v300 = vld [vmem:[%s21] sm:$0x1]
    %v301 = vld [vmem:[#allocation2] sm:$0xff]
    %v302 = vld [vmem:[#allocation2 + $0x8] sm:$0xff]
    %v303 = vld [vmem:[#allocation2 + $0x10] sm:$0xff]
    %v304 = vld [vmem:[#allocation2 + $0x18] sm:$0xff]
    %v305 = vld [vmem:[%s25] sm:$0x1]
    %v306 = vld [vmem:[#allocation5] sm:$0xff]
    %v307 = vld [vmem:[#allocation5 + $0x8] sm:$0xff]
    %v308 = vld [vmem:[#allocation5 + $0x10] sm:$0xff]
    %v309 = vld [vmem:[#allocation5 + $0x18] sm:$0xff]
    %v310 = vld [vmem:[%s29] sm:$0x1]
    %v311 = vld [vmem:[%s31] sm:$0x1]
    %v312 = vld [vmem:[%s33] sm:$0x1]
    %v313 = vld [vmem:[#allocation7] sm:$0xff]
    %v314 = vld [vmem:[#allocation7 + $0x8] sm:$0xff]
    %v315 = vld [vmem:[#allocation7 + $0x10] sm:$0xff]
    %v316 = vld [vmem:[#allocation7 + $0x18] sm:$0xff]
    %v317 = vld [vmem:[%s37] sm:$0x1]
    %v318 = vld [vmem:[#allocation8] sm:$0xff]
    %v319 = vld [vmem:[#allocation8 + $0x8] sm:$0xff]
    %v320 = vld [vmem:[#allocation8 + $0x10] sm:$0xff]
    %v321 = vld [vmem:[#allocation8 + $0x18] sm:$0xff]
    %v322 = vld [vmem:[%s41] sm:$0x1]
    %v323 = vld [vmem:[#allocation10] sm:$0xff]
    %v324 = vld [vmem:[#allocation10 + $0x8] sm:$0xff]
    %v325 = vld [vmem:[#allocation10 + $0x10] sm:$0xff]
    %v326 = vld [vmem:[#allocation10 + $0x18] sm:$0xff]
    %v327 = vld [vmem:[%s45] sm:$0x1]
    %v328 = vld [vmem:[#allocation11] sm:$0xff]
    %v329 = vld [vmem:[#allocation11 + $0x8] sm:$0xff]
    %v330 = vld [vmem:[#allocation11 + $0x10] sm:$0xff]
    %v331 = vld [vmem:[#allocation11 + $0x18] sm:$0xff]
    %v332 = vld [vmem:[%s49] sm:$0x1]
    %v333 = vld [vmem:[#allocation13] sm:$0xff]
    %v334 = vld [vmem:[#allocation13 + $0x8] sm:$0xff]
    %v335 = vld [vmem:[#allocation13 + $0x10] sm:$0xff]
    %v336 = vld [vmem:[#allocation13 + $0x18] sm:$0xff]
    %v337 = vld [vmem:[#allocation14] sm:$0x1]
    %vm338 = vcmask 261120
    %v339 = vsel %vm338, %v269, 0.0
    %340 = vadd.xlane.f32.xlu0 %v339
    %v341 = vpop.xlane.xlu0 %340
    %v342 = vsel %vm338, %v270, 0.0
    %343 = vadd.xlane.f32.xlu0 %v342
    %v344 = vpop.xlane.xlu0 %343
    %v345 = vrcp.pop 32.0
    %v346 = vmul.f32 32.0, %v345
    %v347 = vsub.f32 1.0, %v346
    %v348 = vmul.f32 %v345, %v347
    %v349 = vadd.f32 %v345, %v348
    %vm350 = vweird.f32 %v345
    %v351 = vsel %vm350, %v345, %v349
    %v352 = vmul.f32 %v341, %v351
    %v353 = vmul.f32 %v344, %v351
    %v354 = vsub.f32 %v269, %v352
    %v355 = vsub.f32 %v270, %v353
    %v356 = vmul.f32 %v354, %v354
    %v357 = vmul.f32 %v355, %v355
    %v358 = vsel %vm338, %v356, 0.0
    %359 = vadd.xlane.f32.xlu0 %v358
    %v360 = vpop.xlane.xlu0 %359
    %v361 = vsel %vm338, %v357, 0.0
    %362 = vadd.xlane.f32.xlu0 %v361
    %v363 = vpop.xlane.xlu0 %362
    %v364 = vmul.f32 %v360, %v351
    %v365 = vmul.f32 %v363, %v351
    %v366 = vadd.f32 %v364, 1e-05
    %v367 = vadd.f32 %v365, 1e-05
    %v368 = vrsqrt.pop %v366
    %v369 = vmul.f32 %v368, %v366
    %v370 = vmul.f32 %v369, %v368
    %v371 = vmul.f32 0.5, %v370
    %v372 = vsub.f32 1.5, %v371
    %v373 = vmul.f32 %v368, %v372
    %vm374 = vweird.f32 %v366
    %vm375 = vweird.f32 %v368
    %vm376 = vmor %vm374, %vm375
    %v377 = vsel %vm376, %v368, %v373
    %v378 = vrsqrt.pop %v367
    %v379 = vmul.f32 %v378, %v367
    %v380 = vmul.f32 %v379, %v378
    %v381 = vmul.f32 0.5, %v380
    %v382 = vsub.f32 1.5, %v381
    %v383 = vmul.f32 %v378, %v382
    %vm384 = vweird.f32 %v367
    %vm385 = vweird.f32 %v378
    %vm386 = vmor %vm384, %vm385
    %v387 = vsel %vm386, %v378, %v383
    %v388 = vmul.f32 %v354, %v377
    %v389 = vmul.f32 %v355, %v387
    %v391 = vperm.slane %v289, 0
    %v393 = vmul.f32 %v388, %v391
    %v394 = vmul.f32 %v389, %v391
    %v396 = vperm.slane %v290, 0
    %v398 = vadd.f32 %v393, %v396
    %v399 = vadd.f32 %v394, %v396
    %v401 = vperm.slane %v295, 0
    %v404 = vsel %vm338, %v398, 0
    %v407 = vsel %vm338, %v399, 0
    %409 = vmatpush.msra.mxu0 0.0
    %410 = vmatpush.msra.mxu0 0.0
    %411 = vmatpush.msra.mxu0 0.0
    %412 = vmatpush.msra.mxu0 0.0
    %413 = vmatpush.msra.mxu0 0.0
    %414 = vmatpush.msra.mxu0 0.0
    %415 = vmatpush.msra.mxu0 0.0
    %416 = vmatpush.msra.mxu0 0.0
    %417 = vmatpush.msra.mxu0 0.0
    %418 = vmatpush.msra.mxu0 0.0
    %419 = vmatpush.msra.mxu0 0.0
    %420 = vmatpush.msra.mxu0 0.0
    %421 = vmatpush.msra.mxu0 %v294
    %422 = vmatpush.msra.mxu0 %v293
    %423 = vmatpush.msra.mxu0 %v292
    %424 = vmatpush.msra.mxu0 %v291
    %425 = vmatmul.f32.gmra.mxu0 %v404
    %v426 = vpop.f32.mrf.mxu0
    %v427 = vadd.f32 %v401, %v426
    %428 = vmatmul.f32.gmra.mxu0 %v407
    %v429 = vpop.f32.mrf.mxu0
    %v430 = vadd.f32 %v401, %v429
    %431 = vdwg.mxu0
    %v433 = vperm.slane %v300, 0
    %435 = vmatpush.msra.mxu0 0.0
    %436 = vmatpush.msra.mxu0 0.0
    %437 = vmatpush.msra.mxu0 0.0
    %438 = vmatpush.msra.mxu0 0.0
    %439 = vmatpush.msra.mxu0 0.0
    %440 = vmatpush.msra.mxu0 0.0
    %441 = vmatpush.msra.mxu0 0.0
    %442 = vmatpush.msra.mxu0 0.0
    %443 = vmatpush.msra.mxu0 0.0
    %444 = vmatpush.msra.mxu0 0.0
    %445 = vmatpush.msra.mxu0 0.0
    %446 = vmatpush.msra.mxu0 0.0
    %447 = vmatpush.msra.mxu0 %v299
    %448 = vmatpush.msra.mxu0 %v298
    %449 = vmatpush.msra.mxu0 %v297
    %450 = vmatpush.msra.mxu0 %v296
    %451 = vmatmul.f32.gmra.mxu0 %v404
    %v452 = vpop.f32.mrf.mxu0
    %v453 = vadd.f32 %v433, %v452
    %454 = vmatmul.f32.gmra.mxu0 %v407
    %v455 = vpop.f32.mrf.mxu0
    %v456 = vadd.f32 %v433, %v455
    %457 = vdwg.mxu0
    %v459 = vperm.slane %v305, 0
    %461 = vmatpush.msra.mxu0 0.0
    %462 = vmatpush.msra.mxu0 0.0
    %463 = vmatpush.msra.mxu0 0.0
    %464 = vmatpush.msra.mxu0 0.0
    %465 = vmatpush.msra.mxu0 0.0
    %466 = vmatpush.msra.mxu0 0.0
    %467 = vmatpush.msra.mxu0 0.0
    %468 = vmatpush.msra.mxu0 0.0
    %469 = vmatpush.msra.mxu0 0.0
    %470 = vmatpush.msra.mxu0 0.0
    %471 = vmatpush.msra.mxu0 0.0
    %472 = vmatpush.msra.mxu0 0.0
    %473 = vmatpush.msra.mxu0 %v304
    %474 = vmatpush.msra.mxu0 %v303
    %475 = vmatpush.msra.mxu0 %v302
    %476 = vmatpush.msra.mxu0 %v301
    %477 = vmatmul.f32.gmra.mxu0 %v404
    %v478 = vpop.f32.mrf.mxu0
    %v479 = vadd.f32 %v459, %v478
    %480 = vmatmul.f32.gmra.mxu0 %v407
    %v481 = vpop.f32.mrf.mxu0
    %v482 = vadd.f32 %v459, %v481
    %483 = vdwg.mxu0
    %vm484 = vcmask 130048
    %v486 = vsel %vm484, %v271, 0
    %v489 = vsel %vm484, %v272, 0
    %v492 = vsel %vm484, %v273, 0
    %v495 = vsel %vm484, %v274, 0
    %v498 = vsel %vm484, %v275, 0
    %v501 = vsel %vm484, %v276, 0
    %v504 = vsel %vm484, %v277, 0
    %v507 = vsel %vm484, %v278, 0
    %509 = vmatpush.msra.mxu0 0.0
    %510 = vmatpush.msra.mxu0 0.0
    %511 = vmatpush.msra.mxu0 0.0
    %512 = vmatpush.msra.mxu0 0.0
    %513 = vmatpush.msra.mxu0 0.0
    %514 = vmatpush.msra.mxu0 0.0
    %515 = vmatpush.msra.mxu0 0.0
    %516 = vmatpush.msra.mxu0 0.0
    %517 = vmatpush.msra.mxu0 0.0
    %518 = vmatpush.msra.mxu0 0.0
    %519 = vmatpush.msra.mxu0 0.0
    %520 = vmatpush.msra.mxu0 0.0
    %521 = vmatpush.msra.mxu0 0.0
    %522 = vmatpush.msra.mxu0 0.0
    %523 = vmatpush.msra.mxu0 %v456
    %524 = vmatpush.msra.mxu0 %v453
    %525 = vmatmul.f32.gmra.mxu0 %v486
    %v526 = vpop.f32.mrf.mxu0
    %v527 = vadd.f32 0.0, %v526
    %528 = vmatmul.f32.gmra.mxu0 %v489
    %v529 = vpop.f32.mrf.mxu0
    %v530 = vadd.f32 0.0, %v529
    %531 = vmatmul.f32.gmra.mxu0 %v492
    %v532 = vpop.f32.mrf.mxu0
    %v533 = vadd.f32 0.0, %v532
    %534 = vmatmul.f32.gmra.mxu0 %v495
    %v535 = vpop.f32.mrf.mxu0
    %v536 = vadd.f32 0.0, %v535
    %537 = vmatmul.f32.gmra.mxu0 %v498
    %v538 = vpop.f32.mrf.mxu0
    %v539 = vadd.f32 0.0, %v538
    %540 = vmatmul.f32.gmra.mxu0 %v501
    %v541 = vpop.f32.mrf.mxu0
    %v542 = vadd.f32 0.0, %v541
    %543 = vmatmul.f32.gmra.mxu0 %v504
    %v544 = vpop.f32.mrf.mxu0
    %v545 = vadd.f32 0.0, %v544
    %546 = vmatmul.f32.gmra.mxu0 %v507
    %v547 = vpop.f32.mrf.mxu0
    %v548 = vadd.f32 0.0, %v547
    %549 = vdwg.mxu0
    %v550 = vmul.f32 %v527, %v279
    %v551 = vmul.f32 %v530, %v280
    %v552 = vmul.f32 %v533, %v281
    %v553 = vmul.f32 %v536, %v282
    %v554 = vmul.f32 %v539, %v283
    %v555 = vmul.f32 %v542, %v284
    %v556 = vmul.f32 %v545, %v285
    %v557 = vmul.f32 %v548, %v286
    %558 = vmatpush.msra.mxu0 0.0
    %559 = vmatpush.msra.mxu0 0.0
    %560 = vmatpush.msra.mxu0 0.0
    %561 = vmatpush.msra.mxu0 0.0
    %562 = vmatpush.msra.mxu0 0.0
    %563 = vmatpush.msra.mxu0 0.0
    %564 = vmatpush.msra.mxu0 0.0
    %565 = vmatpush.msra.mxu0 0.0
    %566 = vmatpush.msra.mxu0 0.0
    %567 = vmatpush.msra.mxu0 0.0
    %568 = vmatpush.msra.mxu0 0.0
    %569 = vmatpush.msra.mxu0 0.0
    %570 = vmatpush.msra.mxu0 0.0
    %571 = vmatpush.msra.mxu0 0.0
    %572 = vmatpush.msra.mxu0 %v482
    %573 = vmatpush.msra.mxu0 %v479
    %574 = vmatmul.f32.gmra.mxu0 %v486
    %v575 = vpop.f32.mrf.mxu0
    %v576 = vadd.f32 0.0, %v575
    %577 = vmatmul.f32.gmra.mxu0 %v489
    %v578 = vpop.f32.mrf.mxu0
    %v579 = vadd.f32 0.0, %v578
    %580 = vmatmul.f32.gmra.mxu0 %v492
    %v581 = vpop.f32.mrf.mxu0
    %v582 = vadd.f32 0.0, %v581
    %583 = vmatmul.f32.gmra.mxu0 %v495
    %v584 = vpop.f32.mrf.mxu0
    %v585 = vadd.f32 0.0, %v584
    %586 = vmatmul.f32.gmra.mxu0 %v498
    %v587 = vpop.f32.mrf.mxu0
    %v588 = vadd.f32 0.0, %v587
    %589 = vmatmul.f32.gmra.mxu0 %v501
    %v590 = vpop.f32.mrf.mxu0
    %v591 = vadd.f32 0.0, %v590
    %592 = vmatmul.f32.gmra.mxu0 %v504
    %v593 = vpop.f32.mrf.mxu0
    %v594 = vadd.f32 0.0, %v593
    %595 = vmatmul.f32.gmra.mxu0 %v507
    %v596 = vpop.f32.mrf.mxu0
    %v597 = vadd.f32 0.0, %v596
    %598 = vdwg.mxu0
    %v599 = vmul.f32 %v576, %v279
    %v600 = vmul.f32 %v579, %v280
    %v601 = vmul.f32 %v582, %v281
    %v602 = vmul.f32 %v585, %v282
    %v603 = vmul.f32 %v588, %v283
    %v604 = vmul.f32 %v591, %v284
    %v605 = vmul.f32 %v594, %v285
    %v606 = vmul.f32 %v597, %v286
    %v608 = vsel %vm338, %v427, 0
    %v611 = vsel %vm338, %v430, 0
    %v614 = vsel %vm338, %v550, 0
    %v617 = vsel %vm338, %v551, 0
    %v620 = vsel %vm338, %v552, 0
    %v623 = vsel %vm338, %v553, 0
    %v626 = vsel %vm338, %v554, 0
    %v629 = vsel %vm338, %v555, 0
    %v632 = vsel %vm338, %v556, 0
    %v635 = vsel %vm338, %v557, 0
    %637 = vmatpush.xpose.msra.mxu0 0.0
    %638 = vmatpush.xpose.msra.mxu0 0.0
    %639 = vmatpush.xpose.msra.mxu0 0.0
    %640 = vmatpush.xpose.msra.mxu0 0.0
    %641 = vmatpush.xpose.msra.mxu0 0.0
    %642 = vmatpush.xpose.msra.mxu0 0.0
    %643 = vmatpush.xpose.msra.mxu0 0.0
    %644 = vmatpush.xpose.msra.mxu0 0.0
    %645 = vmatpush.xpose.msra.mxu0 %v635
    %646 = vmatpush.xpose.msra.mxu0 %v632
    %647 = vmatpush.xpose.msra.mxu0 %v629
    %648 = vmatpush.xpose.msra.mxu0 %v626
    %649 = vmatpush.xpose.msra.mxu0 %v623
    %650 = vmatpush.xpose.msra.mxu0 %v620
    %651 = vmatpush.xpose.msra.mxu0 %v617
    %652 = vmatpush.xpose.msra.mxu0 %v614
    %653 = vmatmul.f32.gmra.mxu0 %v608
    %v654 = vpop.f32.mrf.mxu0
    %v655 = vadd.f32 0.0, %v654
    %656 = vmatmul.f32.gmra.mxu0 %v611
    %v657 = vpop.f32.mrf.mxu0
    %v658 = vadd.f32 0.0, %v657
    %659 = vdwg.mxu0
    %v660 = vmul.f32 %v655, 0.35355338
    %v661 = vmul.f32 %v658, 0.35355338
    %v662 = vadd.f32 %v660, %v287
    %v663 = vadd.f32 %v661, %v288
    %vm664 = vcmask 523264
    %v665 = vsel %vm664, %v662, -inf
    %666 = vmax.xlane.f32.xlu0 %v665
    %v667 = vpop.xlane.xlu0 %666
    %v668 = vsel %vm664, %v663, -inf
    %669 = vmax.xlane.f32.xlu0 %v668
    %v670 = vpop.xlane.xlu0 %669
    %v671 = vsub.f32 %v662, %v667
    %v672 = vsub.f32 %v663, %v670
    %v673 = vmul.f32 %v671, 1.442695
    %v674 = vpow.pop %v673
    %v675 = vmul.f32 %v672, 1.442695
    %v676 = vpow.pop %v675
    %v678 = vsel %vm664, %v674, 0
    %v681 = vsel %vm664, %v676, 0
    %683 = vmatpush.msra.mxu0 0.0
    %684 = vmatpush.msra.mxu0 0.0
    %685 = vmatpush.msra.mxu0 0.0
    %686 = vmatpush.msra.mxu0 0.0
    %687 = vmatpush.msra.mxu0 0.0
    %688 = vmatpush.msra.mxu0 0.0
    %689 = vmatpush.msra.mxu0 0.0
    %690 = vmatpush.msra.mxu0 0.0
    %691 = vmatpush.msra.mxu0 %v606
    %692 = vmatpush.msra.mxu0 %v605
    %693 = vmatpush.msra.mxu0 %v604
    %694 = vmatpush.msra.mxu0 %v603
    %695 = vmatpush.msra.mxu0 %v602
    %696 = vmatpush.msra.mxu0 %v601
    %697 = vmatpush.msra.mxu0 %v600
    %698 = vmatpush.msra.mxu0 %v599
    %699 = vmatmul.f32.gmra.mxu0 %v678
    %v700 = vpop.f32.mrf.mxu0
    %v701 = vadd.f32 0.0, %v700
    %702 = vmatmul.f32.gmra.mxu0 %v681
    %v703 = vpop.f32.mrf.mxu0
    %v704 = vadd.f32 0.0, %v703
    %705 = vdwg.mxu0
    %706 = vmatpush.msra.mxu0 0.0
    %707 = vmatpush.msra.mxu0 0.0
    %708 = vmatpush.msra.mxu0 0.0
    %709 = vmatpush.msra.mxu0 0.0
    %710 = vmatpush.msra.mxu0 0.0
    %711 = vmatpush.msra.mxu0 0.0
    %712 = vmatpush.msra.mxu0 0.0
    %713 = vmatpush.msra.mxu0 0.0
    %714 = vmatpush.msra.mxu0 %v286
    %715 = vmatpush.msra.mxu0 %v285
    %716 = vmatpush.msra.mxu0 %v284
    %717 = vmatpush.msra.mxu0 %v283
    %718 = vmatpush.msra.mxu0 %v282
    %719 = vmatpush.msra.mxu0 %v281
    %720 = vmatpush.msra.mxu0 %v280
    %721 = vmatpush.msra.mxu0 %v279
    %722 = vmatmul.f32.gmra.mxu0 %v678
    %v723 = vpop.f32.mrf.mxu0
    %v724 = vadd.f32 0.0, %v723
    %725 = vmatmul.f32.gmra.mxu0 %v681
    %v726 = vpop.f32.mrf.mxu0
    %v727 = vadd.f32 0.0, %v726
    %728 = vdwg.mxu0
    %v729 = vrcp.pop %v724
    %v730 = vrcp.pop %v727
    %v731 = vmul.f32 %v701, %v729
    %v732 = vmul.f32 %v704, %v730
    %v734 = vperm.slane %v310, 0
    %v737 = vsel %vm338, %v731, 0
    %v740 = vsel %vm338, %v732, 0
    %742 = vmatpush.msra.mxu0 0.0
    %743 = vmatpush.msra.mxu0 0.0
    %744 = vmatpush.msra.mxu0 0.0
    %745 = vmatpush.msra.mxu0 0.0
    %746 = vmatpush.msra.mxu0 0.0
    %747 = vmatpush.msra.mxu0 0.0
    %748 = vmatpush.msra.mxu0 0.0
    %749 = vmatpush.msra.mxu0 0.0
    %750 = vmatpush.msra.mxu0 0.0
    %751 = vmatpush.msra.mxu0 0.0
    %752 = vmatpush.msra.mxu0 0.0
    %753 = vmatpush.msra.mxu0 0.0
    %754 = vmatpush.msra.mxu0 %v309
    %755 = vmatpush.msra.mxu0 %v308
    %756 = vmatpush.msra.mxu0 %v307
    %757 = vmatpush.msra.mxu0 %v306
    %758 = vmatmul.f32.gmra.mxu0 %v737
    %v759 = vpop.f32.mrf.mxu0
    %v760 = vadd.f32 %v734, %v759
    %761 = vmatmul.f32.gmra.mxu0 %v740
    %v762 = vpop.f32.mrf.mxu0
    %v763 = vadd.f32 %v734, %v762
    %764 = vdwg.mxu0
    %v765 = vsel %vm338, %v760, 0.0
    %766 = vadd.xlane.f32.xlu0 %v765
    %v767 = vpop.xlane.xlu0 %766
    %v768 = vsel %vm338, %v763, 0.0
    %769 = vadd.xlane.f32.xlu0 %v768
    %v770 = vpop.xlane.xlu0 %769
    %v771 = vmul.f32 %v767, %v351
    %v772 = vmul.f32 %v770, %v351
    %v773 = vsub.f32 %v760, %v771
    %v774 = vsub.f32 %v763, %v772
    %v775 = vmul.f32 %v773, %v773
    %v776 = vmul.f32 %v774, %v774
    %v777 = vsel %vm338, %v775, 0.0
    %778 = vadd.xlane.f32.xlu0 %v777
    %v779 = vpop.xlane.xlu0 %778
    %v780 = vsel %vm338, %v776, 0.0
    %781 = vadd.xlane.f32.xlu0 %v780
    %v782 = vpop.xlane.xlu0 %781
    %v783 = vmul.f32 %v779, %v351
    %v784 = vmul.f32 %v782, %v351
    %v785 = vadd.f32 %v783, 1e-05
    %v786 = vadd.f32 %v784, 1e-05
    %v787 = vrsqrt.pop %v785
    %v788 = vmul.f32 %v787, %v785
    %v789 = vmul.f32 %v788, %v787
    %v790 = vmul.f32 0.5, %v789
    %v791 = vsub.f32 1.5, %v790
    %v792 = vmul.f32 %v787, %v791
    %vm793 = vweird.f32 %v785
    %vm794 = vweird.f32 %v787
    %vm795 = vmor %vm793, %vm794
    %v796 = vsel %vm795, %v787, %v792
    %v797 = vrsqrt.pop %v786
    %v798 = vmul.f32 %v797, %v786
    %v799 = vmul.f32 %v798, %v797
    %v800 = vmul.f32 0.5, %v799
    %v801 = vsub.f32 1.5, %v800
    %v802 = vmul.f32 %v797, %v801
    %vm803 = vweird.f32 %v786
    %vm804 = vweird.f32 %v797
    %vm805 = vmor %vm803, %vm804
    %v806 = vsel %vm805, %v797, %v802
    %v807 = vmul.f32 %v773, %v796
    %v808 = vmul.f32 %v774, %v806
    %v810 = vperm.slane %v311, 0
    %v812 = vmul.f32 %v807, %v810
    %v813 = vmul.f32 %v808, %v810
    %v815 = vperm.slane %v312, 0
    %v817 = vadd.f32 %v812, %v815
    %v818 = vadd.f32 %v813, %v815
    %v820 = vperm.slane %v317, 0
    %v823 = vsel %vm338, %v817, 0
    %v826 = vsel %vm338, %v818, 0
    %828 = vmatpush.msra.mxu0 0.0
    %829 = vmatpush.msra.mxu0 0.0
    %830 = vmatpush.msra.mxu0 0.0
    %831 = vmatpush.msra.mxu0 0.0
    %832 = vmatpush.msra.mxu0 0.0
    %833 = vmatpush.msra.mxu0 0.0
    %834 = vmatpush.msra.mxu0 0.0
    %835 = vmatpush.msra.mxu0 0.0
    %836 = vmatpush.msra.mxu0 0.0
    %837 = vmatpush.msra.mxu0 0.0
    %838 = vmatpush.msra.mxu0 0.0
    %839 = vmatpush.msra.mxu0 0.0
    %840 = vmatpush.msra.mxu0 %v316
    %841 = vmatpush.msra.mxu0 %v315
    %842 = vmatpush.msra.mxu0 %v314
    %843 = vmatpush.msra.mxu0 %v313
    %844 = vmatmul.f32.gmra.mxu0 %v823
    %v845 = vpop.f32.mrf.mxu0
    %v846 = vadd.f32 %v820, %v845
    %847 = vmatmul.f32.gmra.mxu0 %v826
    %v848 = vpop.f32.mrf.mxu0
    %v849 = vadd.f32 %v820, %v848
    %850 = vdwg.mxu0
    %v852 = vperm.slane %v322, 0
    %854 = vmatpush.msra.mxu0 0.0
    %855 = vmatpush.msra.mxu0 0.0
    %856 = vmatpush.msra.mxu0 0.0
    %857 = vmatpush.msra.mxu0 0.0
    %858 = vmatpush.msra.mxu0 0.0
    %859 = vmatpush.msra.mxu0 0.0
    %860 = vmatpush.msra.mxu0 0.0
    %861 = vmatpush.msra.mxu0 0.0
    %862 = vmatpush.msra.mxu0 0.0
    %863 = vmatpush.msra.mxu0 0.0
    %864 = vmatpush.msra.mxu0 0.0
    %865 = vmatpush.msra.mxu0 0.0
    %866 = vmatpush.msra.mxu0 %v321
    %867 = vmatpush.msra.mxu0 %v320
    %868 = vmatpush.msra.mxu0 %v319
    %869 = vmatpush.msra.mxu0 %v318
    %870 = vmatmul.f32.gmra.mxu0 %v823
    %v871 = vpop.f32.mrf.mxu0
    %v872 = vadd.f32 %v852, %v871
    %873 = vmatmul.f32.gmra.mxu0 %v826
    %v874 = vpop.f32.mrf.mxu0
    %v875 = vadd.f32 %v852, %v874
    %876 = vdwg.mxu0
    %v878 = vperm.slane %v327, 0
    %880 = vmatpush.msra.mxu0 0.0
    %881 = vmatpush.msra.mxu0 0.0
    %882 = vmatpush.msra.mxu0 0.0
    %883 = vmatpush.msra.mxu0 0.0
    %884 = vmatpush.msra.mxu0 0.0
    %885 = vmatpush.msra.mxu0 0.0
    %886 = vmatpush.msra.mxu0 0.0
    %887 = vmatpush.msra.mxu0 0.0
    %888 = vmatpush.msra.mxu0 0.0
    %889 = vmatpush.msra.mxu0 0.0
    %890 = vmatpush.msra.mxu0 0.0
    %891 = vmatpush.msra.mxu0 0.0
    %892 = vmatpush.msra.mxu0 %v326
    %893 = vmatpush.msra.mxu0 %v325
    %894 = vmatpush.msra.mxu0 %v324
    %895 = vmatpush.msra.mxu0 %v323
    %896 = vmatmul.f32.gmra.mxu0 %v823
    %v897 = vpop.f32.mrf.mxu0
    %v898 = vadd.f32 %v878, %v897
    %899 = vmatmul.f32.gmra.mxu0 %v826
    %v900 = vpop.f32.mrf.mxu0
    %v901 = vadd.f32 %v878, %v900
    %902 = vdwg.mxu0
    %903 = vmatpush.msra.mxu0 0.0
    %904 = vmatpush.msra.mxu0 0.0
    %905 = vmatpush.msra.mxu0 0.0
    %906 = vmatpush.msra.mxu0 0.0
    %907 = vmatpush.msra.mxu0 0.0
    %908 = vmatpush.msra.mxu0 0.0
    %909 = vmatpush.msra.mxu0 0.0
    %910 = vmatpush.msra.mxu0 0.0
    %911 = vmatpush.msra.mxu0 0.0
    %912 = vmatpush.msra.mxu0 0.0
    %913 = vmatpush.msra.mxu0 0.0
    %914 = vmatpush.msra.mxu0 0.0
    %915 = vmatpush.msra.mxu0 0.0
    %916 = vmatpush.msra.mxu0 0.0
    %917 = vmatpush.msra.mxu0 %v875
    %918 = vmatpush.msra.mxu0 %v872
    %919 = vmatmul.f32.gmra.mxu0 %v486
    %v920 = vpop.f32.mrf.mxu0
    %v921 = vadd.f32 0.0, %v920
    %922 = vmatmul.f32.gmra.mxu0 %v489
    %v923 = vpop.f32.mrf.mxu0
    %v924 = vadd.f32 0.0, %v923
    %925 = vmatmul.f32.gmra.mxu0 %v492
    %v926 = vpop.f32.mrf.mxu0
    %v927 = vadd.f32 0.0, %v926
    %928 = vmatmul.f32.gmra.mxu0 %v495
    %v929 = vpop.f32.mrf.mxu0
    %v930 = vadd.f32 0.0, %v929
    %931 = vmatmul.f32.gmra.mxu0 %v498
    %v932 = vpop.f32.mrf.mxu0
    %v933 = vadd.f32 0.0, %v932
    %934 = vmatmul.f32.gmra.mxu0 %v501
    %v935 = vpop.f32.mrf.mxu0
    %v936 = vadd.f32 0.0, %v935
    %937 = vmatmul.f32.gmra.mxu0 %v504
    %v938 = vpop.f32.mrf.mxu0
    %v939 = vadd.f32 0.0, %v938
    %940 = vmatmul.f32.gmra.mxu0 %v507
    %v941 = vpop.f32.mrf.mxu0
    %v942 = vadd.f32 0.0, %v941
    %943 = vdwg.mxu0
    %v944 = vmul.f32 %v921, %v279
    %v945 = vmul.f32 %v924, %v280
    %v946 = vmul.f32 %v927, %v281
    %v947 = vmul.f32 %v930, %v282
    %v948 = vmul.f32 %v933, %v283
    %v949 = vmul.f32 %v936, %v284
    %v950 = vmul.f32 %v939, %v285
    %v951 = vmul.f32 %v942, %v286
    %952 = vmatpush.msra.mxu0 0.0
    %953 = vmatpush.msra.mxu0 0.0
    %954 = vmatpush.msra.mxu0 0.0
    %955 = vmatpush.msra.mxu0 0.0
    %956 = vmatpush.msra.mxu0 0.0
    %957 = vmatpush.msra.mxu0 0.0
    %958 = vmatpush.msra.mxu0 0.0
    %959 = vmatpush.msra.mxu0 0.0
    %960 = vmatpush.msra.mxu0 0.0
    %961 = vmatpush.msra.mxu0 0.0
    %962 = vmatpush.msra.mxu0 0.0
    %963 = vmatpush.msra.mxu0 0.0
    %964 = vmatpush.msra.mxu0 0.0
    %965 = vmatpush.msra.mxu0 0.0
    %966 = vmatpush.msra.mxu0 %v901
    %967 = vmatpush.msra.mxu0 %v898
    %968 = vmatmul.f32.gmra.mxu0 %v486
    %v969 = vpop.f32.mrf.mxu0
    %v970 = vadd.f32 0.0, %v969
    %971 = vmatmul.f32.gmra.mxu0 %v489
    %v972 = vpop.f32.mrf.mxu0
    %v973 = vadd.f32 0.0, %v972
    %974 = vmatmul.f32.gmra.mxu0 %v492
    %v975 = vpop.f32.mrf.mxu0
    %v976 = vadd.f32 0.0, %v975
    %977 = vmatmul.f32.gmra.mxu0 %v495
    %v978 = vpop.f32.mrf.mxu0
    %v979 = vadd.f32 0.0, %v978
    %980 = vmatmul.f32.gmra.mxu0 %v498
    %v981 = vpop.f32.mrf.mxu0
    %v982 = vadd.f32 0.0, %v981
    %983 = vmatmul.f32.gmra.mxu0 %v501
    %v984 = vpop.f32.mrf.mxu0
    %v985 = vadd.f32 0.0, %v984
    %986 = vmatmul.f32.gmra.mxu0 %v504
    %v987 = vpop.f32.mrf.mxu0
    %v988 = vadd.f32 0.0, %v987
    %989 = vmatmul.f32.gmra.mxu0 %v507
    %v990 = vpop.f32.mrf.mxu0
    %v991 = vadd.f32 0.0, %v990
    %992 = vdwg.mxu0
    %v993 = vmul.f32 %v970, %v279
    %v994 = vmul.f32 %v973, %v280
    %v995 = vmul.f32 %v976, %v281
    %v996 = vmul.f32 %v979, %v282
    %v997 = vmul.f32 %v982, %v283
    %v998 = vmul.f32 %v985, %v284
    %v999 = vmul.f32 %v988, %v285
    %v1000 = vmul.f32 %v991, %v286
    %v1002 = vsel %vm338, %v846, 0
    %v1005 = vsel %vm338, %v849, 0
    %v1008 = vsel %vm338, %v944, 0
    %v1011 = vsel %vm338, %v945, 0
    %v1014 = vsel %vm338, %v946, 0
    %v1017 = vsel %vm338, %v947, 0
    %v1020 = vsel %vm338, %v948, 0
    %v1023 = vsel %vm338, %v949, 0
    %v1026 = vsel %vm338, %v950, 0
    %v1029 = vsel %vm338, %v951, 0
    %1031 = vmatpush.xpose.msra.mxu0 0.0
    %1032 = vmatpush.xpose.msra.mxu0 0.0
    %1033 = vmatpush.xpose.msra.mxu0 0.0
    %1034 = vmatpush.xpose.msra.mxu0 0.0
    %1035 = vmatpush.xpose.msra.mxu0 0.0
    %1036 = vmatpush.xpose.msra.mxu0 0.0
    %1037 = vmatpush.xpose.msra.mxu0 0.0
    %1038 = vmatpush.xpose.msra.mxu0 0.0
    %1039 = vmatpush.xpose.msra.mxu0 %v1029
    %1040 = vmatpush.xpose.msra.mxu0 %v1026
    %1041 = vmatpush.xpose.msra.mxu0 %v1023
    %1042 = vmatpush.xpose.msra.mxu0 %v1020
    %1043 = vmatpush.xpose.msra.mxu0 %v1017
    %1044 = vmatpush.xpose.msra.mxu0 %v1014
    %1045 = vmatpush.xpose.msra.mxu0 %v1011
    %1046 = vmatpush.xpose.msra.mxu0 %v1008
    %1047 = vmatmul.f32.gmra.mxu0 %v1002
    %v1048 = vpop.f32.mrf.mxu0
    %v1049 = vadd.f32 0.0, %v1048
    %1050 = vmatmul.f32.gmra.mxu0 %v1005
    %v1051 = vpop.f32.mrf.mxu0
    %v1052 = vadd.f32 0.0, %v1051
    %1053 = vdwg.mxu0
    %v1054 = vmul.f32 %v1049, 0.35355338
    %v1055 = vmul.f32 %v1052, 0.35355338
    %v1056 = vadd.f32 %v1054, %v287
    %v1057 = vadd.f32 %v1055, %v288
    %v1058 = vsel %vm664, %v1056, -inf
    %1059 = vmax.xlane.f32.xlu0 %v1058
    %v1060 = vpop.xlane.xlu0 %1059
    %v1061 = vsel %vm664, %v1057, -inf
    %1062 = vmax.xlane.f32.xlu0 %v1061
    %v1063 = vpop.xlane.xlu0 %1062
    %v1064 = vsub.f32 %v1056, %v1060
    %v1065 = vsub.f32 %v1057, %v1063
    %v1066 = vmul.f32 %v1064, 1.442695
    %v1067 = vpow.pop %v1066
    %v1068 = vmul.f32 %v1065, 1.442695
    %v1069 = vpow.pop %v1068
    %v1071 = vsel %vm664, %v1067, 0
    %v1074 = vsel %vm664, %v1069, 0
    %1076 = vmatpush.msra.mxu0 0.0
    %1077 = vmatpush.msra.mxu0 0.0
    %1078 = vmatpush.msra.mxu0 0.0
    %1079 = vmatpush.msra.mxu0 0.0
    %1080 = vmatpush.msra.mxu0 0.0
    %1081 = vmatpush.msra.mxu0 0.0
    %1082 = vmatpush.msra.mxu0 0.0
    %1083 = vmatpush.msra.mxu0 0.0
    %1084 = vmatpush.msra.mxu0 %v1000
    %1085 = vmatpush.msra.mxu0 %v999
    %1086 = vmatpush.msra.mxu0 %v998
    %1087 = vmatpush.msra.mxu0 %v997
    %1088 = vmatpush.msra.mxu0 %v996
    %1089 = vmatpush.msra.mxu0 %v995
    %1090 = vmatpush.msra.mxu0 %v994
    %1091 = vmatpush.msra.mxu0 %v993
    %1092 = vmatmul.f32.gmra.mxu0 %v1071
    %v1093 = vpop.f32.mrf.mxu0
    %v1094 = vadd.f32 0.0, %v1093
    %1095 = vmatmul.f32.gmra.mxu0 %v1074
    %v1096 = vpop.f32.mrf.mxu0
    %v1097 = vadd.f32 0.0, %v1096
    %1098 = vdwg.mxu0
    %1099 = vmatpush.msra.mxu0 0.0
    %1100 = vmatpush.msra.mxu0 0.0
    %1101 = vmatpush.msra.mxu0 0.0
    %1102 = vmatpush.msra.mxu0 0.0
    %1103 = vmatpush.msra.mxu0 0.0
    %1104 = vmatpush.msra.mxu0 0.0
    %1105 = vmatpush.msra.mxu0 0.0
    %1106 = vmatpush.msra.mxu0 0.0
    %1107 = vmatpush.msra.mxu0 %v286
    %1108 = vmatpush.msra.mxu0 %v285
    %1109 = vmatpush.msra.mxu0 %v284
    %1110 = vmatpush.msra.mxu0 %v283
    %1111 = vmatpush.msra.mxu0 %v282
    %1112 = vmatpush.msra.mxu0 %v281
    %1113 = vmatpush.msra.mxu0 %v280
    %1114 = vmatpush.msra.mxu0 %v279
    %1115 = vmatmul.f32.gmra.mxu0 %v1071
    %v1116 = vpop.f32.mrf.mxu0
    %v1117 = vadd.f32 0.0, %v1116
    %1118 = vmatmul.f32.gmra.mxu0 %v1074
    %v1119 = vpop.f32.mrf.mxu0
    %v1120 = vadd.f32 0.0, %v1119
    %1121 = vdwg.mxu0
    %v1122 = vrcp.pop %v1117
    %v1123 = vrcp.pop %v1120
    %v1124 = vmul.f32 %v1094, %v1122
    %v1125 = vmul.f32 %v1097, %v1123
    %v1127 = vperm.slane %v332, 0
    %v1130 = vsel %vm338, %v1124, 0
    %v1133 = vsel %vm338, %v1125, 0
    %1135 = vmatpush.msra.mxu0 0.0
    %1136 = vmatpush.msra.mxu0 0.0
    %1137 = vmatpush.msra.mxu0 0.0
    %1138 = vmatpush.msra.mxu0 0.0
    %1139 = vmatpush.msra.mxu0 0.0
    %1140 = vmatpush.msra.mxu0 0.0
    %1141 = vmatpush.msra.mxu0 0.0
    %1142 = vmatpush.msra.mxu0 0.0
    %1143 = vmatpush.msra.mxu0 0.0
    %1144 = vmatpush.msra.mxu0 0.0
    %1145 = vmatpush.msra.mxu0 0.0
    %1146 = vmatpush.msra.mxu0 0.0
    %1147 = vmatpush.msra.mxu0 %v331
    %1148 = vmatpush.msra.mxu0 %v330
    %1149 = vmatpush.msra.mxu0 %v329
    %1150 = vmatpush.msra.mxu0 %v328
    %1151 = vmatmul.f32.gmra.mxu0 %v1130
    %v1152 = vpop.f32.mrf.mxu0
    %v1153 = vadd.f32 %v1127, %v1152
    %1154 = vmatmul.f32.gmra.mxu0 %v1133
    %v1155 = vpop.f32.mrf.mxu0
    %v1156 = vadd.f32 %v1127, %v1155
    %1157 = vdwg.mxu0
    %v1159 = vperm.slane %v337, 0
    %v1162 = vsel %vm338, %v1153, 0
    %v1165 = vsel %vm338, %v1156, 0
    %1167 = vmatpush.msra.mxu0 0.0
    %1168 = vmatpush.msra.mxu0 0.0
    %1169 = vmatpush.msra.mxu0 0.0
    %1170 = vmatpush.msra.mxu0 0.0
    %1171 = vmatpush.msra.mxu0 0.0
    %1172 = vmatpush.msra.mxu0 0.0
    %1173 = vmatpush.msra.mxu0 0.0
    %1174 = vmatpush.msra.mxu0 0.0
    %1175 = vmatpush.msra.mxu0 0.0
    %1176 = vmatpush.msra.mxu0 0.0
    %1177 = vmatpush.msra.mxu0 0.0
    %1178 = vmatpush.msra.mxu0 0.0
    %1179 = vmatpush.msra.mxu0 %v336
    %1180 = vmatpush.msra.mxu0 %v335
    %1181 = vmatpush.msra.mxu0 %v334
    %1182 = vmatpush.msra.mxu0 %v333
    %1183 = vmatmul.f32.gmra.mxu0 %v1162
    %v1184 = vpop.f32.mrf.mxu0
    %v1185 = vadd.f32 %v1159, %v1184
    %1186 = vmatmul.f32.gmra.mxu0 %v1165
    %v1187 = vpop.f32.mrf.mxu0
    %v1188 = vadd.f32 %v1159, %v1187
    %1189 = vdwg.mxu0
    %v1190 = vsel %vm338, %v1185, 0.0
    %1191 = vadd.xlane.f32.xlu0 %v1190
    %v1192 = vpop.xlane.xlu0 %1191
    %v1193 = vsel %vm338, %v1188, 0.0
    %1194 = vadd.xlane.f32.xlu0 %v1193
    %v1195 = vpop.xlane.xlu0 %1194
    %v1196 = vmul.f32 %v1192, %v351
    %v1197 = vmul.f32 %v1195, %v351
    %v1198 = vsub.f32 %v1185, %v1196
    %v1199 = vsub.f32 %v1188, %v1197
    %v1200 = vmul.f32 %v1198, %v1198
    %v1201 = vmul.f32 %v1199, %v1199
    %v1202 = vsel %vm338, %v1200, 0.0
    %1203 = vadd.xlane.f32.xlu0 %v1202
    %v1204 = vpop.xlane.xlu0 %1203
    %v1205 = vsel %vm338, %v1201, 0.0
    %1206 = vadd.xlane.f32.xlu0 %v1205
    %v1207 = vpop.xlane.xlu0 %1206
    %v1208 = vmul.f32 %v1204, %v351
    %v1209 = vmul.f32 %v1207, %v351
    %v1210 = vadd.f32 %v1208, 1e-05
    %v1211 = vadd.f32 %v1209, 1e-05
    %v1212 = vrsqrt.pop %v1210
    %v1213 = vmul.f32 %v1212, %v1210
    %v1214 = vmul.f32 %v1213, %v1212
    %v1215 = vmul.f32 0.5, %v1214
    %v1216 = vsub.f32 1.5, %v1215
    %v1217 = vmul.f32 %v1212, %v1216
    %vm1218 = vweird.f32 %v1210
    %vm1219 = vweird.f32 %v1212
    %vm1220 = vmor %vm1218, %vm1219
    %v1221 = vsel %vm1220, %v1212, %v1217
    %v1222 = vrsqrt.pop %v1211
    %v1223 = vmul.f32 %v1222, %v1211
    %v1224 = vmul.f32 %v1223, %v1222
    %v1225 = vmul.f32 0.5, %v1224
    %v1226 = vsub.f32 1.5, %v1225
    %v1227 = vmul.f32 %v1222, %v1226
    %vm1228 = vweird.f32 %v1211
    %vm1229 = vweird.f32 %v1222
    %vm1230 = vmor %vm1228, %vm1229
    %v1231 = vsel %vm1230, %v1222, %v1227
    %v1232 = vmul.f32 %v1198, %v1221
    %v1233 = vmul.f32 %v1199, %v1231
    %v1234 = vmul.f32 %v1232, %v391
    %v1235 = vmul.f32 %v1233, %v391
    %v1236 = vadd.f32 %v1234, %v396
    %v1237 = vadd.f32 %v1235, %v396
    %v1239 = vsel %vm338, %v1236, 0
    %v1242 = vsel %vm338, %v1237, 0
    %1244 = vmatpush.msra.mxu0 0.0
    %1245 = vmatpush.msra.mxu0 0.0
    %1246 = vmatpush.msra.mxu0 0.0
    %1247 = vmatpush.msra.mxu0 0.0
    %1248 = vmatpush.msra.mxu0 0.0
    %1249 = vmatpush.msra.mxu0 0.0
    %1250 = vmatpush.msra.mxu0 0.0
    %1251 = vmatpush.msra.mxu0 0.0
    %1252 = vmatpush.msra.mxu0 0.0
    %1253 = vmatpush.msra.mxu0 0.0
    %1254 = vmatpush.msra.mxu0 0.0
    %1255 = vmatpush.msra.mxu0 0.0
    %1256 = vmatpush.msra.mxu0 %v294
    %1257 = vmatpush.msra.mxu0 %v293
    %1258 = vmatpush.msra.mxu0 %v292
    %1259 = vmatpush.msra.mxu0 %v291
    %1260 = vmatmul.f32.gmra.mxu0 %v1239
    %v1261 = vpop.f32.mrf.mxu0
    %v1262 = vadd.f32 %v401, %v1261
    %1263 = vmatmul.f32.gmra.mxu0 %v1242
    %v1264 = vpop.f32.mrf.mxu0
    %v1265 = vadd.f32 %v401, %v1264
    %1266 = vdwg.mxu0
    %1267 = vmatpush.msra.mxu0 0.0
    %1268 = vmatpush.msra.mxu0 0.0
    %1269 = vmatpush.msra.mxu0 0.0
    %1270 = vmatpush.msra.mxu0 0.0
    %1271 = vmatpush.msra.mxu0 0.0
    %1272 = vmatpush.msra.mxu0 0.0
    %1273 = vmatpush.msra.mxu0 0.0
    %1274 = vmatpush.msra.mxu0 0.0
    %1275 = vmatpush.msra.mxu0 0.0
    %1276 = vmatpush.msra.mxu0 0.0
    %1277 = vmatpush.msra.mxu0 0.0
    %1278 = vmatpush.msra.mxu0 0.0
    %1279 = vmatpush.msra.mxu0 %v299
    %1280 = vmatpush.msra.mxu0 %v298
    %1281 = vmatpush.msra.mxu0 %v297
    %1282 = vmatpush.msra.mxu0 %v296
    %1283 = vmatmul.f32.gmra.mxu0 %v1239
    %v1284 = vpop.f32.mrf.mxu0
    %v1285 = vadd.f32 %v433, %v1284
    %1286 = vmatmul.f32.gmra.mxu0 %v1242
    %v1287 = vpop.f32.mrf.mxu0
    %v1288 = vadd.f32 %v433, %v1287
    %1289 = vdwg.mxu0
    %1290 = vmatpush.msra.mxu0 0.0
    %1291 = vmatpush.msra.mxu0 0.0
    %1292 = vmatpush.msra.mxu0 0.0
    %1293 = vmatpush.msra.mxu0 0.0
    %1294 = vmatpush.msra.mxu0 0.0
    %1295 = vmatpush.msra.mxu0 0.0
    %1296 = vmatpush.msra.mxu0 0.0
    %1297 = vmatpush.msra.mxu0 0.0
    %1298 = vmatpush.msra.mxu0 0.0
    %1299 = vmatpush.msra.mxu0 0.0
    %1300 = vmatpush.msra.mxu0 0.0
    %1301 = vmatpush.msra.mxu0 0.0
    %1302 = vmatpush.msra.mxu0 %v304
    %1303 = vmatpush.msra.mxu0 %v303
    %1304 = vmatpush.msra.mxu0 %v302
    %1305 = vmatpush.msra.mxu0 %v301
    %1306 = vmatmul.f32.gmra.mxu0 %v1239
    %v1307 = vpop.f32.mrf.mxu0
    %v1308 = vadd.f32 %v459, %v1307
    %1309 = vmatmul.f32.gmra.mxu0 %v1242
    %v1310 = vpop.f32.mrf.mxu0
    %v1311 = vadd.f32 %v459, %v1310
    %1312 = vdwg.mxu0
    %1313 = vmatpush.msra.mxu0 0.0
    %1314 = vmatpush.msra.mxu0 0.0
    %1315 = vmatpush.msra.mxu0 0.0
    %1316 = vmatpush.msra.mxu0 0.0
    %1317 = vmatpush.msra.mxu0 0.0
    %1318 = vmatpush.msra.mxu0 0.0
    %1319 = vmatpush.msra.mxu0 0.0
    %1320 = vmatpush.msra.mxu0 0.0
    %1321 = vmatpush.msra.mxu0 0.0
    %1322 = vmatpush.msra.mxu0 0.0
    %1323 = vmatpush.msra.mxu0 0.0
    %1324 = vmatpush.msra.mxu0 0.0
    %1325 = vmatpush.msra.mxu0 0.0
    %1326 = vmatpush.msra.mxu0 0.0
    %1327 = vmatpush.msra.mxu0 %v1288
    %1328 = vmatpush.msra.mxu0 %v1285
    %1329 = vmatmul.f32.gmra.mxu0 %v486
    %v1330 = vpop.f32.mrf.mxu0
    %v1331 = vadd.f32 0.0, %v1330
    %1332 = vmatmul.f32.gmra.mxu0 %v489
    %v1333 = vpop.f32.mrf.mxu0
    %v1334 = vadd.f32 0.0, %v1333
    %1335 = vmatmul.f32.gmra.mxu0 %v492
    %v1336 = vpop.f32.mrf.mxu0
    %v1337 = vadd.f32 0.0, %v1336
    %1338 = vmatmul.f32.gmra.mxu0 %v495
    %v1339 = vpop.f32.mrf.mxu0
    %v1340 = vadd.f32 0.0, %v1339
    %1341 = vmatmul.f32.gmra.mxu0 %v498
    %v1342 = vpop.f32.mrf.mxu0
    %v1343 = vadd.f32 0.0, %v1342
    %1344 = vmatmul.f32.gmra.mxu0 %v501
    %v1345 = vpop.f32.mrf.mxu0
    %v1346 = vadd.f32 0.0, %v1345
    %1347 = vmatmul.f32.gmra.mxu0 %v504
    %v1348 = vpop.f32.mrf.mxu0
    %v1349 = vadd.f32 0.0, %v1348
    %1350 = vmatmul.f32.gmra.mxu0 %v507
    %v1351 = vpop.f32.mrf.mxu0
    %v1352 = vadd.f32 0.0, %v1351
    %1353 = vdwg.mxu0
    %v1354 = vmul.f32 %v1331, %v279
    %v1355 = vmul.f32 %v1334, %v280
    %v1356 = vmul.f32 %v1337, %v281
    %v1357 = vmul.f32 %v1340, %v282
    %v1358 = vmul.f32 %v1343, %v283
    %v1359 = vmul.f32 %v1346, %v284
    %v1360 = vmul.f32 %v1349, %v285
    %v1361 = vmul.f32 %v1352, %v286
    %1362 = vmatpush.msra.mxu0 0.0
    %1363 = vmatpush.msra.mxu0 0.0
    %1364 = vmatpush.msra.mxu0 0.0
    %1365 = vmatpush.msra.mxu0 0.0
    %1366 = vmatpush.msra.mxu0 0.0
    %1367 = vmatpush.msra.mxu0 0.0
    %1368 = vmatpush.msra.mxu0 0.0
    %1369 = vmatpush.msra.mxu0 0.0
    %1370 = vmatpush.msra.mxu0 0.0
    %1371 = vmatpush.msra.mxu0 0.0
    %1372 = vmatpush.msra.mxu0 0.0
    %1373 = vmatpush.msra.mxu0 0.0
    %1374 = vmatpush.msra.mxu0 0.0
    %1375 = vmatpush.msra.mxu0 0.0
    %1376 = vmatpush.msra.mxu0 %v1311
    %1377 = vmatpush.msra.mxu0 %v1308
    %1378 = vmatmul.f32.gmra.mxu0 %v486
    %v1379 = vpop.f32.mrf.mxu0
    %v1380 = vadd.f32 0.0, %v1379
    %1381 = vmatmul.f32.gmra.mxu0 %v489
    %v1382 = vpop.f32.mrf.mxu0
    %v1383 = vadd.f32 0.0, %v1382
    %1384 = vmatmul.f32.gmra.mxu0 %v492
    %v1385 = vpop.f32.mrf.mxu0
    %v1386 = vadd.f32 0.0, %v1385
    %1387 = vmatmul.f32.gmra.mxu0 %v495
    %v1388 = vpop.f32.mrf.mxu0
    %v1389 = vadd.f32 0.0, %v1388
    %1390 = vmatmul.f32.gmra.mxu0 %v498
    %v1391 = vpop.f32.mrf.mxu0
    %v1392 = vadd.f32 0.0, %v1391
    %1393 = vmatmul.f32.gmra.mxu0 %v501
    %v1394 = vpop.f32.mrf.mxu0
    %v1395 = vadd.f32 0.0, %v1394
    %1396 = vmatmul.f32.gmra.mxu0 %v504
    %v1397 = vpop.f32.mrf.mxu0
    %v1398 = vadd.f32 0.0, %v1397
    %1399 = vmatmul.f32.gmra.mxu0 %v507
    %v1400 = vpop.f32.mrf.mxu0
    %v1401 = vadd.f32 0.0, %v1400
    %1402 = vdwg.mxu0
    %v1403 = vmul.f32 %v1380, %v279
    %v1404 = vmul.f32 %v1383, %v280
    %v1405 = vmul.f32 %v1386, %v281
    %v1406 = vmul.f32 %v1389, %v282
    %v1407 = vmul.f32 %v1392, %v283
    %v1408 = vmul.f32 %v1395, %v284
    %v1409 = vmul.f32 %v1398, %v285
    %v1410 = vmul.f32 %v1401, %v286
    %v1412 = vsel %vm338, %v1262, 0
    %v1415 = vsel %vm338, %v1265, 0
    %v1418 = vsel %vm338, %v1354, 0
    %v1421 = vsel %vm338, %v1355, 0
    %v1424 = vsel %vm338, %v1356, 0
    %v1427 = vsel %vm338, %v1357, 0
    %v1430 = vsel %vm338, %v1358, 0
    %v1433 = vsel %vm338, %v1359, 0
    %v1436 = vsel %vm338, %v1360, 0
    %v1439 = vsel %vm338, %v1361, 0
    %1441 = vmatpush.xpose.msra.mxu0 0.0
    %1442 = vmatpush.xpose.msra.mxu0 0.0
    %1443 = vmatpush.xpose.msra.mxu0 0.0
    %1444 = vmatpush.xpose.msra.mxu0 0.0
    %1445 = vmatpush.xpose.msra.mxu0 0.0
    %1446 = vmatpush.xpose.msra.mxu0 0.0
    %1447 = vmatpush.xpose.msra.mxu0 0.0
    %1448 = vmatpush.xpose.msra.mxu0 0.0
    %1449 = vmatpush.xpose.msra.mxu0 %v1439
    %1450 = vmatpush.xpose.msra.mxu0 %v1436
    %1451 = vmatpush.xpose.msra.mxu0 %v1433
    %1452 = vmatpush.xpose.msra.mxu0 %v1430
    %1453 = vmatpush.xpose.msra.mxu0 %v1427
    %1454 = vmatpush.xpose.msra.mxu0 %v1424
    %1455 = vmatpush.xpose.msra.mxu0 %v1421
    %1456 = vmatpush.xpose.msra.mxu0 %v1418
    %1457 = vmatmul.f32.gmra.mxu0 %v1412
    %v1458 = vpop.f32.mrf.mxu0
    %v1459 = vadd.f32 0.0, %v1458
    %1460 = vmatmul.f32.gmra.mxu0 %v1415
    %v1461 = vpop.f32.mrf.mxu0
    %v1462 = vadd.f32 0.0, %v1461
    %1463 = vdwg.mxu0
    %v1464 = vmul.f32 %v1459, 0.35355338
    %v1465 = vmul.f32 %v1462, 0.35355338
    %v1466 = vadd.f32 %v1464, %v287
    %v1467 = vadd.f32 %v1465, %v288
    %v1468 = vsel %vm664, %v1466, -inf
    %1469 = vmax.xlane.f32.xlu0 %v1468
    %v1470 = vpop.xlane.xlu0 %1469
    %v1471 = vsel %vm664, %v1467, -inf
    %1472 = vmax.xlane.f32.xlu0 %v1471
    %v1473 = vpop.xlane.xlu0 %1472
    %v1474 = vsub.f32 %v1466, %v1470
    %v1475 = vsub.f32 %v1467, %v1473
    %v1476 = vmul.f32 %v1474, 1.442695
    %v1477 = vpow.pop %v1476
    %v1478 = vmul.f32 %v1475, 1.442695
    %v1479 = vpow.pop %v1478
    %v1481 = vsel %vm664, %v1477, 0
    %v1484 = vsel %vm664, %v1479, 0
    %1486 = vmatpush.msra.mxu0 0.0
    %1487 = vmatpush.msra.mxu0 0.0
    %1488 = vmatpush.msra.mxu0 0.0
    %1489 = vmatpush.msra.mxu0 0.0
    %1490 = vmatpush.msra.mxu0 0.0
    %1491 = vmatpush.msra.mxu0 0.0
    %1492 = vmatpush.msra.mxu0 0.0
    %1493 = vmatpush.msra.mxu0 0.0
    %1494 = vmatpush.msra.mxu0 %v1410
    %1495 = vmatpush.msra.mxu0 %v1409
    %1496 = vmatpush.msra.mxu0 %v1408
    %1497 = vmatpush.msra.mxu0 %v1407
    %1498 = vmatpush.msra.mxu0 %v1406
    %1499 = vmatpush.msra.mxu0 %v1405
    %1500 = vmatpush.msra.mxu0 %v1404
    %1501 = vmatpush.msra.mxu0 %v1403
    %1502 = vmatmul.f32.gmra.mxu0 %v1481
    %v1503 = vpop.f32.mrf.mxu0
    %v1504 = vadd.f32 0.0, %v1503
    %1505 = vmatmul.f32.gmra.mxu0 %v1484
    %v1506 = vpop.f32.mrf.mxu0
    %v1507 = vadd.f32 0.0, %v1506
    %1508 = vdwg.mxu0
    %1509 = vmatpush.msra.mxu0 0.0
    %1510 = vmatpush.msra.mxu0 0.0
    %1511 = vmatpush.msra.mxu0 0.0
    %1512 = vmatpush.msra.mxu0 0.0
    %1513 = vmatpush.msra.mxu0 0.0
    %1514 = vmatpush.msra.mxu0 0.0
    %1515 = vmatpush.msra.mxu0 0.0
    %1516 = vmatpush.msra.mxu0 0.0
    %1517 = vmatpush.msra.mxu0 %v286
    %1518 = vmatpush.msra.mxu0 %v285
    %1519 = vmatpush.msra.mxu0 %v284
    %1520 = vmatpush.msra.mxu0 %v283
    %1521 = vmatpush.msra.mxu0 %v282
    %1522 = vmatpush.msra.mxu0 %v281
    %1523 = vmatpush.msra.mxu0 %v280
    %1524 = vmatpush.msra.mxu0 %v279
    %1525 = vmatmul.f32.gmra.mxu0 %v1481
    %v1526 = vpop.f32.mrf.mxu0
    %v1527 = vadd.f32 0.0, %v1526
    %1528 = vmatmul.f32.gmra.mxu0 %v1484
    %v1529 = vpop.f32.mrf.mxu0
    %v1530 = vadd.f32 0.0, %v1529
    %1531 = vdwg.mxu0
    %v1532 = vrcp.pop %v1527
    %v1533 = vrcp.pop %v1530
    %v1534 = vmul.f32 %v1504, %v1532
    %v1535 = vmul.f32 %v1507, %v1533
    %v1537 = vsel %vm338, %v1534, 0
    %v1540 = vsel %vm338, %v1535, 0
    %1542 = vmatpush.msra.mxu0 0.0
    %1543 = vmatpush.msra.mxu0 0.0
    %1544 = vmatpush.msra.mxu0 0.0
    %1545 = vmatpush.msra.mxu0 0.0
    %1546 = vmatpush.msra.mxu0 0.0
    %1547 = vmatpush.msra.mxu0 0.0
    %1548 = vmatpush.msra.mxu0 0.0
    %1549 = vmatpush.msra.mxu0 0.0
    %1550 = vmatpush.msra.mxu0 0.0
    %1551 = vmatpush.msra.mxu0 0.0
    %1552 = vmatpush.msra.mxu0 0.0
    %1553 = vmatpush.msra.mxu0 0.0
    %1554 = vmatpush.msra.mxu0 %v309
    %1555 = vmatpush.msra.mxu0 %v308
    %1556 = vmatpush.msra.mxu0 %v307
    %1557 = vmatpush.msra.mxu0 %v306
    %1558 = vmatmul.f32.gmra.mxu0 %v1537
    %v1559 = vpop.f32.mrf.mxu0
    %v1560 = vadd.f32 %v734, %v1559
    %1561 = vmatmul.f32.gmra.mxu0 %v1540
    %v1562 = vpop.f32.mrf.mxu0
    %v1563 = vadd.f32 %v734, %v1562
    %1564 = vdwg.mxu0
    %v1565 = vsel %vm338, %v1560, 0.0
    %1566 = vadd.xlane.f32.xlu0 %v1565
    %v1567 = vpop.xlane.xlu0 %1566
    %v1568 = vsel %vm338, %v1563, 0.0
    %1569 = vadd.xlane.f32.xlu0 %v1568
    %v1570 = vpop.xlane.xlu0 %1569
    %v1571 = vmul.f32 %v1567, %v351
    %v1572 = vmul.f32 %v1570, %v351
    %v1573 = vsub.f32 %v1560, %v1571
    %v1574 = vsub.f32 %v1563, %v1572
    %v1575 = vmul.f32 %v1573, %v1573
    %v1576 = vmul.f32 %v1574, %v1574
    %v1577 = vsel %vm338, %v1575, 0.0
    %1578 = vadd.xlane.f32.xlu0 %v1577
    %v1579 = vpop.xlane.xlu0 %1578
    %v1580 = vsel %vm338, %v1576, 0.0
    %1581 = vadd.xlane.f32.xlu0 %v1580
    %v1582 = vpop.xlane.xlu0 %1581
    %v1583 = vmul.f32 %v1579, %v351
    %v1584 = vmul.f32 %v1582, %v351
    %v1585 = vadd.f32 %v1583, 1e-05
    %v1586 = vadd.f32 %v1584, 1e-05
    %v1587 = vrsqrt.pop %v1585
    %v1588 = vmul.f32 %v1587, %v1585
    %v1589 = vmul.f32 %v1588, %v1587
    %v1590 = vmul.f32 0.5, %v1589
    %v1591 = vsub.f32 1.5, %v1590
    %v1592 = vmul.f32 %v1587, %v1591
    %vm1593 = vweird.f32 %v1585
    %vm1594 = vweird.f32 %v1587
    %vm1595 = vmor %vm1593, %vm1594
    %v1596 = vsel %vm1595, %v1587, %v1592
    %v1597 = vrsqrt.pop %v1586
    %v1598 = vmul.f32 %v1597, %v1586
    %v1599 = vmul.f32 %v1598, %v1597
    %v1600 = vmul.f32 0.5, %v1599
    %v1601 = vsub.f32 1.5, %v1600
    %v1602 = vmul.f32 %v1597, %v1601
    %vm1603 = vweird.f32 %v1586
    %vm1604 = vweird.f32 %v1597
    %vm1605 = vmor %vm1603, %vm1604
    %v1606 = vsel %vm1605, %v1597, %v1602
    %v1607 = vmul.f32 %v1573, %v1596
    %v1608 = vmul.f32 %v1574, %v1606
    %v1609 = vmul.f32 %v1607, %v810
    %v1610 = vmul.f32 %v1608, %v810
    %v1611 = vadd.f32 %v1609, %v815
    %v1612 = vadd.f32 %v1610, %v815
    %v1614 = vsel %vm338, %v1611, 0
    %v1617 = vsel %vm338, %v1612, 0
    %1619 = vmatpush.msra.mxu0 0.0
    %1620 = vmatpush.msra.mxu0 0.0
    %1621 = vmatpush.msra.mxu0 0.0
    %1622 = vmatpush.msra.mxu0 0.0
    %1623 = vmatpush.msra.mxu0 0.0
    %1624 = vmatpush.msra.mxu0 0.0
    %1625 = vmatpush.msra.mxu0 0.0
    %1626 = vmatpush.msra.mxu0 0.0
    %1627 = vmatpush.msra.mxu0 0.0
    %1628 = vmatpush.msra.mxu0 0.0
    %1629 = vmatpush.msra.mxu0 0.0
    %1630 = vmatpush.msra.mxu0 0.0
    %1631 = vmatpush.msra.mxu0 %v316
    %1632 = vmatpush.msra.mxu0 %v315
    %1633 = vmatpush.msra.mxu0 %v314
    %1634 = vmatpush.msra.mxu0 %v313
    %1635 = vmatmul.f32.gmra.mxu0 %v1614
    %v1636 = vpop.f32.mrf.mxu0
    %v1637 = vadd.f32 %v820, %v1636
    %1638 = vmatmul.f32.gmra.mxu0 %v1617
    %v1639 = vpop.f32.mrf.mxu0
    %v1640 = vadd.f32 %v820, %v1639
    %1641 = vdwg.mxu0
    %1642 = vmatpush.msra.mxu0 0.0
    %1643 = vmatpush.msra.mxu0 0.0
    %1644 = vmatpush.msra.mxu0 0.0
    %1645 = vmatpush.msra.mxu0 0.0
    %1646 = vmatpush.msra.mxu0 0.0
    %1647 = vmatpush.msra.mxu0 0.0
    %1648 = vmatpush.msra.mxu0 0.0
    %1649 = vmatpush.msra.mxu0 0.0
    %1650 = vmatpush.msra.mxu0 0.0
    %1651 = vmatpush.msra.mxu0 0.0
    %1652 = vmatpush.msra.mxu0 0.0
    %1653 = vmatpush.msra.mxu0 0.0
    %1654 = vmatpush.msra.mxu0 %v321
    %1655 = vmatpush.msra.mxu0 %v320
    %1656 = vmatpush.msra.mxu0 %v319
    %1657 = vmatpush.msra.mxu0 %v318
    %1658 = vmatmul.f32.gmra.mxu0 %v1614
    %v1659 = vpop.f32.mrf.mxu0
    %v1660 = vadd.f32 %v852, %v1659
    %1661 = vmatmul.f32.gmra.mxu0 %v1617
    %v1662 = vpop.f32.mrf.mxu0
    %v1663 = vadd.f32 %v852, %v1662
    %1664 = vdwg.mxu0
    %1665 = vmatpush.msra.mxu0 0.0
    %1666 = vmatpush.msra.mxu0 0.0
    %1667 = vmatpush.msra.mxu0 0.0
    %1668 = vmatpush.msra.mxu0 0.0
    %1669 = vmatpush.msra.mxu0 0.0
    %1670 = vmatpush.msra.mxu0 0.0
    %1671 = vmatpush.msra.mxu0 0.0
    %1672 = vmatpush.msra.mxu0 0.0
    %1673 = vmatpush.msra.mxu0 0.0
    %1674 = vmatpush.msra.mxu0 0.0
    %1675 = vmatpush.msra.mxu0 0.0
    %1676 = vmatpush.msra.mxu0 0.0
    %1677 = vmatpush.msra.mxu0 %v326
    %1678 = vmatpush.msra.mxu0 %v325
    %1679 = vmatpush.msra.mxu0 %v324
    %1680 = vmatpush.msra.mxu0 %v323
    %1681 = vmatmul.f32.gmra.mxu0 %v1614
    %v1682 = vpop.f32.mrf.mxu0
    %v1683 = vadd.f32 %v878, %v1682
    %1684 = vmatmul.f32.gmra.mxu0 %v1617
    %v1685 = vpop.f32.mrf.mxu0
    %v1686 = vadd.f32 %v878, %v1685
    %1687 = vdwg.mxu0
    %1688 = vmatpush.msra.mxu0 0.0
    %1689 = vmatpush.msra.mxu0 0.0
    %1690 = vmatpush.msra.mxu0 0.0
    %1691 = vmatpush.msra.mxu0 0.0
    %1692 = vmatpush.msra.mxu0 0.0
    %1693 = vmatpush.msra.mxu0 0.0
    %1694 = vmatpush.msra.mxu0 0.0
    %1695 = vmatpush.msra.mxu0 0.0
    %1696 = vmatpush.msra.mxu0 0.0
    %1697 = vmatpush.msra.mxu0 0.0
    %1698 = vmatpush.msra.mxu0 0.0
    %1699 = vmatpush.msra.mxu0 0.0
    %1700 = vmatpush.msra.mxu0 0.0
    %1701 = vmatpush.msra.mxu0 0.0
    %1702 = vmatpush.msra.mxu0 %v1663
    %1703 = vmatpush.msra.mxu0 %v1660
    %1704 = vmatmul.f32.gmra.mxu0 %v486
    %v1705 = vpop.f32.mrf.mxu0
    %v1706 = vadd.f32 0.0, %v1705
    %1707 = vmatmul.f32.gmra.mxu0 %v489
    %v1708 = vpop.f32.mrf.mxu0
    %v1709 = vadd.f32 0.0, %v1708
    %1710 = vmatmul.f32.gmra.mxu0 %v492
    %v1711 = vpop.f32.mrf.mxu0
    %v1712 = vadd.f32 0.0, %v1711
    %1713 = vmatmul.f32.gmra.mxu0 %v495
    %v1714 = vpop.f32.mrf.mxu0
    %v1715 = vadd.f32 0.0, %v1714
    %1716 = vmatmul.f32.gmra.mxu0 %v498
    %v1717 = vpop.f32.mrf.mxu0
    %v1718 = vadd.f32 0.0, %v1717
    %1719 = vmatmul.f32.gmra.mxu0 %v501
    %v1720 = vpop.f32.mrf.mxu0
    %v1721 = vadd.f32 0.0, %v1720
    %1722 = vmatmul.f32.gmra.mxu0 %v504
    %v1723 = vpop.f32.mrf.mxu0
    %v1724 = vadd.f32 0.0, %v1723
    %1725 = vmatmul.f32.gmra.mxu0 %v507
    %v1726 = vpop.f32.mrf.mxu0
    %v1727 = vadd.f32 0.0, %v1726
    %1728 = vdwg.mxu0
    %v1729 = vmul.f32 %v1706, %v279
    %v1730 = vmul.f32 %v1709, %v280
    %v1731 = vmul.f32 %v1712, %v281
    %v1732 = vmul.f32 %v1715, %v282
    %v1733 = vmul.f32 %v1718, %v283
    %v1734 = vmul.f32 %v1721, %v284
    %v1735 = vmul.f32 %v1724, %v285
    %v1736 = vmul.f32 %v1727, %v286
    %1737 = vmatpush.msra.mxu0 0.0
    %1738 = vmatpush.msra.mxu0 0.0
    %1739 = vmatpush.msra.mxu0 0.0
    %1740 = vmatpush.msra.mxu0 0.0
    %1741 = vmatpush.msra.mxu0 0.0
    %1742 = vmatpush.msra.mxu0 0.0
    %1743 = vmatpush.msra.mxu0 0.0
    %1744 = vmatpush.msra.mxu0 0.0
    %1745 = vmatpush.msra.mxu0 0.0
    %1746 = vmatpush.msra.mxu0 0.0
    %1747 = vmatpush.msra.mxu0 0.0
    %1748 = vmatpush.msra.mxu0 0.0
    %1749 = vmatpush.msra.mxu0 0.0
    %1750 = vmatpush.msra.mxu0 0.0
    %1751 = vmatpush.msra.mxu0 %v1686
    %1752 = vmatpush.msra.mxu0 %v1683
    %1753 = vmatmul.f32.gmra.mxu0 %v486
    %v1754 = vpop.f32.mrf.mxu0
    %v1755 = vadd.f32 0.0, %v1754
    %1756 = vmatmul.f32.gmra.mxu0 %v489
    %v1757 = vpop.f32.mrf.mxu0
    %v1758 = vadd.f32 0.0, %v1757
    %1759 = vmatmul.f32.gmra.mxu0 %v492
    %v1760 = vpop.f32.mrf.mxu0
    %v1761 = vadd.f32 0.0, %v1760
    %1762 = vmatmul.f32.gmra.mxu0 %v495
    %v1763 = vpop.f32.mrf.mxu0
    %v1764 = vadd.f32 0.0, %v1763
    %1765 = vmatmul.f32.gmra.mxu0 %v498
    %v1766 = vpop.f32.mrf.mxu0
    %v1767 = vadd.f32 0.0, %v1766
    %1768 = vmatmul.f32.gmra.mxu0 %v501
    %v1769 = vpop.f32.mrf.mxu0
    %v1770 = vadd.f32 0.0, %v1769
    %1771 = vmatmul.f32.gmra.mxu0 %v504
    %v1772 = vpop.f32.mrf.mxu0
    %v1773 = vadd.f32 0.0, %v1772
    %1774 = vmatmul.f32.gmra.mxu0 %v507
    %v1775 = vpop.f32.mrf.mxu0
    %v1776 = vadd.f32 0.0, %v1775
    %1777 = vdwg.mxu0
    %v1778 = vmul.f32 %v1755, %v279
    %v1779 = vmul.f32 %v1758, %v280
    %v1780 = vmul.f32 %v1761, %v281
    %v1781 = vmul.f32 %v1764, %v282
    %v1782 = vmul.f32 %v1767, %v283
    %v1783 = vmul.f32 %v1770, %v284
    %v1784 = vmul.f32 %v1773, %v285
    %v1785 = vmul.f32 %v1776, %v286
    %v1787 = vsel %vm338, %v1637, 0
    %v1790 = vsel %vm338, %v1640, 0
    %v1793 = vsel %vm338, %v1729, 0
    %v1796 = vsel %vm338, %v1730, 0
    %v1799 = vsel %vm338, %v1731, 0
    %v1802 = vsel %vm338, %v1732, 0
    %v1805 = vsel %vm338, %v1733, 0
    %v1808 = vsel %vm338, %v1734, 0
    %v1811 = vsel %vm338, %v1735, 0
    %v1814 = vsel %vm338, %v1736, 0
    %1816 = vmatpush.xpose.msra.mxu0 0.0
    %1817 = vmatpush.xpose.msra.mxu0 0.0
    %1818 = vmatpush.xpose.msra.mxu0 0.0
    %1819 = vmatpush.xpose.msra.mxu0 0.0
    %1820 = vmatpush.xpose.msra.mxu0 0.0
    %1821 = vmatpush.xpose.msra.mxu0 0.0
    %1822 = vmatpush.xpose.msra.mxu0 0.0
    %1823 = vmatpush.xpose.msra.mxu0 0.0
    %1824 = vmatpush.xpose.msra.mxu0 %v1814
    %1825 = vmatpush.xpose.msra.mxu0 %v1811
    %1826 = vmatpush.xpose.msra.mxu0 %v1808
    %1827 = vmatpush.xpose.msra.mxu0 %v1805
    %1828 = vmatpush.xpose.msra.mxu0 %v1802
    %1829 = vmatpush.xpose.msra.mxu0 %v1799
    %1830 = vmatpush.xpose.msra.mxu0 %v1796
    %1831 = vmatpush.xpose.msra.mxu0 %v1793
    %1832 = vmatmul.f32.gmra.mxu0 %v1787
    %v1833 = vpop.f32.mrf.mxu0
    %v1834 = vadd.f32 0.0, %v1833
    %1835 = vmatmul.f32.gmra.mxu0 %v1790
    %v1836 = vpop.f32.mrf.mxu0
    %v1837 = vadd.f32 0.0, %v1836
    %1838 = vdwg.mxu0
    %v1839 = vmul.f32 %v1834, 0.35355338
    %v1840 = vmul.f32 %v1837, 0.35355338
    %v1841 = vadd.f32 %v1839, %v287
    %v1842 = vadd.f32 %v1840, %v288
    %v1843 = vsel %vm664, %v1841, -inf
    %1844 = vmax.xlane.f32.xlu0 %v1843
    %v1845 = vpop.xlane.xlu0 %1844
    %v1846 = vsel %vm664, %v1842, -inf
    %1847 = vmax.xlane.f32.xlu0 %v1846
    %v1848 = vpop.xlane.xlu0 %1847
    %v1849 = vsub.f32 %v1841, %v1845
    %v1850 = vsub.f32 %v1842, %v1848
    %v1851 = vmul.f32 %v1849, 1.442695
    %v1852 = vpow.pop %v1851
    %v1853 = vmul.f32 %v1850, 1.442695
    %v1854 = vpow.pop %v1853
    %v1856 = vsel %vm664, %v1852, 0
    %v1859 = vsel %vm664, %v1854, 0
    %1861 = vmatpush.msra.mxu0 0.0
    %1862 = vmatpush.msra.mxu0 0.0
    %1863 = vmatpush.msra.mxu0 0.0
    %1864 = vmatpush.msra.mxu0 0.0
    %1865 = vmatpush.msra.mxu0 0.0
    %1866 = vmatpush.msra.mxu0 0.0
    %1867 = vmatpush.msra.mxu0 0.0
    %1868 = vmatpush.msra.mxu0 0.0
    %1869 = vmatpush.msra.mxu0 %v1785
    %1870 = vmatpush.msra.mxu0 %v1784
    %1871 = vmatpush.msra.mxu0 %v1783
    %1872 = vmatpush.msra.mxu0 %v1782
    %1873 = vmatpush.msra.mxu0 %v1781
    %1874 = vmatpush.msra.mxu0 %v1780
    %1875 = vmatpush.msra.mxu0 %v1779
    %1876 = vmatpush.msra.mxu0 %v1778
    %1877 = vmatmul.f32.gmra.mxu0 %v1856
    %v1878 = vpop.f32.mrf.mxu0
    %v1879 = vadd.f32 0.0, %v1878
    %1880 = vmatmul.f32.gmra.mxu0 %v1859
    %v1881 = vpop.f32.mrf.mxu0
    %v1882 = vadd.f32 0.0, %v1881
    %1883 = vdwg.mxu0
    %1884 = vmatpush.msra.mxu0 0.0
    %1885 = vmatpush.msra.mxu0 0.0
    %1886 = vmatpush.msra.mxu0 0.0
    %1887 = vmatpush.msra.mxu0 0.0
    %1888 = vmatpush.msra.mxu0 0.0
    %1889 = vmatpush.msra.mxu0 0.0
    %1890 = vmatpush.msra.mxu0 0.0
    %1891 = vmatpush.msra.mxu0 0.0
    %1892 = vmatpush.msra.mxu0 %v286
    %1893 = vmatpush.msra.mxu0 %v285
    %1894 = vmatpush.msra.mxu0 %v284
    %1895 = vmatpush.msra.mxu0 %v283
    %1896 = vmatpush.msra.mxu0 %v282
    %1897 = vmatpush.msra.mxu0 %v281
    %1898 = vmatpush.msra.mxu0 %v280
    %1899 = vmatpush.msra.mxu0 %v279
    %1900 = vmatmul.f32.gmra.mxu0 %v1856
    %v1901 = vpop.f32.mrf.mxu0
    %v1902 = vadd.f32 0.0, %v1901
    %1903 = vmatmul.f32.gmra.mxu0 %v1859
    %v1904 = vpop.f32.mrf.mxu0
    %v1905 = vadd.f32 0.0, %v1904
    %1906 = vdwg.mxu0
    %v1907 = vrcp.pop %v1902
    %v1908 = vrcp.pop %v1905
    %v1909 = vmul.f32 %v1879, %v1907
    %v1910 = vmul.f32 %v1882, %v1908
    %v1912 = vsel %vm338, %v1909, 0
    %v1915 = vsel %vm338, %v1910, 0
    %1917 = vmatpush.msra.mxu0 0.0
    %1918 = vmatpush.msra.mxu0 0.0
    %1919 = vmatpush.msra.mxu0 0.0
    %1920 = vmatpush.msra.mxu0 0.0
    %1921 = vmatpush.msra.mxu0 0.0
    %1922 = vmatpush.msra.mxu0 0.0
    %1923 = vmatpush.msra.mxu0 0.0
    %1924 = vmatpush.msra.mxu0 0.0
    %1925 = vmatpush.msra.mxu0 0.0
    %1926 = vmatpush.msra.mxu0 0.0
    %1927 = vmatpush.msra.mxu0 0.0
    %1928 = vmatpush.msra.mxu0 0.0
    %1929 = vmatpush.msra.mxu0 %v331
    %1930 = vmatpush.msra.mxu0 %v330
    %1931 = vmatpush.msra.mxu0 %v329
    %1932 = vmatpush.msra.mxu0 %v328
    %1933 = vmatmul.f32.gmra.mxu0 %v1912
    %v1934 = vpop.f32.mrf.mxu0
    %v1935 = vadd.f32 %v1127, %v1934
    %1936 = vmatmul.f32.gmra.mxu0 %v1915
    %v1937 = vpop.f32.mrf.mxu0
    %v1938 = vadd.f32 %v1127, %v1937
    %1939 = vdwg.mxu0
    %v1941 = vsel %vm338, %v1935, 0
    %v1944 = vsel %vm338, %v1938, 0
    %1946 = vmatpush.msra.mxu0 0.0
    %1947 = vmatpush.msra.mxu0 0.0
    %1948 = vmatpush.msra.mxu0 0.0
    %1949 = vmatpush.msra.mxu0 0.0
    %1950 = vmatpush.msra.mxu0 0.0
    %1951 = vmatpush.msra.mxu0 0.0
    %1952 = vmatpush.msra.mxu0 0.0
    %1953 = vmatpush.msra.mxu0 0.0
    %1954 = vmatpush.msra.mxu0 0.0
    %1955 = vmatpush.msra.mxu0 0.0
    %1956 = vmatpush.msra.mxu0 0.0
    %1957 = vmatpush.msra.mxu0 0.0
    %1958 = vmatpush.msra.mxu0 %v336
    %1959 = vmatpush.msra.mxu0 %v335
    %1960 = vmatpush.msra.mxu0 %v334
    %1961 = vmatpush.msra.mxu0 %v333
    %1962 = vmatmul.f32.gmra.mxu0 %v1941
    %v1963 = vpop.f32.mrf.mxu0
    %v1964 = vadd.f32 %v1159, %v1963
    %1965 = vmatmul.f32.gmra.mxu0 %v1944
    %v1966 = vpop.f32.mrf.mxu0
    %v1967 = vadd.f32 %v1159, %v1966
    %1968 = vdwg.mxu0
    %s1969 = scalar_lea.vmem %s11, 1
    %v1970 = vld [vmem:[%s1969] sm:$0x1]
    %s1971 = scalar_lea.vmem %s13, 1
    %v1972 = vld [vmem:[%s1971] sm:$0x1]
    %s1973 = scalar_lea.vmem %s15, 32
    %v1974 = vld [vmem:[%s1973] sm:$0xff]
    %v1975 = vld [vmem:[%s1973 + $0x8] sm:$0xff]
    %v1976 = vld [vmem:[%s1973 + $0x10] sm:$0xff]
    %v1977 = vld [vmem:[%s1973 + $0x18] sm:$0xff]
    %s1978 = scalar_lea.vmem %s17, 1
    %v1979 = vld [vmem:[%s1978] sm:$0x1]
    %s1980 = scalar_lea.vmem %s19, 32
    %v1981 = vld [vmem:[%s1980] sm:$0xff]
    %v1982 = vld [vmem:[%s1980 + $0x8] sm:$0xff]
    %v1983 = vld [vmem:[%s1980 + $0x10] sm:$0xff]
    %v1984 = vld [vmem:[%s1980 + $0x18] sm:$0xff]
    %s1985 = scalar_lea.vmem %s21, 1
    %v1986 = vld [vmem:[%s1985] sm:$0x1]
    %s1987 = scalar_lea.vmem [#allocation2], 32
    %v1988 = vld [vmem:[%s1987] sm:$0xff]
    %v1989 = vld [vmem:[%s1987 + $0x8] sm:$0xff]
    %v1990 = vld [vmem:[%s1987 + $0x10] sm:$0xff]
    %v1991 = vld [vmem:[%s1987 + $0x18] sm:$0xff]
    %s1992 = scalar_lea.vmem %s25, 1
    %v1993 = vld [vmem:[%s1992] sm:$0x1]
    %s1994 = scalar_lea.vmem [#allocation5], 32
    %v1995 = vld [vmem:[%s1994] sm:$0xff]
    %v1996 = vld [vmem:[%s1994 + $0x8] sm:$0xff]
    %v1997 = vld [vmem:[%s1994 + $0x10] sm:$0xff]
    %v1998 = vld [vmem:[%s1994 + $0x18] sm:$0xff]
    %s1999 = scalar_lea.vmem %s29, 1
    %v2000 = vld [vmem:[%s1999] sm:$0x1]
    %s2001 = scalar_lea.vmem %s31, 1
    %v2002 = vld [vmem:[%s2001] sm:$0x1]
    %s2003 = scalar_lea.vmem %s33, 1
    %v2004 = vld [vmem:[%s2003] sm:$0x1]
    %s2005 = scalar_lea.vmem [#allocation7], 32
    %v2006 = vld [vmem:[%s2005] sm:$0xff]
    %v2007 = vld [vmem:[%s2005 + $0x8] sm:$0xff]
    %v2008 = vld [vmem:[%s2005 + $0x10] sm:$0xff]
    %v2009 = vld [vmem:[%s2005 + $0x18] sm:$0xff]
    %s2010 = scalar_lea.vmem %s37, 1
    %v2011 = vld [vmem:[%s2010] sm:$0x1]
    %s2012 = scalar_lea.vmem [#allocation8], 32
    %v2013 = vld [vmem:[%s2012] sm:$0xff]
    %v2014 = vld [vmem:[%s2012 + $0x8] sm:$0xff]
    %v2015 = vld [vmem:[%s2012 + $0x10] sm:$0xff]
    %v2016 = vld [vmem:[%s2012 + $0x18] sm:$0xff]
    %s2017 = scalar_lea.vmem %s41, 1
    %v2018 = vld [vmem:[%s2017] sm:$0x1]
    %s2019 = scalar_lea.vmem [#allocation10], 32
    %v2020 = vld [vmem:[%s2019] sm:$0xff]
    %v2021 = vld [vmem:[%s2019 + $0x8] sm:$0xff]
    %v2022 = vld [vmem:[%s2019 + $0x10] sm:$0xff]
    %v2023 = vld [vmem:[%s2019 + $0x18] sm:$0xff]
    %s2024 = scalar_lea.vmem %s45, 1
    %v2025 = vld [vmem:[%s2024] sm:$0x1]
    %s2026 = scalar_lea.vmem [#allocation11], 32
    %v2027 = vld [vmem:[%s2026] sm:$0xff]
    %v2028 = vld [vmem:[%s2026 + $0x8] sm:$0xff]
    %v2029 = vld [vmem:[%s2026 + $0x10] sm:$0xff]
    %v2030 = vld [vmem:[%s2026 + $0x18] sm:$0xff]
    %s2031 = scalar_lea.vmem %s49, 1
    %v2032 = vld [vmem:[%s2031] sm:$0x1]
    %s2033 = scalar_lea.vmem [#allocation13], 32
    %v2034 = vld [vmem:[%s2033] sm:$0xff]
    %v2035 = vld [vmem:[%s2033 + $0x8] sm:$0xff]
    %v2036 = vld [vmem:[%s2033 + $0x10] sm:$0xff]
    %v2037 = vld [vmem:[%s2033 + $0x18] sm:$0xff]
    %s2038 = scalar_lea.vmem [#allocation14], 1
    %v2039 = vld [vmem:[%s2038] sm:$0x1]
    %v2040 = vsel %vm338, %v1964, 0.0
    %2041 = vadd.xlane.f32.xlu0 %v2040
    %v2042 = vpop.xlane.xlu0 %2041
    %v2043 = vsel %vm338, %v1967, 0.0
    %2044 = vadd.xlane.f32.xlu0 %v2043
    %v2045 = vpop.xlane.xlu0 %2044
    %v2046 = vmul.f32 %v2042, %v351
    %v2047 = vmul.f32 %v2045, %v351
    %v2048 = vsub.f32 %v1964, %v2046
    %v2049 = vsub.f32 %v1967, %v2047
    %v2050 = vmul.f32 %v2048, %v2048
    %v2051 = vmul.f32 %v2049, %v2049
    %v2052 = vsel %vm338, %v2050, 0.0
    %2053 = vadd.xlane.f32.xlu0 %v2052
    %v2054 = vpop.xlane.xlu0 %2053
    %v2055 = vsel %vm338, %v2051, 0.0
    %2056 = vadd.xlane.f32.xlu0 %v2055
    %v2057 = vpop.xlane.xlu0 %2056
    %v2058 = vmul.f32 %v2054, %v351
    %v2059 = vmul.f32 %v2057, %v351
    %v2060 = vadd.f32 %v2058, 1e-05
    %v2061 = vadd.f32 %v2059, 1e-05
    %v2062 = vrsqrt.pop %v2060
    %v2063 = vmul.f32 %v2062, %v2060
    %v2064 = vmul.f32 %v2063, %v2062
    %v2065 = vmul.f32 0.5, %v2064
    %v2066 = vsub.f32 1.5, %v2065
    %v2067 = vmul.f32 %v2062, %v2066
    %vm2068 = vweird.f32 %v2060
    %vm2069 = vweird.f32 %v2062
    %vm2070 = vmor %vm2068, %vm2069
    %v2071 = vsel %vm2070, %v2062, %v2067
    %v2072 = vrsqrt.pop %v2061
    %v2073 = vmul.f32 %v2072, %v2061
    %v2074 = vmul.f32 %v2073, %v2072
    %v2075 = vmul.f32 0.5, %v2074
    %v2076 = vsub.f32 1.5, %v2075
    %v2077 = vmul.f32 %v2072, %v2076
    %vm2078 = vweird.f32 %v2061
    %vm2079 = vweird.f32 %v2072
    %vm2080 = vmor %vm2078, %vm2079
    %v2081 = vsel %vm2080, %v2072, %v2077
    %v2082 = vmul.f32 %v2048, %v2071
    %v2083 = vmul.f32 %v2049, %v2081
    %v2085 = vperm.slane %v1970, 0
    %v2087 = vmul.f32 %v2082, %v2085
    %v2088 = vmul.f32 %v2083, %v2085
    %v2090 = vperm.slane %v1972, 0
    %v2092 = vadd.f32 %v2087, %v2090
    %v2093 = vadd.f32 %v2088, %v2090
    %v2095 = vperm.slane %v1979, 0
    %v2098 = vsel %vm338, %v2092, 0
    %v2101 = vsel %vm338, %v2093, 0
    %2103 = vmatpush.msra.mxu0 0.0
    %2104 = vmatpush.msra.mxu0 0.0
    %2105 = vmatpush.msra.mxu0 0.0
    %2106 = vmatpush.msra.mxu0 0.0
    %2107 = vmatpush.msra.mxu0 0.0
    %2108 = vmatpush.msra.mxu0 0.0
    %2109 = vmatpush.msra.mxu0 0.0
    %2110 = vmatpush.msra.mxu0 0.0
    %2111 = vmatpush.msra.mxu0 0.0
    %2112 = vmatpush.msra.mxu0 0.0
    %2113 = vmatpush.msra.mxu0 0.0
    %2114 = vmatpush.msra.mxu0 0.0
    %2115 = vmatpush.msra.mxu0 %v1977
    %2116 = vmatpush.msra.mxu0 %v1976
    %2117 = vmatpush.msra.mxu0 %v1975
    %2118 = vmatpush.msra.mxu0 %v1974
    %2119 = vmatmul.f32.gmra.mxu0 %v2098
    %v2120 = vpop.f32.mrf.mxu0
    %v2121 = vadd.f32 %v2095, %v2120
    %2122 = vmatmul.f32.gmra.mxu0 %v2101
    %v2123 = vpop.f32.mrf.mxu0
    %v2124 = vadd.f32 %v2095, %v2123
    %2125 = vdwg.mxu0
    %v2127 = vperm.slane %v1986, 0
    %2129 = vmatpush.msra.mxu0 0.0
    %2130 = vmatpush.msra.mxu0 0.0
    %2131 = vmatpush.msra.mxu0 0.0
    %2132 = vmatpush.msra.mxu0 0.0
    %2133 = vmatpush.msra.mxu0 0.0
    %2134 = vmatpush.msra.mxu0 0.0
    %2135 = vmatpush.msra.mxu0 0.0
    %2136 = vmatpush.msra.mxu0 0.0
    %2137 = vmatpush.msra.mxu0 0.0
    %2138 = vmatpush.msra.mxu0 0.0
    %2139 = vmatpush.msra.mxu0 0.0
    %2140 = vmatpush.msra.mxu0 0.0
    %2141 = vmatpush.msra.mxu0 %v1984
    %2142 = vmatpush.msra.mxu0 %v1983
    %2143 = vmatpush.msra.mxu0 %v1982
    %2144 = vmatpush.msra.mxu0 %v1981
    %2145 = vmatmul.f32.gmra.mxu0 %v2098
    %v2146 = vpop.f32.mrf.mxu0
    %v2147 = vadd.f32 %v2127, %v2146
    %2148 = vmatmul.f32.gmra.mxu0 %v2101
    %v2149 = vpop.f32.mrf.mxu0
    %v2150 = vadd.f32 %v2127, %v2149
    %2151 = vdwg.mxu0
    %v2153 = vperm.slane %v1993, 0
    %2155 = vmatpush.msra.mxu0 0.0
    %2156 = vmatpush.msra.mxu0 0.0
    %2157 = vmatpush.msra.mxu0 0.0
    %2158 = vmatpush.msra.mxu0 0.0
    %2159 = vmatpush.msra.mxu0 0.0
    %2160 = vmatpush.msra.mxu0 0.0
    %2161 = vmatpush.msra.mxu0 0.0
    %2162 = vmatpush.msra.mxu0 0.0
    %2163 = vmatpush.msra.mxu0 0.0
    %2164 = vmatpush.msra.mxu0 0.0
    %2165 = vmatpush.msra.mxu0 0.0
    %2166 = vmatpush.msra.mxu0 0.0
    %2167 = vmatpush.msra.mxu0 %v1991
    %2168 = vmatpush.msra.mxu0 %v1990
    %2169 = vmatpush.msra.mxu0 %v1989
    %2170 = vmatpush.msra.mxu0 %v1988
    %2171 = vmatmul.f32.gmra.mxu0 %v2098
    %v2172 = vpop.f32.mrf.mxu0
    %v2173 = vadd.f32 %v2153, %v2172
    %2174 = vmatmul.f32.gmra.mxu0 %v2101
    %v2175 = vpop.f32.mrf.mxu0
    %v2176 = vadd.f32 %v2153, %v2175
    %2177 = vdwg.mxu0
    %2178 = vmatpush.msra.mxu0 0.0
    %2179 = vmatpush.msra.mxu0 0.0
    %2180 = vmatpush.msra.mxu0 0.0
    %2181 = vmatpush.msra.mxu0 0.0
    %2182 = vmatpush.msra.mxu0 0.0
    %2183 = vmatpush.msra.mxu0 0.0
    %2184 = vmatpush.msra.mxu0 0.0
    %2185 = vmatpush.msra.mxu0 0.0
    %2186 = vmatpush.msra.mxu0 0.0
    %2187 = vmatpush.msra.mxu0 0.0
    %2188 = vmatpush.msra.mxu0 0.0
    %2189 = vmatpush.msra.mxu0 0.0
    %2190 = vmatpush.msra.mxu0 0.0
    %2191 = vmatpush.msra.mxu0 0.0
    %2192 = vmatpush.msra.mxu0 %v2150
    %2193 = vmatpush.msra.mxu0 %v2147
    %2194 = vmatmul.f32.gmra.mxu0 %v486
    %v2195 = vpop.f32.mrf.mxu0
    %v2196 = vadd.f32 0.0, %v2195
    %2197 = vmatmul.f32.gmra.mxu0 %v489
    %v2198 = vpop.f32.mrf.mxu0
    %v2199 = vadd.f32 0.0, %v2198
    %2200 = vmatmul.f32.gmra.mxu0 %v492
    %v2201 = vpop.f32.mrf.mxu0
    %v2202 = vadd.f32 0.0, %v2201
    %2203 = vmatmul.f32.gmra.mxu0 %v495
    %v2204 = vpop.f32.mrf.mxu0
    %v2205 = vadd.f32 0.0, %v2204
    %2206 = vmatmul.f32.gmra.mxu0 %v498
    %v2207 = vpop.f32.mrf.mxu0
    %v2208 = vadd.f32 0.0, %v2207
    %2209 = vmatmul.f32.gmra.mxu0 %v501
    %v2210 = vpop.f32.mrf.mxu0
    %v2211 = vadd.f32 0.0, %v2210
    %2212 = vmatmul.f32.gmra.mxu0 %v504
    %v2213 = vpop.f32.mrf.mxu0
    %v2214 = vadd.f32 0.0, %v2213
    %2215 = vmatmul.f32.gmra.mxu0 %v507
    %v2216 = vpop.f32.mrf.mxu0
    %v2217 = vadd.f32 0.0, %v2216
    %2218 = vdwg.mxu0
    %v2219 = vmul.f32 %v2196, %v279
    %v2220 = vmul.f32 %v2199, %v280
    %v2221 = vmul.f32 %v2202, %v281
    %v2222 = vmul.f32 %v2205, %v282
    %v2223 = vmul.f32 %v2208, %v283
    %v2224 = vmul.f32 %v2211, %v284
    %v2225 = vmul.f32 %v2214, %v285
    %v2226 = vmul.f32 %v2217, %v286
    %2227 = vmatpush.msra.mxu0 0.0
    %2228 = vmatpush.msra.mxu0 0.0
    %2229 = vmatpush.msra.mxu0 0.0
    %2230 = vmatpush.msra.mxu0 0.0
    %2231 = vmatpush.msra.mxu0 0.0
    %2232 = vmatpush.msra.mxu0 0.0
    %2233 = vmatpush.msra.mxu0 0.0
    %2234 = vmatpush.msra.mxu0 0.0
    %2235 = vmatpush.msra.mxu0 0.0
    %2236 = vmatpush.msra.mxu0 0.0
    %2237 = vmatpush.msra.mxu0 0.0
    %2238 = vmatpush.msra.mxu0 0.0
    %2239 = vmatpush.msra.mxu0 0.0
    %2240 = vmatpush.msra.mxu0 0.0
    %2241 = vmatpush.msra.mxu0 %v2176
    %2242 = vmatpush.msra.mxu0 %v2173
    %2243 = vmatmul.f32.gmra.mxu0 %v486
    %v2244 = vpop.f32.mrf.mxu0
    %v2245 = vadd.f32 0.0, %v2244
    %2246 = vmatmul.f32.gmra.mxu0 %v489
    %v2247 = vpop.f32.mrf.mxu0
    %v2248 = vadd.f32 0.0, %v2247
    %2249 = vmatmul.f32.gmra.mxu0 %v492
    %v2250 = vpop.f32.mrf.mxu0
    %v2251 = vadd.f32 0.0, %v2250
    %2252 = vmatmul.f32.gmra.mxu0 %v495
    %v2253 = vpop.f32.mrf.mxu0
    %v2254 = vadd.f32 0.0, %v2253
    %2255 = vmatmul.f32.gmra.mxu0 %v498
    %v2256 = vpop.f32.mrf.mxu0
    %v2257 = vadd.f32 0.0, %v2256
    %2258 = vmatmul.f32.gmra.mxu0 %v501
    %v2259 = vpop.f32.mrf.mxu0
    %v2260 = vadd.f32 0.0, %v2259
    %2261 = vmatmul.f32.gmra.mxu0 %v504
    %v2262 = vpop.f32.mrf.mxu0
    %v2263 = vadd.f32 0.0, %v2262
    %2264 = vmatmul.f32.gmra.mxu0 %v507
    %v2265 = vpop.f32.mrf.mxu0
    %v2266 = vadd.f32 0.0, %v2265
    %2267 = vdwg.mxu0
    %v2268 = vmul.f32 %v2245, %v279
    %v2269 = vmul.f32 %v2248, %v280
    %v2270 = vmul.f32 %v2251, %v281
    %v2271 = vmul.f32 %v2254, %v282
    %v2272 = vmul.f32 %v2257, %v283
    %v2273 = vmul.f32 %v2260, %v284
    %v2274 = vmul.f32 %v2263, %v285
    %v2275 = vmul.f32 %v2266, %v286
    %v2277 = vsel %vm338, %v2121, 0
    %v2280 = vsel %vm338, %v2124, 0
    %v2283 = vsel %vm338, %v2219, 0
    %v2286 = vsel %vm338, %v2220, 0
    %v2289 = vsel %vm338, %v2221, 0
    %v2292 = vsel %vm338, %v2222, 0
    %v2295 = vsel %vm338, %v2223, 0
    %v2298 = vsel %vm338, %v2224, 0
    %v2301 = vsel %vm338, %v2225, 0
    %v2304 = vsel %vm338, %v2226, 0
    %2306 = vmatpush.xpose.msra.mxu0 0.0
    %2307 = vmatpush.xpose.msra.mxu0 0.0
    %2308 = vmatpush.xpose.msra.mxu0 0.0
    %2309 = vmatpush.xpose.msra.mxu0 0.0
    %2310 = vmatpush.xpose.msra.mxu0 0.0
    %2311 = vmatpush.xpose.msra.mxu0 0.0
    %2312 = vmatpush.xpose.msra.mxu0 0.0
    %2313 = vmatpush.xpose.msra.mxu0 0.0
    %2314 = vmatpush.xpose.msra.mxu0 %v2304
    %2315 = vmatpush.xpose.msra.mxu0 %v2301
    %2316 = vmatpush.xpose.msra.mxu0 %v2298
    %2317 = vmatpush.xpose.msra.mxu0 %v2295
    %2318 = vmatpush.xpose.msra.mxu0 %v2292
    %2319 = vmatpush.xpose.msra.mxu0 %v2289
    %2320 = vmatpush.xpose.msra.mxu0 %v2286
    %2321 = vmatpush.xpose.msra.mxu0 %v2283
    %2322 = vmatmul.f32.gmra.mxu0 %v2277
    %v2323 = vpop.f32.mrf.mxu0
    %v2324 = vadd.f32 0.0, %v2323
    %2325 = vmatmul.f32.gmra.mxu0 %v2280
    %v2326 = vpop.f32.mrf.mxu0
    %v2327 = vadd.f32 0.0, %v2326
    %2328 = vdwg.mxu0
    %v2329 = vmul.f32 %v2324, 0.35355338
    %v2330 = vmul.f32 %v2327, 0.35355338
    %v2331 = vadd.f32 %v2329, %v287
    %v2332 = vadd.f32 %v2330, %v288
    %v2333 = vsel %vm664, %v2331, -inf
    %2334 = vmax.xlane.f32.xlu0 %v2333
    %v2335 = vpop.xlane.xlu0 %2334
    %v2336 = vsel %vm664, %v2332, -inf
    %2337 = vmax.xlane.f32.xlu0 %v2336
    %v2338 = vpop.xlane.xlu0 %2337
    %v2339 = vsub.f32 %v2331, %v2335
    %v2340 = vsub.f32 %v2332, %v2338
    %v2341 = vmul.f32 %v2339, 1.442695
    %v2342 = vpow.pop %v2341
    %v2343 = vmul.f32 %v2340, 1.442695
    %v2344 = vpow.pop %v2343
    %v2346 = vsel %vm664, %v2342, 0
    %v2349 = vsel %vm664, %v2344, 0
    %2351 = vmatpush.msra.mxu0 0.0
    %2352 = vmatpush.msra.mxu0 0.0
    %2353 = vmatpush.msra.mxu0 0.0
    %2354 = vmatpush.msra.mxu0 0.0
    %2355 = vmatpush.msra.mxu0 0.0
    %2356 = vmatpush.msra.mxu0 0.0
    %2357 = vmatpush.msra.mxu0 0.0
    %2358 = vmatpush.msra.mxu0 0.0
    %2359 = vmatpush.msra.mxu0 %v2275
    %2360 = vmatpush.msra.mxu0 %v2274
    %2361 = vmatpush.msra.mxu0 %v2273
    %2362 = vmatpush.msra.mxu0 %v2272
    %2363 = vmatpush.msra.mxu0 %v2271
    %2364 = vmatpush.msra.mxu0 %v2270
    %2365 = vmatpush.msra.mxu0 %v2269
    %2366 = vmatpush.msra.mxu0 %v2268
    %2367 = vmatmul.f32.gmra.mxu0 %v2346
    %v2368 = vpop.f32.mrf.mxu0
    %v2369 = vadd.f32 0.0, %v2368
    %2370 = vmatmul.f32.gmra.mxu0 %v2349
    %v2371 = vpop.f32.mrf.mxu0
    %v2372 = vadd.f32 0.0, %v2371
    %2373 = vdwg.mxu0
    %2374 = vmatpush.msra.mxu0 0.0
    %2375 = vmatpush.msra.mxu0 0.0
    %2376 = vmatpush.msra.mxu0 0.0
    %2377 = vmatpush.msra.mxu0 0.0
    %2378 = vmatpush.msra.mxu0 0.0
    %2379 = vmatpush.msra.mxu0 0.0
    %2380 = vmatpush.msra.mxu0 0.0
    %2381 = vmatpush.msra.mxu0 0.0
    %2382 = vmatpush.msra.mxu0 %v286
    %2383 = vmatpush.msra.mxu0 %v285
    %2384 = vmatpush.msra.mxu0 %v284
    %2385 = vmatpush.msra.mxu0 %v283
    %2386 = vmatpush.msra.mxu0 %v282
    %2387 = vmatpush.msra.mxu0 %v281
    %2388 = vmatpush.msra.mxu0 %v280
    %2389 = vmatpush.msra.mxu0 %v279
    %2390 = vmatmul.f32.gmra.mxu0 %v2346
    %v2391 = vpop.f32.mrf.mxu0
    %v2392 = vadd.f32 0.0, %v2391
    %2393 = vmatmul.f32.gmra.mxu0 %v2349
    %v2394 = vpop.f32.mrf.mxu0
    %v2395 = vadd.f32 0.0, %v2394
    %2396 = vdwg.mxu0
    %v2397 = vrcp.pop %v2392
    %v2398 = vrcp.pop %v2395
    %v2399 = vmul.f32 %v2369, %v2397
    %v2400 = vmul.f32 %v2372, %v2398
    %v2402 = vperm.slane %v2000, 0
    %v2405 = vsel %vm338, %v2399, 0
    %v2408 = vsel %vm338, %v2400, 0
    %2410 = vmatpush.msra.mxu0 0.0
    %2411 = vmatpush.msra.mxu0 0.0
    %2412 = vmatpush.msra.mxu0 0.0
    %2413 = vmatpush.msra.mxu0 0.0
    %2414 = vmatpush.msra.mxu0 0.0
    %2415 = vmatpush.msra.mxu0 0.0
    %2416 = vmatpush.msra.mxu0 0.0
    %2417 = vmatpush.msra.mxu0 0.0
    %2418 = vmatpush.msra.mxu0 0.0
    %2419 = vmatpush.msra.mxu0 0.0
    %2420 = vmatpush.msra.mxu0 0.0
    %2421 = vmatpush.msra.mxu0 0.0
    %2422 = vmatpush.msra.mxu0 %v1998
    %2423 = vmatpush.msra.mxu0 %v1997
    %2424 = vmatpush.msra.mxu0 %v1996
    %2425 = vmatpush.msra.mxu0 %v1995
    %2426 = vmatmul.f32.gmra.mxu0 %v2405
    %v2427 = vpop.f32.mrf.mxu0
    %v2428 = vadd.f32 %v2402, %v2427
    %2429 = vmatmul.f32.gmra.mxu0 %v2408
    %v2430 = vpop.f32.mrf.mxu0
    %v2431 = vadd.f32 %v2402, %v2430
    %2432 = vdwg.mxu0
    %v2433 = vsel %vm338, %v2428, 0.0
    %2434 = vadd.xlane.f32.xlu0 %v2433
    %v2435 = vpop.xlane.xlu0 %2434
    %v2436 = vsel %vm338, %v2431, 0.0
    %2437 = vadd.xlane.f32.xlu0 %v2436
    %v2438 = vpop.xlane.xlu0 %2437
    %v2439 = vmul.f32 %v2435, %v351
    %v2440 = vmul.f32 %v2438, %v351
    %v2441 = vsub.f32 %v2428, %v2439
    %v2442 = vsub.f32 %v2431, %v2440
    %v2443 = vmul.f32 %v2441, %v2441
    %v2444 = vmul.f32 %v2442, %v2442
    %v2445 = vsel %vm338, %v2443, 0.0
    %2446 = vadd.xlane.f32.xlu0 %v2445
    %v2447 = vpop.xlane.xlu0 %2446
    %v2448 = vsel %vm338, %v2444, 0.0
    %2449 = vadd.xlane.f32.xlu0 %v2448
    %v2450 = vpop.xlane.xlu0 %2449
    %v2451 = vmul.f32 %v2447, %v351
    %v2452 = vmul.f32 %v2450, %v351
    %v2453 = vadd.f32 %v2451, 1e-05
    %v2454 = vadd.f32 %v2452, 1e-05
    %v2455 = vrsqrt.pop %v2453
    %v2456 = vmul.f32 %v2455, %v2453
    %v2457 = vmul.f32 %v2456, %v2455
    %v2458 = vmul.f32 0.5, %v2457
    %v2459 = vsub.f32 1.5, %v2458
    %v2460 = vmul.f32 %v2455, %v2459
    %vm2461 = vweird.f32 %v2453
    %vm2462 = vweird.f32 %v2455
    %vm2463 = vmor %vm2461, %vm2462
    %v2464 = vsel %vm2463, %v2455, %v2460
    %v2465 = vrsqrt.pop %v2454
    %v2466 = vmul.f32 %v2465, %v2454
    %v2467 = vmul.f32 %v2466, %v2465
    %v2468 = vmul.f32 0.5, %v2467
    %v2469 = vsub.f32 1.5, %v2468
    %v2470 = vmul.f32 %v2465, %v2469
    %vm2471 = vweird.f32 %v2454
    %vm2472 = vweird.f32 %v2465
    %vm2473 = vmor %vm2471, %vm2472
    %v2474 = vsel %vm2473, %v2465, %v2470
    %v2475 = vmul.f32 %v2441, %v2464
    %v2476 = vmul.f32 %v2442, %v2474
    %v2478 = vperm.slane %v2002, 0
    %v2480 = vmul.f32 %v2475, %v2478
    %v2481 = vmul.f32 %v2476, %v2478
    %v2483 = vperm.slane %v2004, 0
    %v2485 = vadd.f32 %v2480, %v2483
    %v2486 = vadd.f32 %v2481, %v2483
    %v2488 = vperm.slane %v2011, 0
    %v2491 = vsel %vm338, %v2485, 0
    %v2494 = vsel %vm338, %v2486, 0
    %2496 = vmatpush.msra.mxu0 0.0
    %2497 = vmatpush.msra.mxu0 0.0
    %2498 = vmatpush.msra.mxu0 0.0
    %2499 = vmatpush.msra.mxu0 0.0
    %2500 = vmatpush.msra.mxu0 0.0
    %2501 = vmatpush.msra.mxu0 0.0
    %2502 = vmatpush.msra.mxu0 0.0
    %2503 = vmatpush.msra.mxu0 0.0
    %2504 = vmatpush.msra.mxu0 0.0
    %2505 = vmatpush.msra.mxu0 0.0
    %2506 = vmatpush.msra.mxu0 0.0
    %2507 = vmatpush.msra.mxu0 0.0
    %2508 = vmatpush.msra.mxu0 %v2009
    %2509 = vmatpush.msra.mxu0 %v2008
    %2510 = vmatpush.msra.mxu0 %v2007
    %2511 = vmatpush.msra.mxu0 %v2006
    %2512 = vmatmul.f32.gmra.mxu0 %v2491
    %v2513 = vpop.f32.mrf.mxu0
    %v2514 = vadd.f32 %v2488, %v2513
    %2515 = vmatmul.f32.gmra.mxu0 %v2494
    %v2516 = vpop.f32.mrf.mxu0
    %v2517 = vadd.f32 %v2488, %v2516
    %2518 = vdwg.mxu0
    %v2520 = vperm.slane %v2018, 0
    %2522 = vmatpush.msra.mxu0 0.0
    %2523 = vmatpush.msra.mxu0 0.0
    %2524 = vmatpush.msra.mxu0 0.0
    %2525 = vmatpush.msra.mxu0 0.0
    %2526 = vmatpush.msra.mxu0 0.0
    %2527 = vmatpush.msra.mxu0 0.0
    %2528 = vmatpush.msra.mxu0 0.0
    %2529 = vmatpush.msra.mxu0 0.0
    %2530 = vmatpush.msra.mxu0 0.0
    %2531 = vmatpush.msra.mxu0 0.0
    %2532 = vmatpush.msra.mxu0 0.0
    %2533 = vmatpush.msra.mxu0 0.0
    %2534 = vmatpush.msra.mxu0 %v2016
    %2535 = vmatpush.msra.mxu0 %v2015
    %2536 = vmatpush.msra.mxu0 %v2014
    %2537 = vmatpush.msra.mxu0 %v2013
    %2538 = vmatmul.f32.gmra.mxu0 %v2491
    %v2539 = vpop.f32.mrf.mxu0
    %v2540 = vadd.f32 %v2520, %v2539
    %2541 = vmatmul.f32.gmra.mxu0 %v2494
    %v2542 = vpop.f32.mrf.mxu0
    %v2543 = vadd.f32 %v2520, %v2542
    %2544 = vdwg.mxu0
    %v2546 = vperm.slane %v2025, 0
    %2548 = vmatpush.msra.mxu0 0.0
    %2549 = vmatpush.msra.mxu0 0.0
    %2550 = vmatpush.msra.mxu0 0.0
    %2551 = vmatpush.msra.mxu0 0.0
    %2552 = vmatpush.msra.mxu0 0.0
    %2553 = vmatpush.msra.mxu0 0.0
    %2554 = vmatpush.msra.mxu0 0.0
    %2555 = vmatpush.msra.mxu0 0.0
    %2556 = vmatpush.msra.mxu0 0.0
    %2557 = vmatpush.msra.mxu0 0.0
    %2558 = vmatpush.msra.mxu0 0.0
    %2559 = vmatpush.msra.mxu0 0.0
    %2560 = vmatpush.msra.mxu0 %v2023
    %2561 = vmatpush.msra.mxu0 %v2022
    %2562 = vmatpush.msra.mxu0 %v2021
    %2563 = vmatpush.msra.mxu0 %v2020
    %2564 = vmatmul.f32.gmra.mxu0 %v2491
    %v2565 = vpop.f32.mrf.mxu0
    %v2566 = vadd.f32 %v2546, %v2565
    %2567 = vmatmul.f32.gmra.mxu0 %v2494
    %v2568 = vpop.f32.mrf.mxu0
    %v2569 = vadd.f32 %v2546, %v2568
    %2570 = vdwg.mxu0
    %2571 = vmatpush.msra.mxu0 0.0
    %2572 = vmatpush.msra.mxu0 0.0
    %2573 = vmatpush.msra.mxu0 0.0
    %2574 = vmatpush.msra.mxu0 0.0
    %2575 = vmatpush.msra.mxu0 0.0
    %2576 = vmatpush.msra.mxu0 0.0
    %2577 = vmatpush.msra.mxu0 0.0
    %2578 = vmatpush.msra.mxu0 0.0
    %2579 = vmatpush.msra.mxu0 0.0
    %2580 = vmatpush.msra.mxu0 0.0
    %2581 = vmatpush.msra.mxu0 0.0
    %2582 = vmatpush.msra.mxu0 0.0
    %2583 = vmatpush.msra.mxu0 0.0
    %2584 = vmatpush.msra.mxu0 0.0
    %2585 = vmatpush.msra.mxu0 %v2543
    %2586 = vmatpush.msra.mxu0 %v2540
    %2587 = vmatmul.f32.gmra.mxu0 %v486
    %v2588 = vpop.f32.mrf.mxu0
    %v2589 = vadd.f32 0.0, %v2588
    %2590 = vmatmul.f32.gmra.mxu0 %v489
    %v2591 = vpop.f32.mrf.mxu0
    %v2592 = vadd.f32 0.0, %v2591
    %2593 = vmatmul.f32.gmra.mxu0 %v492
    %v2594 = vpop.f32.mrf.mxu0
    %v2595 = vadd.f32 0.0, %v2594
    %2596 = vmatmul.f32.gmra.mxu0 %v495
    %v2597 = vpop.f32.mrf.mxu0
    %v2598 = vadd.f32 0.0, %v2597
    %2599 = vmatmul.f32.gmra.mxu0 %v498
    %v2600 = vpop.f32.mrf.mxu0
    %v2601 = vadd.f32 0.0, %v2600
    %2602 = vmatmul.f32.gmra.mxu0 %v501
    %v2603 = vpop.f32.mrf.mxu0
    %v2604 = vadd.f32 0.0, %v2603
    %2605 = vmatmul.f32.gmra.mxu0 %v504
    %v2606 = vpop.f32.mrf.mxu0
    %v2607 = vadd.f32 0.0, %v2606
    %2608 = vmatmul.f32.gmra.mxu0 %v507
    %v2609 = vpop.f32.mrf.mxu0
    %v2610 = vadd.f32 0.0, %v2609
    %2611 = vdwg.mxu0
    %v2612 = vmul.f32 %v2589, %v279
    %v2613 = vmul.f32 %v2592, %v280
    %v2614 = vmul.f32 %v2595, %v281
    %v2615 = vmul.f32 %v2598, %v282
    %v2616 = vmul.f32 %v2601, %v283
    %v2617 = vmul.f32 %v2604, %v284
    %v2618 = vmul.f32 %v2607, %v285
    %v2619 = vmul.f32 %v2610, %v286
    %2620 = vmatpush.msra.mxu0 0.0
    %2621 = vmatpush.msra.mxu0 0.0
    %2622 = vmatpush.msra.mxu0 0.0
    %2623 = vmatpush.msra.mxu0 0.0
    %2624 = vmatpush.msra.mxu0 0.0
    %2625 = vmatpush.msra.mxu0 0.0
    %2626 = vmatpush.msra.mxu0 0.0
    %2627 = vmatpush.msra.mxu0 0.0
    %2628 = vmatpush.msra.mxu0 0.0
    %2629 = vmatpush.msra.mxu0 0.0
    %2630 = vmatpush.msra.mxu0 0.0
    %2631 = vmatpush.msra.mxu0 0.0
    %2632 = vmatpush.msra.mxu0 0.0
    %2633 = vmatpush.msra.mxu0 0.0
    %2634 = vmatpush.msra.mxu0 %v2569
    %2635 = vmatpush.msra.mxu0 %v2566
    %2636 = vmatmul.f32.gmra.mxu0 %v486
    %v2637 = vpop.f32.mrf.mxu0
    %v2638 = vadd.f32 0.0, %v2637
    %2639 = vmatmul.f32.gmra.mxu0 %v489
    %v2640 = vpop.f32.mrf.mxu0
    %v2641 = vadd.f32 0.0, %v2640
    %2642 = vmatmul.f32.gmra.mxu0 %v492
    %v2643 = vpop.f32.mrf.mxu0
    %v2644 = vadd.f32 0.0, %v2643
    %2645 = vmatmul.f32.gmra.mxu0 %v495
    %v2646 = vpop.f32.mrf.mxu0
    %v2647 = vadd.f32 0.0, %v2646
    %2648 = vmatmul.f32.gmra.mxu0 %v498
    %v2649 = vpop.f32.mrf.mxu0
    %v2650 = vadd.f32 0.0, %v2649
    %2651 = vmatmul.f32.gmra.mxu0 %v501
    %v2652 = vpop.f32.mrf.mxu0
    %v2653 = vadd.f32 0.0, %v2652
    %2654 = vmatmul.f32.gmra.mxu0 %v504
    %v2655 = vpop.f32.mrf.mxu0
    %v2656 = vadd.f32 0.0, %v2655
    %2657 = vmatmul.f32.gmra.mxu0 %v507
    %v2658 = vpop.f32.mrf.mxu0
    %v2659 = vadd.f32 0.0, %v2658
    %2660 = vdwg.mxu0
    %v2661 = vmul.f32 %v2638, %v279
    %v2662 = vmul.f32 %v2641, %v280
    %v2663 = vmul.f32 %v2644, %v281
    %v2664 = vmul.f32 %v2647, %v282
    %v2665 = vmul.f32 %v2650, %v283
    %v2666 = vmul.f32 %v2653, %v284
    %v2667 = vmul.f32 %v2656, %v285
    %v2668 = vmul.f32 %v2659, %v286
    %v2670 = vsel %vm338, %v2514, 0
    %v2673 = vsel %vm338, %v2517, 0
    %v2676 = vsel %vm338, %v2612, 0
    %v2679 = vsel %vm338, %v2613, 0
    %v2682 = vsel %vm338, %v2614, 0
    %v2685 = vsel %vm338, %v2615, 0
    %v2688 = vsel %vm338, %v2616, 0
    %v2691 = vsel %vm338, %v2617, 0
    %v2694 = vsel %vm338, %v2618, 0
    %v2697 = vsel %vm338, %v2619, 0
    %2699 = vmatpush.xpose.msra.mxu0 0.0
    %2700 = vmatpush.xpose.msra.mxu0 0.0
    %2701 = vmatpush.xpose.msra.mxu0 0.0
    %2702 = vmatpush.xpose.msra.mxu0 0.0
    %2703 = vmatpush.xpose.msra.mxu0 0.0
    %2704 = vmatpush.xpose.msra.mxu0 0.0
    %2705 = vmatpush.xpose.msra.mxu0 0.0
    %2706 = vmatpush.xpose.msra.mxu0 0.0
    %2707 = vmatpush.xpose.msra.mxu0 %v2697
    %2708 = vmatpush.xpose.msra.mxu0 %v2694
    %2709 = vmatpush.xpose.msra.mxu0 %v2691
    %2710 = vmatpush.xpose.msra.mxu0 %v2688
    %2711 = vmatpush.xpose.msra.mxu0 %v2685
    %2712 = vmatpush.xpose.msra.mxu0 %v2682
    %2713 = vmatpush.xpose.msra.mxu0 %v2679
    %2714 = vmatpush.xpose.msra.mxu0 %v2676
    %2715 = vmatmul.f32.gmra.mxu0 %v2670
    %v2716 = vpop.f32.mrf.mxu0
    %v2717 = vadd.f32 0.0, %v2716
    %2718 = vmatmul.f32.gmra.mxu0 %v2673
    %v2719 = vpop.f32.mrf.mxu0
    %v2720 = vadd.f32 0.0, %v2719
    %2721 = vdwg.mxu0
    %v2722 = vmul.f32 %v2717, 0.35355338
    %v2723 = vmul.f32 %v2720, 0.35355338
    %v2724 = vadd.f32 %v2722, %v287
    %v2725 = vadd.f32 %v2723, %v288
    %v2726 = vsel %vm664, %v2724, -inf
    %2727 = vmax.xlane.f32.xlu0 %v2726
    %v2728 = vpop.xlane.xlu0 %2727
    %v2729 = vsel %vm664, %v2725, -inf
    %2730 = vmax.xlane.f32.xlu0 %v2729
    %v2731 = vpop.xlane.xlu0 %2730
    %v2732 = vsub.f32 %v2724, %v2728
    %v2733 = vsub.f32 %v2725, %v2731
    %v2734 = vmul.f32 %v2732, 1.442695
    %v2735 = vpow.pop %v2734
    %v2736 = vmul.f32 %v2733, 1.442695
    %v2737 = vpow.pop %v2736
    %v2739 = vsel %vm664, %v2735, 0
    %v2742 = vsel %vm664, %v2737, 0
    %2744 = vmatpush.msra.mxu0 0.0
    %2745 = vmatpush.msra.mxu0 0.0
    %2746 = vmatpush.msra.mxu0 0.0
    %2747 = vmatpush.msra.mxu0 0.0
    %2748 = vmatpush.msra.mxu0 0.0
    %2749 = vmatpush.msra.mxu0 0.0
    %2750 = vmatpush.msra.mxu0 0.0
    %2751 = vmatpush.msra.mxu0 0.0
    %2752 = vmatpush.msra.mxu0 %v2668
    %2753 = vmatpush.msra.mxu0 %v2667
    %2754 = vmatpush.msra.mxu0 %v2666
    %2755 = vmatpush.msra.mxu0 %v2665
    %2756 = vmatpush.msra.mxu0 %v2664
    %2757 = vmatpush.msra.mxu0 %v2663
    %2758 = vmatpush.msra.mxu0 %v2662
    %2759 = vmatpush.msra.mxu0 %v2661
    %2760 = vmatmul.f32.gmra.mxu0 %v2739
    %v2761 = vpop.f32.mrf.mxu0
    %v2762 = vadd.f32 0.0, %v2761
    %2763 = vmatmul.f32.gmra.mxu0 %v2742
    %v2764 = vpop.f32.mrf.mxu0
    %v2765 = vadd.f32 0.0, %v2764
    %2766 = vdwg.mxu0
    %2767 = vmatpush.msra.mxu0 0.0
    %2768 = vmatpush.msra.mxu0 0.0
    %2769 = vmatpush.msra.mxu0 0.0
    %2770 = vmatpush.msra.mxu0 0.0
    %2771 = vmatpush.msra.mxu0 0.0
    %2772 = vmatpush.msra.mxu0 0.0
    %2773 = vmatpush.msra.mxu0 0.0
    %2774 = vmatpush.msra.mxu0 0.0
    %2775 = vmatpush.msra.mxu0 %v286
    %2776 = vmatpush.msra.mxu0 %v285
    %2777 = vmatpush.msra.mxu0 %v284
    %2778 = vmatpush.msra.mxu0 %v283
    %2779 = vmatpush.msra.mxu0 %v282
    %2780 = vmatpush.msra.mxu0 %v281
    %2781 = vmatpush.msra.mxu0 %v280
    %2782 = vmatpush.msra.mxu0 %v279
    %2783 = vmatmul.f32.gmra.mxu0 %v2739
    %v2784 = vpop.f32.mrf.mxu0
    %v2785 = vadd.f32 0.0, %v2784
    %2786 = vmatmul.f32.gmra.mxu0 %v2742
    %v2787 = vpop.f32.mrf.mxu0
    %v2788 = vadd.f32 0.0, %v2787
    %2789 = vdwg.mxu0
    %v2790 = vrcp.pop %v2785
    %v2791 = vrcp.pop %v2788
    %v2792 = vmul.f32 %v2762, %v2790
    %v2793 = vmul.f32 %v2765, %v2791
    %v2795 = vperm.slane %v2032, 0
    %v2798 = vsel %vm338, %v2792, 0
    %v2801 = vsel %vm338, %v2793, 0
    %2803 = vmatpush.msra.mxu0 0.0
    %2804 = vmatpush.msra.mxu0 0.0
    %2805 = vmatpush.msra.mxu0 0.0
    %2806 = vmatpush.msra.mxu0 0.0
    %2807 = vmatpush.msra.mxu0 0.0
    %2808 = vmatpush.msra.mxu0 0.0
    %2809 = vmatpush.msra.mxu0 0.0
    %2810 = vmatpush.msra.mxu0 0.0
    %2811 = vmatpush.msra.mxu0 0.0
    %2812 = vmatpush.msra.mxu0 0.0
    %2813 = vmatpush.msra.mxu0 0.0
    %2814 = vmatpush.msra.mxu0 0.0
    %2815 = vmatpush.msra.mxu0 %v2030
    %2816 = vmatpush.msra.mxu0 %v2029
    %2817 = vmatpush.msra.mxu0 %v2028
    %2818 = vmatpush.msra.mxu0 %v2027
    %2819 = vmatmul.f32.gmra.mxu0 %v2798
    %v2820 = vpop.f32.mrf.mxu0
    %v2821 = vadd.f32 %v2795, %v2820
    %2822 = vmatmul.f32.gmra.mxu0 %v2801
    %v2823 = vpop.f32.mrf.mxu0
    %v2824 = vadd.f32 %v2795, %v2823
    %2825 = vdwg.mxu0
    %v2827 = vperm.slane %v2039, 0
    %v2830 = vsel %vm338, %v2821, 0
    %v2833 = vsel %vm338, %v2824, 0
    %2835 = vmatpush.msra.mxu0 0.0
    %2836 = vmatpush.msra.mxu0 0.0
    %2837 = vmatpush.msra.mxu0 0.0
    %2838 = vmatpush.msra.mxu0 0.0
    %2839 = vmatpush.msra.mxu0 0.0
    %2840 = vmatpush.msra.mxu0 0.0
    %2841 = vmatpush.msra.mxu0 0.0
    %2842 = vmatpush.msra.mxu0 0.0
    %2843 = vmatpush.msra.mxu0 0.0
    %2844 = vmatpush.msra.mxu0 0.0
    %2845 = vmatpush.msra.mxu0 0.0
    %2846 = vmatpush.msra.mxu0 0.0
    %2847 = vmatpush.msra.mxu0 %v2037
    %2848 = vmatpush.msra.mxu0 %v2036
    %2849 = vmatpush.msra.mxu0 %v2035
    %2850 = vmatpush.msra.mxu0 %v2034
    %2851 = vmatmul.f32.gmra.mxu0 %v2830
    %v2852 = vpop.f32.mrf.mxu0
    %v2853 = vadd.f32 %v2827, %v2852
    %2854 = vmatmul.f32.gmra.mxu0 %v2833
    %v2855 = vpop.f32.mrf.mxu0
    %v2856 = vadd.f32 %v2827, %v2855
    %2857 = vdwg.mxu0
    %v2858 = vsel %vm338, %v2853, 0.0
    %2859 = vadd.xlane.f32.xlu0 %v2858
    %v2860 = vpop.xlane.xlu0 %2859
    %v2861 = vsel %vm338, %v2856, 0.0
    %2862 = vadd.xlane.f32.xlu0 %v2861
    %v2863 = vpop.xlane.xlu0 %2862
    %v2864 = vmul.f32 %v2860, %v351
    %v2865 = vmul.f32 %v2863, %v351
    %v2866 = vsub.f32 %v2853, %v2864
    %v2867 = vsub.f32 %v2856, %v2865
    %v2868 = vmul.f32 %v2866, %v2866
    %v2869 = vmul.f32 %v2867, %v2867
    %v2870 = vsel %vm338, %v2868, 0.0
    %2871 = vadd.xlane.f32.xlu0 %v2870
    %v2872 = vpop.xlane.xlu0 %2871
    %v2873 = vsel %vm338, %v2869, 0.0
    %2874 = vadd.xlane.f32.xlu0 %v2873
    %v2875 = vpop.xlane.xlu0 %2874
    %v2876 = vmul.f32 %v2872, %v351
    %v2877 = vmul.f32 %v2875, %v351
    %v2878 = vadd.f32 %v2876, 1e-05
    %v2879 = vadd.f32 %v2877, 1e-05
    %v2880 = vrsqrt.pop %v2878
    %v2881 = vmul.f32 %v2880, %v2878
    %v2882 = vmul.f32 %v2881, %v2880
    %v2883 = vmul.f32 0.5, %v2882
    %v2884 = vsub.f32 1.5, %v2883
    %v2885 = vmul.f32 %v2880, %v2884
    %vm2886 = vweird.f32 %v2878
    %vm2887 = vweird.f32 %v2880
    %vm2888 = vmor %vm2886, %vm2887
    %v2889 = vsel %vm2888, %v2880, %v2885
    %v2890 = vrsqrt.pop %v2879
    %v2891 = vmul.f32 %v2890, %v2879
    %v2892 = vmul.f32 %v2891, %v2890
    %v2893 = vmul.f32 0.5, %v2892
    %v2894 = vsub.f32 1.5, %v2893
    %v2895 = vmul.f32 %v2890, %v2894
    %vm2896 = vweird.f32 %v2879
    %vm2897 = vweird.f32 %v2890
    %vm2898 = vmor %vm2896, %vm2897
    %v2899 = vsel %vm2898, %v2890, %v2895
    %v2900 = vmul.f32 %v2866, %v2889
    %v2901 = vmul.f32 %v2867, %v2899
    %v2902 = vmul.f32 %v2900, %v2085
    %v2903 = vmul.f32 %v2901, %v2085
    %v2904 = vadd.f32 %v2902, %v2090
    %v2905 = vadd.f32 %v2903, %v2090
    %v2907 = vsel %vm338, %v2904, 0
    %v2910 = vsel %vm338, %v2905, 0
    %2912 = vmatpush.msra.mxu0 0.0
    %2913 = vmatpush.msra.mxu0 0.0
    %2914 = vmatpush.msra.mxu0 0.0
    %2915 = vmatpush.msra.mxu0 0.0
    %2916 = vmatpush.msra.mxu0 0.0
    %2917 = vmatpush.msra.mxu0 0.0
    %2918 = vmatpush.msra.mxu0 0.0
    %2919 = vmatpush.msra.mxu0 0.0
    %2920 = vmatpush.msra.mxu0 0.0
    %2921 = vmatpush.msra.mxu0 0.0
    %2922 = vmatpush.msra.mxu0 0.0
    %2923 = vmatpush.msra.mxu0 0.0
    %2924 = vmatpush.msra.mxu0 %v1977
    %2925 = vmatpush.msra.mxu0 %v1976
    %2926 = vmatpush.msra.mxu0 %v1975
    %2927 = vmatpush.msra.mxu0 %v1974
    %2928 = vmatmul.f32.gmra.mxu0 %v2907
    %v2929 = vpop.f32.mrf.mxu0
    %v2930 = vadd.f32 %v2095, %v2929
    %2931 = vmatmul.f32.gmra.mxu0 %v2910
    %v2932 = vpop.f32.mrf.mxu0
    %v2933 = vadd.f32 %v2095, %v2932
    %2934 = vdwg.mxu0
    %2935 = vmatpush.msra.mxu0 0.0
    %2936 = vmatpush.msra.mxu0 0.0
    %2937 = vmatpush.msra.mxu0 0.0
    %2938 = vmatpush.msra.mxu0 0.0
    %2939 = vmatpush.msra.mxu0 0.0
    %2940 = vmatpush.msra.mxu0 0.0
    %2941 = vmatpush.msra.mxu0 0.0
    %2942 = vmatpush.msra.mxu0 0.0
    %2943 = vmatpush.msra.mxu0 0.0
    %2944 = vmatpush.msra.mxu0 0.0
    %2945 = vmatpush.msra.mxu0 0.0
    %2946 = vmatpush.msra.mxu0 0.0
    %2947 = vmatpush.msra.mxu0 %v1984
    %2948 = vmatpush.msra.mxu0 %v1983
    %2949 = vmatpush.msra.mxu0 %v1982
    %2950 = vmatpush.msra.mxu0 %v1981
    %2951 = vmatmul.f32.gmra.mxu0 %v2907
    %v2952 = vpop.f32.mrf.mxu0
    %v2953 = vadd.f32 %v2127, %v2952
    %2954 = vmatmul.f32.gmra.mxu0 %v2910
    %v2955 = vpop.f32.mrf.mxu0
    %v2956 = vadd.f32 %v2127, %v2955
    %2957 = vdwg.mxu0
    %2958 = vmatpush.msra.mxu0 0.0
    %2959 = vmatpush.msra.mxu0 0.0
    %2960 = vmatpush.msra.mxu0 0.0
    %2961 = vmatpush.msra.mxu0 0.0
    %2962 = vmatpush.msra.mxu0 0.0
    %2963 = vmatpush.msra.mxu0 0.0
    %2964 = vmatpush.msra.mxu0 0.0
    %2965 = vmatpush.msra.mxu0 0.0
    %2966 = vmatpush.msra.mxu0 0.0
    %2967 = vmatpush.msra.mxu0 0.0
    %2968 = vmatpush.msra.mxu0 0.0
    %2969 = vmatpush.msra.mxu0 0.0
    %2970 = vmatpush.msra.mxu0 %v1991
    %2971 = vmatpush.msra.mxu0 %v1990
    %2972 = vmatpush.msra.mxu0 %v1989
    %2973 = vmatpush.msra.mxu0 %v1988
    %2974 = vmatmul.f32.gmra.mxu0 %v2907
    %v2975 = vpop.f32.mrf.mxu0
    %v2976 = vadd.f32 %v2153, %v2975
    %2977 = vmatmul.f32.gmra.mxu0 %v2910
    %v2978 = vpop.f32.mrf.mxu0
    %v2979 = vadd.f32 %v2153, %v2978
    %2980 = vdwg.mxu0
    %2981 = vmatpush.msra.mxu0 0.0
    %2982 = vmatpush.msra.mxu0 0.0
    %2983 = vmatpush.msra.mxu0 0.0
    %2984 = vmatpush.msra.mxu0 0.0
    %2985 = vmatpush.msra.mxu0 0.0
    %2986 = vmatpush.msra.mxu0 0.0
    %2987 = vmatpush.msra.mxu0 0.0
    %2988 = vmatpush.msra.mxu0 0.0
    %2989 = vmatpush.msra.mxu0 0.0
    %2990 = vmatpush.msra.mxu0 0.0
    %2991 = vmatpush.msra.mxu0 0.0
    %2992 = vmatpush.msra.mxu0 0.0
    %2993 = vmatpush.msra.mxu0 0.0
    %2994 = vmatpush.msra.mxu0 0.0
    %2995 = vmatpush.msra.mxu0 %v2956
    %2996 = vmatpush.msra.mxu0 %v2953
    %2997 = vmatmul.f32.gmra.mxu0 %v486
    %v2998 = vpop.f32.mrf.mxu0
    %v2999 = vadd.f32 0.0, %v2998
    %3000 = vmatmul.f32.gmra.mxu0 %v489
    %v3001 = vpop.f32.mrf.mxu0
    %v3002 = vadd.f32 0.0, %v3001
    %3003 = vmatmul.f32.gmra.mxu0 %v492
    %v3004 = vpop.f32.mrf.mxu0
    %v3005 = vadd.f32 0.0, %v3004
    %3006 = vmatmul.f32.gmra.mxu0 %v495
    %v3007 = vpop.f32.mrf.mxu0
    %v3008 = vadd.f32 0.0, %v3007
    %3009 = vmatmul.f32.gmra.mxu0 %v498
    %v3010 = vpop.f32.mrf.mxu0
    %v3011 = vadd.f32 0.0, %v3010
    %3012 = vmatmul.f32.gmra.mxu0 %v501
    %v3013 = vpop.f32.mrf.mxu0
    %v3014 = vadd.f32 0.0, %v3013
    %3015 = vmatmul.f32.gmra.mxu0 %v504
    %v3016 = vpop.f32.mrf.mxu0
    %v3017 = vadd.f32 0.0, %v3016
    %3018 = vmatmul.f32.gmra.mxu0 %v507
    %v3019 = vpop.f32.mrf.mxu0
    %v3020 = vadd.f32 0.0, %v3019
    %3021 = vdwg.mxu0
    %v3022 = vmul.f32 %v2999, %v279
    %v3023 = vmul.f32 %v3002, %v280
    %v3024 = vmul.f32 %v3005, %v281
    %v3025 = vmul.f32 %v3008, %v282
    %v3026 = vmul.f32 %v3011, %v283
    %v3027 = vmul.f32 %v3014, %v284
    %v3028 = vmul.f32 %v3017, %v285
    %v3029 = vmul.f32 %v3020, %v286
    %3030 = vmatpush.msra.mxu0 0.0
    %3031 = vmatpush.msra.mxu0 0.0
    %3032 = vmatpush.msra.mxu0 0.0
    %3033 = vmatpush.msra.mxu0 0.0
    %3034 = vmatpush.msra.mxu0 0.0
    %3035 = vmatpush.msra.mxu0 0.0
    %3036 = vmatpush.msra.mxu0 0.0
    %3037 = vmatpush.msra.mxu0 0.0
    %3038 = vmatpush.msra.mxu0 0.0
    %3039 = vmatpush.msra.mxu0 0.0
    %3040 = vmatpush.msra.mxu0 0.0
    %3041 = vmatpush.msra.mxu0 0.0
    %3042 = vmatpush.msra.mxu0 0.0
    %3043 = vmatpush.msra.mxu0 0.0
    %3044 = vmatpush.msra.mxu0 %v2979
    %3045 = vmatpush.msra.mxu0 %v2976
    %3046 = vmatmul.f32.gmra.mxu0 %v486
    %v3047 = vpop.f32.mrf.mxu0
    %v3048 = vadd.f32 0.0, %v3047
    %3049 = vmatmul.f32.gmra.mxu0 %v489
    %v3050 = vpop.f32.mrf.mxu0
    %v3051 = vadd.f32 0.0, %v3050
    %3052 = vmatmul.f32.gmra.mxu0 %v492
    %v3053 = vpop.f32.mrf.mxu0
    %v3054 = vadd.f32 0.0, %v3053
    %3055 = vmatmul.f32.gmra.mxu0 %v495
    %v3056 = vpop.f32.mrf.mxu0
    %v3057 = vadd.f32 0.0, %v3056
    %3058 = vmatmul.f32.gmra.mxu0 %v498
    %v3059 = vpop.f32.mrf.mxu0
    %v3060 = vadd.f32 0.0, %v3059
    %3061 = vmatmul.f32.gmra.mxu0 %v501
    %v3062 = vpop.f32.mrf.mxu0
    %v3063 = vadd.f32 0.0, %v3062
    %3064 = vmatmul.f32.gmra.mxu0 %v504
    %v3065 = vpop.f32.mrf.mxu0
    %v3066 = vadd.f32 0.0, %v3065
    %3067 = vmatmul.f32.gmra.mxu0 %v507
    %v3068 = vpop.f32.mrf.mxu0
    %v3069 = vadd.f32 0.0, %v3068
    %3070 = vdwg.mxu0
    %v3071 = vmul.f32 %v3048, %v279
    %v3072 = vmul.f32 %v3051, %v280
    %v3073 = vmul.f32 %v3054, %v281
    %v3074 = vmul.f32 %v3057, %v282
    %v3075 = vmul.f32 %v3060, %v283
    %v3076 = vmul.f32 %v3063, %v284
    %v3077 = vmul.f32 %v3066, %v285
    %v3078 = vmul.f32 %v3069, %v286
    %v3080 = vsel %vm338, %v2930, 0
    %v3083 = vsel %vm338, %v2933, 0
    %v3086 = vsel %vm338, %v3022, 0
    %v3089 = vsel %vm338, %v3023, 0
    %v3092 = vsel %vm338, %v3024, 0
    %v3095 = vsel %vm338, %v3025, 0
    %v3098 = vsel %vm338, %v3026, 0
    %v3101 = vsel %vm338, %v3027, 0
    %v3104 = vsel %vm338, %v3028, 0
    %v3107 = vsel %vm338, %v3029, 0
    %3109 = vmatpush.xpose.msra.mxu0 0.0
    %3110 = vmatpush.xpose.msra.mxu0 0.0
    %3111 = vmatpush.xpose.msra.mxu0 0.0
    %3112 = vmatpush.xpose.msra.mxu0 0.0
    %3113 = vmatpush.xpose.msra.mxu0 0.0
    %3114 = vmatpush.xpose.msra.mxu0 0.0
    %3115 = vmatpush.xpose.msra.mxu0 0.0
    %3116 = vmatpush.xpose.msra.mxu0 0.0
    %3117 = vmatpush.xpose.msra.mxu0 %v3107
    %3118 = vmatpush.xpose.msra.mxu0 %v3104
    %3119 = vmatpush.xpose.msra.mxu0 %v3101
    %3120 = vmatpush.xpose.msra.mxu0 %v3098
    %3121 = vmatpush.xpose.msra.mxu0 %v3095
    %3122 = vmatpush.xpose.msra.mxu0 %v3092
    %3123 = vmatpush.xpose.msra.mxu0 %v3089
    %3124 = vmatpush.xpose.msra.mxu0 %v3086
    %3125 = vmatmul.f32.gmra.mxu0 %v3080
    %v3126 = vpop.f32.mrf.mxu0
    %v3127 = vadd.f32 0.0, %v3126
    %3128 = vmatmul.f32.gmra.mxu0 %v3083
    %v3129 = vpop.f32.mrf.mxu0
    %v3130 = vadd.f32 0.0, %v3129
    %3131 = vdwg.mxu0
    %v3132 = vmul.f32 %v3127, 0.35355338
    %v3133 = vmul.f32 %v3130, 0.35355338
    %v3134 = vadd.f32 %v3132, %v287
    %v3135 = vadd.f32 %v3133, %v288
    %v3136 = vsel %vm664, %v3134, -inf
    %3137 = vmax.xlane.f32.xlu0 %v3136
    %v3138 = vpop.xlane.xlu0 %3137
    %v3139 = vsel %vm664, %v3135, -inf
    %3140 = vmax.xlane.f32.xlu0 %v3139
    %v3141 = vpop.xlane.xlu0 %3140
    %v3142 = vsub.f32 %v3134, %v3138
    %v3143 = vsub.f32 %v3135, %v3141
    %v3144 = vmul.f32 %v3142, 1.442695
    %v3145 = vpow.pop %v3144
    %v3146 = vmul.f32 %v3143, 1.442695
    %v3147 = vpow.pop %v3146
    %v3149 = vsel %vm664, %v3145, 0
    %v3152 = vsel %vm664, %v3147, 0
    %3154 = vmatpush.msra.mxu0 0.0
    %3155 = vmatpush.msra.mxu0 0.0
    %3156 = vmatpush.msra.mxu0 0.0
    %3157 = vmatpush.msra.mxu0 0.0
    %3158 = vmatpush.msra.mxu0 0.0
    %3159 = vmatpush.msra.mxu0 0.0
    %3160 = vmatpush.msra.mxu0 0.0
    %3161 = vmatpush.msra.mxu0 0.0
    %3162 = vmatpush.msra.mxu0 %v3078
    %3163 = vmatpush.msra.mxu0 %v3077
    %3164 = vmatpush.msra.mxu0 %v3076
    %3165 = vmatpush.msra.mxu0 %v3075
    %3166 = vmatpush.msra.mxu0 %v3074
    %3167 = vmatpush.msra.mxu0 %v3073
    %3168 = vmatpush.msra.mxu0 %v3072
    %3169 = vmatpush.msra.mxu0 %v3071
    %3170 = vmatmul.f32.gmra.mxu0 %v3149
    %v3171 = vpop.f32.mrf.mxu0
    %v3172 = vadd.f32 0.0, %v3171
    %3173 = vmatmul.f32.gmra.mxu0 %v3152
    %v3174 = vpop.f32.mrf.mxu0
    %v3175 = vadd.f32 0.0, %v3174
    %3176 = vdwg.mxu0
    %3177 = vmatpush.msra.mxu0 0.0
    %3178 = vmatpush.msra.mxu0 0.0
    %3179 = vmatpush.msra.mxu0 0.0
    %3180 = vmatpush.msra.mxu0 0.0
    %3181 = vmatpush.msra.mxu0 0.0
    %3182 = vmatpush.msra.mxu0 0.0
    %3183 = vmatpush.msra.mxu0 0.0
    %3184 = vmatpush.msra.mxu0 0.0
    %3185 = vmatpush.msra.mxu0 %v286
    %3186 = vmatpush.msra.mxu0 %v285
    %3187 = vmatpush.msra.mxu0 %v284
    %3188 = vmatpush.msra.mxu0 %v283
    %3189 = vmatpush.msra.mxu0 %v282
    %3190 = vmatpush.msra.mxu0 %v281
    %3191 = vmatpush.msra.mxu0 %v280
    %3192 = vmatpush.msra.mxu0 %v279
    %3193 = vmatmul.f32.gmra.mxu0 %v3149
    %v3194 = vpop.f32.mrf.mxu0
    %v3195 = vadd.f32 0.0, %v3194
    %3196 = vmatmul.f32.gmra.mxu0 %v3152
    %v3197 = vpop.f32.mrf.mxu0
    %v3198 = vadd.f32 0.0, %v3197
    %3199 = vdwg.mxu0
    %v3200 = vrcp.pop %v3195
    %v3201 = vrcp.pop %v3198
    %v3202 = vmul.f32 %v3172, %v3200
    %v3203 = vmul.f32 %v3175, %v3201
    %v3205 = vsel %vm338, %v3202, 0
    %v3208 = vsel %vm338, %v3203, 0
    %3210 = vmatpush.msra.mxu0 0.0
    %3211 = vmatpush.msra.mxu0 0.0
    %3212 = vmatpush.msra.mxu0 0.0
    %3213 = vmatpush.msra.mxu0 0.0
    %3214 = vmatpush.msra.mxu0 0.0
    %3215 = vmatpush.msra.mxu0 0.0
    %3216 = vmatpush.msra.mxu0 0.0
    %3217 = vmatpush.msra.mxu0 0.0
    %3218 = vmatpush.msra.mxu0 0.0
    %3219 = vmatpush.msra.mxu0 0.0
    %3220 = vmatpush.msra.mxu0 0.0
    %3221 = vmatpush.msra.mxu0 0.0
    %3222 = vmatpush.msra.mxu0 %v1998
    %3223 = vmatpush.msra.mxu0 %v1997
    %3224 = vmatpush.msra.mxu0 %v1996
    %3225 = vmatpush.msra.mxu0 %v1995
    %3226 = vmatmul.f32.gmra.mxu0 %v3205
    %v3227 = vpop.f32.mrf.mxu0
    %v3228 = vadd.f32 %v2402, %v3227
    %3229 = vmatmul.f32.gmra.mxu0 %v3208
    %v3230 = vpop.f32.mrf.mxu0
    %v3231 = vadd.f32 %v2402, %v3230
    %3232 = vdwg.mxu0
    %v3233 = vsel %vm338, %v3228, 0.0
    %3234 = vadd.xlane.f32.xlu0 %v3233
    %v3235 = vpop.xlane.xlu0 %3234
    %v3236 = vsel %vm338, %v3231, 0.0
    %3237 = vadd.xlane.f32.xlu0 %v3236
    %v3238 = vpop.xlane.xlu0 %3237
    %v3239 = vmul.f32 %v3235, %v351
    %v3240 = vmul.f32 %v3238, %v351
    %v3241 = vsub.f32 %v3228, %v3239
    %v3242 = vsub.f32 %v3231, %v3240
    %v3243 = vmul.f32 %v3241, %v3241
    %v3244 = vmul.f32 %v3242, %v3242
    %v3245 = vsel %vm338, %v3243, 0.0
    %3246 = vadd.xlane.f32.xlu0 %v3245
    %v3247 = vpop.xlane.xlu0 %3246
    %v3248 = vsel %vm338, %v3244, 0.0
    %3249 = vadd.xlane.f32.xlu0 %v3248
    %v3250 = vpop.xlane.xlu0 %3249
    %v3251 = vmul.f32 %v3247, %v351
    %v3252 = vmul.f32 %v3250, %v351
    %v3253 = vadd.f32 %v3251, 1e-05
    %v3254 = vadd.f32 %v3252, 1e-05
    %v3255 = vrsqrt.pop %v3253
    %v3256 = vmul.f32 %v3255, %v3253
    %v3257 = vmul.f32 %v3256, %v3255
    %v3258 = vmul.f32 0.5, %v3257
    %v3259 = vsub.f32 1.5, %v3258
    %v3260 = vmul.f32 %v3255, %v3259
    %vm3261 = vweird.f32 %v3253
    %vm3262 = vweird.f32 %v3255
    %vm3263 = vmor %vm3261, %vm3262
    %v3264 = vsel %vm3263, %v3255, %v3260
    %v3265 = vrsqrt.pop %v3254
    %v3266 = vmul.f32 %v3265, %v3254
    %v3267 = vmul.f32 %v3266, %v3265
    %v3268 = vmul.f32 0.5, %v3267
    %v3269 = vsub.f32 1.5, %v3268
    %v3270 = vmul.f32 %v3265, %v3269
    %vm3271 = vweird.f32 %v3254
    %vm3272 = vweird.f32 %v3265
    %vm3273 = vmor %vm3271, %vm3272
    %v3274 = vsel %vm3273, %v3265, %v3270
    %v3275 = vmul.f32 %v3241, %v3264
    %v3276 = vmul.f32 %v3242, %v3274
    %v3277 = vmul.f32 %v3275, %v2478
    %v3278 = vmul.f32 %v3276, %v2478
    %v3279 = vadd.f32 %v3277, %v2483
    %v3280 = vadd.f32 %v3278, %v2483
    %v3282 = vsel %vm338, %v3279, 0
    %v3285 = vsel %vm338, %v3280, 0
    %3287 = vmatpush.msra.mxu0 0.0
    %3288 = vmatpush.msra.mxu0 0.0
    %3289 = vmatpush.msra.mxu0 0.0
    %3290 = vmatpush.msra.mxu0 0.0
    %3291 = vmatpush.msra.mxu0 0.0
    %3292 = vmatpush.msra.mxu0 0.0
    %3293 = vmatpush.msra.mxu0 0.0
    %3294 = vmatpush.msra.mxu0 0.0
    %3295 = vmatpush.msra.mxu0 0.0
    %3296 = vmatpush.msra.mxu0 0.0
    %3297 = vmatpush.msra.mxu0 0.0
    %3298 = vmatpush.msra.mxu0 0.0
    %3299 = vmatpush.msra.mxu0 %v2009
    %3300 = vmatpush.msra.mxu0 %v2008
    %3301 = vmatpush.msra.mxu0 %v2007
    %3302 = vmatpush.msra.mxu0 %v2006
    %3303 = vmatmul.f32.gmra.mxu0 %v3282
    %v3304 = vpop.f32.mrf.mxu0
    %v3305 = vadd.f32 %v2488, %v3304
    %3306 = vmatmul.f32.gmra.mxu0 %v3285
    %v3307 = vpop.f32.mrf.mxu0
    %v3308 = vadd.f32 %v2488, %v3307
    %3309 = vdwg.mxu0
    %3310 = vmatpush.msra.mxu0 0.0
    %3311 = vmatpush.msra.mxu0 0.0
    %3312 = vmatpush.msra.mxu0 0.0
    %3313 = vmatpush.msra.mxu0 0.0
    %3314 = vmatpush.msra.mxu0 0.0
    %3315 = vmatpush.msra.mxu0 0.0
    %3316 = vmatpush.msra.mxu0 0.0
    %3317 = vmatpush.msra.mxu0 0.0
    %3318 = vmatpush.msra.mxu0 0.0
    %3319 = vmatpush.msra.mxu0 0.0
    %3320 = vmatpush.msra.mxu0 0.0
    %3321 = vmatpush.msra.mxu0 0.0
    %3322 = vmatpush.msra.mxu0 %v2016
    %3323 = vmatpush.msra.mxu0 %v2015
    %3324 = vmatpush.msra.mxu0 %v2014
    %3325 = vmatpush.msra.mxu0 %v2013
    %3326 = vmatmul.f32.gmra.mxu0 %v3282
    %v3327 = vpop.f32.mrf.mxu0
    %v3328 = vadd.f32 %v2520, %v3327
    %3329 = vmatmul.f32.gmra.mxu0 %v3285
    %v3330 = vpop.f32.mrf.mxu0
    %v3331 = vadd.f32 %v2520, %v3330
    %3332 = vdwg.mxu0
    %3333 = vmatpush.msra.mxu0 0.0
    %3334 = vmatpush.msra.mxu0 0.0
    %3335 = vmatpush.msra.mxu0 0.0
    %3336 = vmatpush.msra.mxu0 0.0
    %3337 = vmatpush.msra.mxu0 0.0
    %3338 = vmatpush.msra.mxu0 0.0
    %3339 = vmatpush.msra.mxu0 0.0
    %3340 = vmatpush.msra.mxu0 0.0
    %3341 = vmatpush.msra.mxu0 0.0
    %3342 = vmatpush.msra.mxu0 0.0
    %3343 = vmatpush.msra.mxu0 0.0
    %3344 = vmatpush.msra.mxu0 0.0
    %3345 = vmatpush.msra.mxu0 %v2023
    %3346 = vmatpush.msra.mxu0 %v2022
    %3347 = vmatpush.msra.mxu0 %v2021
    %3348 = vmatpush.msra.mxu0 %v2020
    %3349 = vmatmul.f32.gmra.mxu0 %v3282
    %v3350 = vpop.f32.mrf.mxu0
    %v3351 = vadd.f32 %v2546, %v3350
    %3352 = vmatmul.f32.gmra.mxu0 %v3285
    %v3353 = vpop.f32.mrf.mxu0
    %v3354 = vadd.f32 %v2546, %v3353
    %3355 = vdwg.mxu0
    %3356 = vmatpush.msra.mxu0 0.0
    %3357 = vmatpush.msra.mxu0 0.0
    %3358 = vmatpush.msra.mxu0 0.0
    %3359 = vmatpush.msra.mxu0 0.0
    %3360 = vmatpush.msra.mxu0 0.0
    %3361 = vmatpush.msra.mxu0 0.0
    %3362 = vmatpush.msra.mxu0 0.0
    %3363 = vmatpush.msra.mxu0 0.0
    %3364 = vmatpush.msra.mxu0 0.0
    %3365 = vmatpush.msra.mxu0 0.0
    %3366 = vmatpush.msra.mxu0 0.0
    %3367 = vmatpush.msra.mxu0 0.0
    %3368 = vmatpush.msra.mxu0 0.0
    %3369 = vmatpush.msra.mxu0 0.0
    %3370 = vmatpush.msra.mxu0 %v3331
    %3371 = vmatpush.msra.mxu0 %v3328
    %3372 = vmatmul.f32.gmra.mxu0 %v486
    %v3373 = vpop.f32.mrf.mxu0
    %v3374 = vadd.f32 0.0, %v3373
    %3375 = vmatmul.f32.gmra.mxu0 %v489
    %v3376 = vpop.f32.mrf.mxu0
    %v3377 = vadd.f32 0.0, %v3376
    %3378 = vmatmul.f32.gmra.mxu0 %v492
    %v3379 = vpop.f32.mrf.mxu0
    %v3380 = vadd.f32 0.0, %v3379
    %3381 = vmatmul.f32.gmra.mxu0 %v495
    %v3382 = vpop.f32.mrf.mxu0
    %v3383 = vadd.f32 0.0, %v3382
    %3384 = vmatmul.f32.gmra.mxu0 %v498
    %v3385 = vpop.f32.mrf.mxu0
    %v3386 = vadd.f32 0.0, %v3385
    %3387 = vmatmul.f32.gmra.mxu0 %v501
    %v3388 = vpop.f32.mrf.mxu0
    %v3389 = vadd.f32 0.0, %v3388
    %3390 = vmatmul.f32.gmra.mxu0 %v504
    %v3391 = vpop.f32.mrf.mxu0
    %v3392 = vadd.f32 0.0, %v3391
    %3393 = vmatmul.f32.gmra.mxu0 %v507
    %v3394 = vpop.f32.mrf.mxu0
    %v3395 = vadd.f32 0.0, %v3394
    %3396 = vdwg.mxu0
    %v3397 = vmul.f32 %v3374, %v279
    %v3398 = vmul.f32 %v3377, %v280
    %v3399 = vmul.f32 %v3380, %v281
    %v3400 = vmul.f32 %v3383, %v282
    %v3401 = vmul.f32 %v3386, %v283
    %v3402 = vmul.f32 %v3389, %v284
    %v3403 = vmul.f32 %v3392, %v285
    %v3404 = vmul.f32 %v3395, %v286
    %3405 = vmatpush.msra.mxu0 0.0
    %3406 = vmatpush.msra.mxu0 0.0
    %3407 = vmatpush.msra.mxu0 0.0
    %3408 = vmatpush.msra.mxu0 0.0
    %3409 = vmatpush.msra.mxu0 0.0
    %3410 = vmatpush.msra.mxu0 0.0
    %3411 = vmatpush.msra.mxu0 0.0
    %3412 = vmatpush.msra.mxu0 0.0
    %3413 = vmatpush.msra.mxu0 0.0
    %3414 = vmatpush.msra.mxu0 0.0
    %3415 = vmatpush.msra.mxu0 0.0
    %3416 = vmatpush.msra.mxu0 0.0
    %3417 = vmatpush.msra.mxu0 0.0
    %3418 = vmatpush.msra.mxu0 0.0
    %3419 = vmatpush.msra.mxu0 %v3354
    %3420 = vmatpush.msra.mxu0 %v3351
    %3421 = vmatmul.f32.gmra.mxu0 %v486
    %v3422 = vpop.f32.mrf.mxu0
    %v3423 = vadd.f32 0.0, %v3422
    %3424 = vmatmul.f32.gmra.mxu0 %v489
    %v3425 = vpop.f32.mrf.mxu0
    %v3426 = vadd.f32 0.0, %v3425
    %3427 = vmatmul.f32.gmra.mxu0 %v492
    %v3428 = vpop.f32.mrf.mxu0
    %v3429 = vadd.f32 0.0, %v3428
    %3430 = vmatmul.f32.gmra.mxu0 %v495
    %v3431 = vpop.f32.mrf.mxu0
    %v3432 = vadd.f32 0.0, %v3431
    %3433 = vmatmul.f32.gmra.mxu0 %v498
    %v3434 = vpop.f32.mrf.mxu0
    %v3435 = vadd.f32 0.0, %v3434
    %3436 = vmatmul.f32.gmra.mxu0 %v501
    %v3437 = vpop.f32.mrf.mxu0
    %v3438 = vadd.f32 0.0, %v3437
    %3439 = vmatmul.f32.gmra.mxu0 %v504
    %v3440 = vpop.f32.mrf.mxu0
    %v3441 = vadd.f32 0.0, %v3440
    %3442 = vmatmul.f32.gmra.mxu0 %v507
    %v3443 = vpop.f32.mrf.mxu0
    %v3444 = vadd.f32 0.0, %v3443
    %3445 = vdwg.mxu0
    %v3446 = vmul.f32 %v3423, %v279
    %v3447 = vmul.f32 %v3426, %v280
    %v3448 = vmul.f32 %v3429, %v281
    %v3449 = vmul.f32 %v3432, %v282
    %v3450 = vmul.f32 %v3435, %v283
    %v3451 = vmul.f32 %v3438, %v284
    %v3452 = vmul.f32 %v3441, %v285
    %v3453 = vmul.f32 %v3444, %v286
    %v3455 = vsel %vm338, %v3305, 0
    %v3458 = vsel %vm338, %v3308, 0
    %v3461 = vsel %vm338, %v3397, 0
    %v3464 = vsel %vm338, %v3398, 0
    %v3467 = vsel %vm338, %v3399, 0
    %v3470 = vsel %vm338, %v3400, 0
    %v3473 = vsel %vm338, %v3401, 0
    %v3476 = vsel %vm338, %v3402, 0
    %v3479 = vsel %vm338, %v3403, 0
    %v3482 = vsel %vm338, %v3404, 0
    %3484 = vmatpush.xpose.msra.mxu0 0.0
    %3485 = vmatpush.xpose.msra.mxu0 0.0
    %3486 = vmatpush.xpose.msra.mxu0 0.0
    %3487 = vmatpush.xpose.msra.mxu0 0.0
    %3488 = vmatpush.xpose.msra.mxu0 0.0
    %3489 = vmatpush.xpose.msra.mxu0 0.0
    %3490 = vmatpush.xpose.msra.mxu0 0.0
    %3491 = vmatpush.xpose.msra.mxu0 0.0
    %3492 = vmatpush.xpose.msra.mxu0 %v3482
    %3493 = vmatpush.xpose.msra.mxu0 %v3479
    %3494 = vmatpush.xpose.msra.mxu0 %v3476
    %3495 = vmatpush.xpose.msra.mxu0 %v3473
    %3496 = vmatpush.xpose.msra.mxu0 %v3470
    %3497 = vmatpush.xpose.msra.mxu0 %v3467
    %3498 = vmatpush.xpose.msra.mxu0 %v3464
    %3499 = vmatpush.xpose.msra.mxu0 %v3461
    %3500 = vmatmul.f32.gmra.mxu0 %v3455
    %v3501 = vpop.f32.mrf.mxu0
    %v3502 = vadd.f32 0.0, %v3501
    %3503 = vmatmul.f32.gmra.mxu0 %v3458
    %v3504 = vpop.f32.mrf.mxu0
    %v3505 = vadd.f32 0.0, %v3504
    %3506 = vdwg.mxu0
    %v3507 = vmul.f32 %v3502, 0.35355338
    %v3508 = vmul.f32 %v3505, 0.35355338
    %v3509 = vadd.f32 %v3507, %v287
    %v3510 = vadd.f32 %v3508, %v288
    %v3511 = vsel %vm664, %v3509, -inf
    %3512 = vmax.xlane.f32.xlu0 %v3511
    %v3513 = vpop.xlane.xlu0 %3512
    %v3514 = vsel %vm664, %v3510, -inf
    %3515 = vmax.xlane.f32.xlu0 %v3514
    %v3516 = vpop.xlane.xlu0 %3515
    %v3517 = vsub.f32 %v3509, %v3513
    %v3518 = vsub.f32 %v3510, %v3516
    %v3519 = vmul.f32 %v3517, 1.442695
    %v3520 = vpow.pop %v3519
    %v3521 = vmul.f32 %v3518, 1.442695
    %v3522 = vpow.pop %v3521
    %v3524 = vsel %vm664, %v3520, 0
    %v3527 = vsel %vm664, %v3522, 0
    %3529 = vmatpush.msra.mxu0 0.0
    %3530 = vmatpush.msra.mxu0 0.0
    %3531 = vmatpush.msra.mxu0 0.0
    %3532 = vmatpush.msra.mxu0 0.0
    %3533 = vmatpush.msra.mxu0 0.0
    %3534 = vmatpush.msra.mxu0 0.0
    %3535 = vmatpush.msra.mxu0 0.0
    %3536 = vmatpush.msra.mxu0 0.0
    %3537 = vmatpush.msra.mxu0 %v3453
    %3538 = vmatpush.msra.mxu0 %v3452
    %3539 = vmatpush.msra.mxu0 %v3451
    %3540 = vmatpush.msra.mxu0 %v3450
    %3541 = vmatpush.msra.mxu0 %v3449
    %3542 = vmatpush.msra.mxu0 %v3448
    %3543 = vmatpush.msra.mxu0 %v3447
    %3544 = vmatpush.msra.mxu0 %v3446
    %3545 = vmatmul.f32.gmra.mxu0 %v3524
    %v3546 = vpop.f32.mrf.mxu0
    %v3547 = vadd.f32 0.0, %v3546
    %3548 = vmatmul.f32.gmra.mxu0 %v3527
    %v3549 = vpop.f32.mrf.mxu0
    %v3550 = vadd.f32 0.0, %v3549
    %3551 = vdwg.mxu0
    %3552 = vmatpush.msra.mxu0 0.0
    %3553 = vmatpush.msra.mxu0 0.0
    %3554 = vmatpush.msra.mxu0 0.0
    %3555 = vmatpush.msra.mxu0 0.0
    %3556 = vmatpush.msra.mxu0 0.0
    %3557 = vmatpush.msra.mxu0 0.0
    %3558 = vmatpush.msra.mxu0 0.0
    %3559 = vmatpush.msra.mxu0 0.0
    %3560 = vmatpush.msra.mxu0 %v286
    %3561 = vmatpush.msra.mxu0 %v285
    %3562 = vmatpush.msra.mxu0 %v284
    %3563 = vmatpush.msra.mxu0 %v283
    %3564 = vmatpush.msra.mxu0 %v282
    %3565 = vmatpush.msra.mxu0 %v281
    %3566 = vmatpush.msra.mxu0 %v280
    %3567 = vmatpush.msra.mxu0 %v279
    %3568 = vmatmul.f32.gmra.mxu0 %v3524
    %v3569 = vpop.f32.mrf.mxu0
    %v3570 = vadd.f32 0.0, %v3569
    %3571 = vmatmul.f32.gmra.mxu0 %v3527
    %v3572 = vpop.f32.mrf.mxu0
    %v3573 = vadd.f32 0.0, %v3572
    %3574 = vdwg.mxu0
    %v3575 = vrcp.pop %v3570
    %v3576 = vrcp.pop %v3573
    %v3577 = vmul.f32 %v3547, %v3575
    %v3578 = vmul.f32 %v3550, %v3576
    %v3580 = vsel %vm338, %v3577, 0
    %v3583 = vsel %vm338, %v3578, 0
    %3585 = vmatpush.msra.mxu0 0.0
    %3586 = vmatpush.msra.mxu0 0.0
    %3587 = vmatpush.msra.mxu0 0.0
    %3588 = vmatpush.msra.mxu0 0.0
    %3589 = vmatpush.msra.mxu0 0.0
    %3590 = vmatpush.msra.mxu0 0.0
    %3591 = vmatpush.msra.mxu0 0.0
    %3592 = vmatpush.msra.mxu0 0.0
    %3593 = vmatpush.msra.mxu0 0.0
    %3594 = vmatpush.msra.mxu0 0.0
    %3595 = vmatpush.msra.mxu0 0.0
    %3596 = vmatpush.msra.mxu0 0.0
    %3597 = vmatpush.msra.mxu0 %v2030
    %3598 = vmatpush.msra.mxu0 %v2029
    %3599 = vmatpush.msra.mxu0 %v2028
    %3600 = vmatpush.msra.mxu0 %v2027
    %3601 = vmatmul.f32.gmra.mxu0 %v3580
    %v3602 = vpop.f32.mrf.mxu0
    %v3603 = vadd.f32 %v2795, %v3602
    %3604 = vmatmul.f32.gmra.mxu0 %v3583
    %v3605 = vpop.f32.mrf.mxu0
    %v3606 = vadd.f32 %v2795, %v3605
    %3607 = vdwg.mxu0
    %v3609 = vsel %vm338, %v3603, 0
    %v3612 = vsel %vm338, %v3606, 0
    %3614 = vmatpush.msra.mxu0 0.0
    %3615 = vmatpush.msra.mxu0 0.0
    %3616 = vmatpush.msra.mxu0 0.0
    %3617 = vmatpush.msra.mxu0 0.0
    %3618 = vmatpush.msra.mxu0 0.0
    %3619 = vmatpush.msra.mxu0 0.0
    %3620 = vmatpush.msra.mxu0 0.0
    %3621 = vmatpush.msra.mxu0 0.0
    %3622 = vmatpush.msra.mxu0 0.0
    %3623 = vmatpush.msra.mxu0 0.0
    %3624 = vmatpush.msra.mxu0 0.0
    %3625 = vmatpush.msra.mxu0 0.0
    %3626 = vmatpush.msra.mxu0 %v2037
    %3627 = vmatpush.msra.mxu0 %v2036
    %3628 = vmatpush.msra.mxu0 %v2035
    %3629 = vmatpush.msra.mxu0 %v2034
    %3630 = vmatmul.f32.gmra.mxu0 %v3609
    %v3631 = vpop.f32.mrf.mxu0
    %v3632 = vadd.f32 %v2827, %v3631
    %3633 = vmatmul.f32.gmra.mxu0 %v3612
    %v3634 = vpop.f32.mrf.mxu0
    %v3635 = vadd.f32 %v2827, %v3634
    %3636 = vdwg.mxu0
    %v3637 = vld [vmem:[%s9] sm:$0x3]
    %v3639 = vsel %vm484, %v3637, 0
    %3641 = vmatpush.msra.mxu0 0.0
    %3642 = vmatpush.msra.mxu0 0.0
    %3643 = vmatpush.msra.mxu0 0.0
    %3644 = vmatpush.msra.mxu0 0.0
    %3645 = vmatpush.msra.mxu0 0.0
    %3646 = vmatpush.msra.mxu0 0.0
    %3647 = vmatpush.msra.mxu0 0.0
    %3648 = vmatpush.msra.mxu0 0.0
    %3649 = vmatpush.msra.mxu0 0.0
    %3650 = vmatpush.msra.mxu0 0.0
    %3651 = vmatpush.msra.mxu0 0.0
    %3652 = vmatpush.msra.mxu0 0.0
    %3653 = vmatpush.msra.mxu0 0.0
    %3654 = vmatpush.msra.mxu0 0.0
    %3655 = vmatpush.msra.mxu0 %v3635
    %3656 = vmatpush.msra.mxu0 %v3632
    %3657 = vmatmul.f32.gmra.mxu0 %v3639
    %v3658 = vpop.f32.mrf.mxu0
    %v3659 = vadd.f32 0.0, %v3658
    %3660 = vdwg.mxu0
    %v3661 = vld [vmem:[%s55] sm:$0x1]
    %v3662 = vld [vmem:[#allocation16] sm:$0x1]
    %vm3663 = vcmask 254976
    %v3664 = vsel %vm3663, %v3659, 0.0
    %3665 = vadd.xlane.f32.xlu0 %v3664
    %v3666 = vpop.xlane.xlu0 %3665
    %v3667 = vmul.f32 %v3666, %v351
    %v3668 = vsub.f32 %v3659, %v3667
    %v3669 = vmul.f32 %v3668, %v3668
    %v3670 = vsel %vm3663, %v3669, 0.0
    %3671 = vadd.xlane.f32.xlu0 %v3670
    %v3672 = vpop.xlane.xlu0 %3671
    %v3673 = vmul.f32 %v3672, %v351
    %v3674 = vadd.f32 %v3673, 1e-05
    %v3675 = vrsqrt.pop %v3674
    %v3676 = vmul.f32 %v3675, %v3674
    %v3677 = vmul.f32 %v3676, %v3675
    %v3678 = vmul.f32 0.5, %v3677
    %v3679 = vsub.f32 1.5, %v3678
    %v3680 = vmul.f32 %v3675, %v3679
    %vm3681 = vweird.f32 %v3674
    %vm3682 = vweird.f32 %v3675
    %vm3683 = vmor %vm3681, %vm3682
    %v3684 = vsel %vm3683, %v3675, %v3680
    %v3685 = vmul.f32 %v3668, %v3684
    %v3687 = vperm.slane %v3661, 0
    %v3689 = vmul.f32 %v3685, %v3687
    %v3691 = vperm.slane %v3662, 0
    %v3693 = vadd.f32 %v3689, %v3691
    %v3694 = vld [vmem:[%s59] sm:$0xff]
    %v3695 = vld [vmem:[%s59 + $0x8] sm:$0xff]
    %v3696 = vld [vmem:[%s59 + $0x10] sm:$0xff]
    %v3697 = vld [vmem:[%s59 + $0x18] sm:$0xff]
    %v3698 = vld [vmem:[%s61] sm:$0x1]
    %v3700 = vperm.slane %v3698, 0
    %v3703 = vsel %vm338, %v3693, 0
    %3705 = vmatpush.msra.mxu0 0.0
    %3706 = vmatpush.msra.mxu0 0.0
    %3707 = vmatpush.msra.mxu0 0.0
    %3708 = vmatpush.msra.mxu0 0.0
    %3709 = vmatpush.msra.mxu0 0.0
    %3710 = vmatpush.msra.mxu0 0.0
    %3711 = vmatpush.msra.mxu0 0.0
    %3712 = vmatpush.msra.mxu0 0.0
    %3713 = vmatpush.msra.mxu0 0.0
    %3714 = vmatpush.msra.mxu0 0.0
    %3715 = vmatpush.msra.mxu0 0.0
    %3716 = vmatpush.msra.mxu0 0.0
    %3717 = vmatpush.msra.mxu0 %v3697
    %3718 = vmatpush.msra.mxu0 %v3696
    %3719 = vmatpush.msra.mxu0 %v3695
    %3720 = vmatpush.msra.mxu0 %v3694
    %3721 = vmatmul.f32.gmra.mxu0 %v3703
    %v3722 = vpop.f32.mrf.mxu0
    %v3723 = vadd.f32 %v3700, %v3722
    %3724 = vdwg.mxu0
    %vm3725 = vcmask 74752
    %3726 = vst.msk [vmem:[#allocation17] sm:$0x3] %vm3725, %v3723
    // Predicated region
    $region162: #{tpu_custom_call.1} parent=1 // pred_check
      _
    $region163: #{tpu_custom_call.1} parent=1 // pred_check_branch
      %3728 = sbr.rel (0) target = $region165
    $region164: #{tpu_custom_call.1} parent=1 // pred_region
      %3730 = vsyncadd [#allocation4], 0
      %s3732 = sshll.u32 [#allocation17], 4
      %s3733 = int_to_ptr.vmem [resolvable:$true] %s3732
      %s3734 = sshll.u32 %s63, 4
      %s3735 = int_to_ptr.hbm [resolvable:$true] %s3734
      %3737 = dma.vmem_to_hbm [thread:$0]  %s3733, 32, %s3735, [#allocation4]
    $region165: #{tpu_custom_call.1} parent=1 // pred_fallthru
      _
    // Predicated region
    $region166: #{tpu_custom_call.1} parent=1 // pred_check
      _
    $region167: #{tpu_custom_call.1} parent=1 // pred_check_branch
      %3739 = sbr.rel (0) target = $region169
    $region168: #{tpu_custom_call.1} parent=1 // pred_region
      %3741 = dma.done [#allocation4], 32
    $region169: #{tpu_custom_call.1} parent=1 // pred_fallthru
      _
    %3742 = vsyncpa [#allocation3], 1
    %3743 = vsyncpa [#allocation6], 1
    %3744 = vsyncpa [#allocation9], 1
    %3745 = vsyncpa [#allocation12], 1
    %3746 = vsyncpa [#allocation15], 1
    %3747 = vsyncpa [#allocation4], 1

</llo_original>
